<compile_context>
chip_gen: v6e
topology: v6e:2x2x1
jax: 0.10.0
libtpu: 0.0.40
codegen_flags: <defaults>
</compile_context>

<pallas_src>
import functools
import math

import jax
import jax.numpy as jnp
from jax.experimental import pallas as pl
from jax.experimental.pallas import tpu as pltpu

# ----------------------------- hyper-parameters -----------------------------
B = 2          # batch
C_IN = 3       # image channels
H = W = 16     # image spatial size
D_MODEL = 32   # model width
N_HEADS = 4
D_HEAD = D_MODEL // N_HEADS
D_FF = 64
VOCAB = 128
T = 8          # target (caption) length
S = (H // 2) * (W // 2)   # memory sequence length after stride-2 conv
K_CONV = 9 * C_IN         # 27 im2col contraction
K_CONV_PAD = 32           # padded, lane-friendlier contraction dim

_VMEM = pl.BlockSpec(memory_space=pltpu.MemorySpace.VMEM)


# ------------------------------ Pallas kernels ------------------------------
def _encoder_kernel(p_ref, w_ref, b_ref, o_ref):
    """im2col conv as a single matmul + bias + ReLU, fully in VMEM."""
    acc = jnp.dot(p_ref[...], w_ref[...], preferred_element_type=jnp.float32)
    o_ref[...] = jnp.maximum(acc + b_ref[...], 0.0)


def _fused_decoder_kernel(x_ref, mem_ref, tmask_ref, pmask_ref,
                          sa_wqkv_ref, sa_bqkv_ref, sa_wo_ref, sa_bo_ref,
                          ca_wqkv_ref, ca_bqkv_ref, ca_wo_ref, ca_bo_ref,
                          ln_g_ref, ln_b_ref,
                          ff_w1_ref, ff_b1_ref, ff_w2_ref, ff_b2_ref,
                          out_w_ref, out_b_ref,
                          logits_ref):
    """Full post-norm transformer decoder layer + vocab head in one kernel."""
    D = D_MODEL
    scale = 1.0 / math.sqrt(D_HEAD)

    x = x_ref[...]            # [B*T, D]   token embeddings (+pos, scaled)
    mem = mem_ref[...]        # [B*S, D]   encoder memory
    tmask = tmask_ref[...]    # [T, T]     additive causal mask
    pmask = pmask_ref[...]    # [B, T]     additive key-padding mask

    def layernorm(y, idx):
        g = ln_g_ref[idx:idx + 1, :]
        b = ln_b_ref[idx:idx + 1, :]
        mu = jnp.mean(y, axis=-1, keepdims=True)
        var = jnp.mean((y - mu) * (y - mu), axis=-1, keepdims=True)
        return (y - mu) * jax.lax.rsqrt(var + 1e-5) * g + b

    def mha(q, k, v, tq, tk, bias_per_batch):
        # q: [B*tq, D] (pre-scaled), k/v: [B*tk, D]; bias_per_batch: list of
        # additive [tq, tk] masks (or None).  Unrolled over (batch, head) with
        # 2-D lane-dense score slabs; everything stays in registers.
        outs = []
        for bi in range(B):
            qb = q[bi * tq:(bi + 1) * tq, :]
            kb = k[bi * tk:(bi + 1) * tk, :]
            vb = v[bi * tk:(bi + 1) * tk, :]
            heads = []
            for hi in range(N_HEADS):
                sl = slice(hi * D_HEAD, (hi + 1) * D_HEAD)
                s = jax.lax.dot_general(
                    qb[:, sl], kb[:, sl],
                    (((1,), (1,)), ((), ())),
                    preferred_element_type=jnp.float32)           # [tq, tk]
                if bias_per_batch is not None:
                    s = s + bias_per_batch[bi]
                s = s - jnp.max(s, axis=-1, keepdims=True)
                p = jnp.exp(s)
                p = p * pl.reciprocal(jnp.sum(p, axis=-1, keepdims=True),
                                      approx=True)
                heads.append(jnp.dot(p, vb[:, sl],
                                     preferred_element_type=jnp.float32))
            outs.append(jnp.concatenate(heads, axis=-1))           # [tq, D]
        return jnp.concatenate(outs, axis=0)                       # [B*tq, D]

    # -------- masked self-attention + residual + LN1 --------
    qkv = jnp.dot(x, sa_wqkv_ref[...],
                  preferred_element_type=jnp.float32) + sa_bqkv_ref[...]
    q = qkv[:, :D] * scale
    k = qkv[:, D:2 * D]
    v = qkv[:, 2 * D:]
    sa_bias = [tmask + pmask[bi:bi + 1, :] for bi in range(B)]
    a = mha(q, k, v, T, T, sa_bias)
    a = jnp.dot(a, sa_wo_ref[...],
                preferred_element_type=jnp.float32) + sa_bo_ref[...]
    x = layernorm(x + a, 0)

    # -------- cross-attention to encoder memory + residual + LN2 --------
    ca_w = ca_wqkv_ref[...]
    ca_b = ca_bqkv_ref[...]
    q = (jnp.dot(x, ca_w[:, :D],
                 preferred_element_type=jnp.float32) + ca_b[:, :D]) * scale
    kv = jnp.dot(mem, ca_w[:, D:],
                 preferred_element_type=jnp.float32) + ca_b[:, D:]
    k = kv[:, :D]
    v = kv[:, D:]
    a = mha(q, k, v, T, S, None)           # cross mask is all-zero -> dropped
    a = jnp.dot(a, ca_wo_ref[...],
                preferred_element_type=jnp.float32) + ca_bo_ref[...]
    x = layernorm(x + a, 1)

    # -------- feed-forward + residual + LN3 --------
    hdn = jnp.maximum(
        jnp.dot(x, ff_w1_ref[...],
                preferred_element_type=jnp.float32) + ff_b1_ref[...], 0.0)
    hdn = jnp.dot(hdn, ff_w2_ref[...],
                  preferred_element_type=jnp.float32) + ff_b2_ref[...]
    x = layernorm(x + hdn, 2)

    # -------- vocab head (lane-dense output: VOCAB = 128 lanes) --------
    logits_ref[...] = jnp.dot(x, out_w_ref[...],
                              preferred_element_type=jnp.float32) + out_b_ref[...]


# ------------------------------ kernel wrappers ------------------------------
def pallas_encoder(patches, conv_w, conv_b):
    m = patches.shape[0]
    return pl.pallas_call(
        _encoder_kernel,
        out_shape=jax.ShapeDtypeStruct((m, D_MODEL), jnp.float32),
        in_specs=[_VMEM, _VMEM, _VMEM],
        out_specs=_VMEM,
    )(patches, conv_w, conv_b)


def pallas_decoder(x_emb, memory2d, tmask, pmask, p):
    ins = (x_emb, memory2d, tmask, pmask,
           p["sa_wqkv"], p["sa_bqkv"], p["sa_wo"], p["sa_bo"],
           p["ca_wqkv"], p["ca_bqkv"], p["ca_wo"], p["ca_bo"],
           p["ln_g"], p["ln_b"],
           p["ff_w1"], p["ff_b1"], p["ff_w2"], p["ff_b2"],
           p["out_w"], p["out_b"])
    bt = x_emb.shape[0]
    return pl.pallas_call(
        _fused_decoder_kernel,
        out_shape=jax.ShapeDtypeStruct((bt, VOCAB), jnp.float32),
        in_specs=[_VMEM] * len(ins),
        out_specs=_VMEM,
    )(*ins)


# ------------------------------ parameter init ------------------------------
def init_params(key):
    ks = iter(jax.random.split(key, 64))

    def dense(kin, kout):
        lim = 1.0 / math.sqrt(kin)
        w = jax.random.uniform(next(ks), (kin, kout), jnp.float32, -lim, lim)
        b = jax.random.uniform(next(ks), (kout,), jnp.float32, -lim, lim)
        return w, b

    p = {}
    # encoder conv (im2col layout: rows ordered (kh, kw, c_in)); pad K 27->32
    conv_w, conv_b = dense(K_CONV, D_MODEL)
    p["conv_w"] = jnp.pad(conv_w, ((0, K_CONV_PAD - K_CONV), (0, 0)))
    p["conv_b"] = conv_b.reshape(1, D_MODEL)

    # decoder embedding + positions
    p["embed"] = jax.random.normal(next(ks), (VOCAB, D_MODEL), jnp.float32) * 0.02
    p["pos"] = jax.random.normal(next(ks), (T, D_MODEL), jnp.float32) * 0.02

    # self / cross attention projections, fused QKV
    for pfx in ("sa_", "ca_"):
        wq, bq = dense(D_MODEL, D_MODEL)
        wk, bk = dense(D_MODEL, D_MODEL)
        wv, bv = dense(D_MODEL, D_MODEL)
        wo, bo = dense(D_MODEL, D_MODEL)
        p[pfx + "wqkv"] = jnp.concatenate([wq, wk, wv], axis=1)      # [D, 3D]
        p[pfx + "bqkv"] = jnp.concatenate([bq, bk, bv]).reshape(1, 3 * D_MODEL)
        p[pfx + "wo"] = wo
        p[pfx + "bo"] = bo.reshape(1, D_MODEL)

    # layer norms (stacked: rows 0/1/2 = ln1/ln2/ln3)
    p["ln_g"] = jnp.ones((3, D_MODEL), jnp.float32)
    p["ln_b"] = jnp.zeros((3, D_MODEL), jnp.float32)

    # feed-forward
    w1, b1 = dense(D_MODEL, D_FF)
    w2, b2 = dense(D_FF, D_MODEL)
    p["ff_w1"], p["ff_b1"] = w1, b1.reshape(1, D_FF)
    p["ff_w2"], p["ff_b2"] = w2, b2.reshape(1, D_MODEL)

    # output head
    ow, ob = dense(D_MODEL, VOCAB)
    p["out_w"], p["out_b"] = ow, ob.reshape(1, VOCAB)
    return p


# --------------------------------- encoder ----------------------------------
def encoder_forward(params, x):
    # x: NCHW [B, C, H, W] -> memory [B, S, D_MODEL]; im2col is cheap XLA glue,
    # the matmul + bias + ReLU runs in one Pallas kernel.
    b, c, h, w = x.shape
    xh = jnp.transpose(x, (0, 2, 3, 1))                        # NHWC
    xp = jnp.pad(xh, ((0, 0), (1, 1), (1, 1), (0, 0)))          # pad=1
    ho, wo = h // 2, w // 2                                      # stride=2
    patches = []
    for di in range(3):
        for dj in range(3):
            patches.append(xp[:, di:di + 2 * ho:2, dj:dj + 2 * wo:2, :])
    pat = jnp.concatenate(patches, axis=-1).reshape(b * ho * wo, 9 * c)
    pat = jnp.pad(pat, ((0, 0), (0, K_CONV_PAD - 9 * c))).astype(jnp.float32)
    feat = pallas_encoder(pat, params["conv_w"], params["conv_b"])
    return feat.reshape(b, ho * wo, D_MODEL)


# --------------------------------- decoder ----------------------------------
def decoder_forward(params, memory, tgt_input, tgt_mask=None,
                    tgt_key_padding_mask=None):
    b, t = tgt_input.shape
    s = memory.shape[1]

    # token embedding + positional encoding (gather is tiny XLA glue)
    x = (params["embed"][tgt_input] * math.sqrt(D_MODEL)
         + params["pos"][:t][None]).reshape(b * t, D_MODEL)

    # additive masks: [T,T] causal + [B,T] key-padding; broadcast IN-kernel
    tmask = (jnp.zeros((t, t), jnp.float32) if tgt_mask is None
             else tgt_mask.astype(jnp.float32))
    pmask = (jnp.zeros((b, t), jnp.float32) if tgt_key_padding_mask is None
             else jnp.where(tgt_key_padding_mask, -1e9, 0.0).astype(jnp.float32))

    logits = pallas_decoder(x.astype(jnp.float32),
                            memory.reshape(b * s, D_MODEL).astype(jnp.float32),
                            tmask, pmask, params)
    return logits.reshape(b, t, VOCAB)


# ---------------------------- ImageCaptionModel -----------------------------
def image_caption_forward(params, x, tgt_input, tgt_mask=None,
                          tgt_key_padding_mask=None, use_features=False):
    if use_features:
        features = x                                  # already [B, S, D_MODEL]
    else:
        features = encoder_forward(params, x)
    return decoder_forward(params, features, tgt_input,
                           tgt_mask=tgt_mask,
                           tgt_key_padding_mask=tgt_key_padding_mask)


# ----------------------------------- main ------------------------------------
if __name__ == "__main__":
    key = jax.random.PRNGKey(0)
    k_par, k_img, k_tok = jax.random.split(key, 3)

    params = init_params(k_par)

    x = jax.random.normal(k_img, (B, C_IN, H, W), jnp.float32)          # NCHW
    tgt_input = jax.random.randint(k_tok, (B, T), 0, VOCAB, jnp.int32)  # [B, T]

    # causal additive mask (0 on/below diagonal, -1e9 above), like
    # nn.Transformer.generate_square_subsequent_mask (with finite neg value)
    tgt_mask = jnp.where(
        jnp.triu(jnp.ones((T, T), jnp.bool_), k=1), -1e9, 0.0
    ).astype(jnp.float32)
    # pad the last two positions of batch element 1
    tgt_key_padding_mask = jnp.zeros((B, T), jnp.bool_).at[1, T - 2:].set(True)

    fwd = jax.jit(functools.partial(image_caption_forward, use_features=False))
    logits = fwd(params, x, tgt_input, tgt_mask, tgt_key_padding_mask)
    logits = jax.block_until_ready(logits)

    assert logits.shape == (B, T, VOCAB)
    assert bool(jnp.all(jnp.isfinite(logits)))

    # use_features=True path: feed precomputed features straight to the decoder
    feats = jax.block_until_ready(encoder_forward(params, x))
    fwd_feat = jax.jit(functools.partial(image_caption_forward,
                                         use_features=True))
    logits2 = jax.block_until_ready(
        fwd_feat(params, feats, tgt_input, tgt_mask, tgt_key_padding_mask))
    assert logits2.shape == (B, T, VOCAB)
    assert bool(jnp.all(jnp.isfinite(logits2)))

    print("KERNEL_OK")
</pallas_src>

<mosaic_0001>
module attributes {stable_mosaic.version = 11 : i64} {
  func.func @_encoder_kernel(%arg0: memref<128x32xf32, #tpu.memory_space<vmem>>, %arg1: memref<32x32xf32, #tpu.memory_space<vmem>>, %arg2: memref<1x32xf32, #tpu.memory_space<vmem>>, %arg3: memref<128x32xf32, #tpu.memory_space<vmem>>) attributes {dimension_semantics = [], scalar_prefetch = 0 : i64, scratch_operands = 0 : i64, tpu.core_type = #tpu.core_type<tc>} {
    %c0 = arith.constant 0 : index
    %c0_0 = arith.constant 0 : index
    %0 = vector.load %arg0[%c0, %c0_0] : memref<128x32xf32, #tpu.memory_space<vmem>>, vector<128x32xf32>
    %c0_1 = arith.constant 0 : index
    %c0_2 = arith.constant 0 : index
    %1 = vector.load %arg1[%c0_1, %c0_2] : memref<32x32xf32, #tpu.memory_space<vmem>>, vector<32x32xf32>
    %cst = arith.constant dense<0.000000e+00> : vector<128x32xf32>
    %2 = tpu.matmul %0, %1, %cst {dimension_numbers = #tpu.dot_dimension_numbers<[1], [0], [0], [1], [0, 0, 1, 1], [], []>} : vector<128x32xf32>, vector<32x32xf32>, vector<128x32xf32> -> vector<128x32xf32>
    %c0_3 = arith.constant 0 : index
    %c0_4 = arith.constant 0 : index
    %3 = vector.load %arg2[%c0_3, %c0_4] : memref<1x32xf32, #tpu.memory_space<vmem>>, vector<1x32xf32>
    %4 = vector.broadcast %3 : vector<1x32xf32> to vector<128x32xf32>
    %5 = arith.addf %2, %4 : vector<128x32xf32>
    %cst_5 = arith.constant 0.000000e+00 : f32
    %6 = vector.broadcast %cst_5 : f32 to vector<128x32xf32>
    %7 = arith.maximumf %5, %6 : vector<128x32xf32>
    %c0_6 = arith.constant 0 : index
    %c0_7 = arith.constant 0 : index
    %8 = vector.load %arg3[%c0_6, %c0_7] : memref<128x32xf32, #tpu.memory_space<vmem>>, vector<128x32xf32>
    tpu.vector_store %arg3[%c0_6, %c0_7], %7 {strides = array<i32>} : memref<128x32xf32, #tpu.memory_space<vmem>>, vector<128x32xf32>,
    return
  }
}

module attributes {stable_mosaic.version = 11 : i64} {
  func.func @_fused_decoder_kernel(%arg0: memref<16x32xf32, #tpu.memory_space<vmem>>, %arg1: memref<128x32xf32, #tpu.memory_space<vmem>>, %arg2: memref<8x8xf32, #tpu.memory_space<vmem>>, %arg3: memref<2x8xf32, #tpu.memory_space<vmem>>, %arg4: memref<32x96xf32, #tpu.memory_space<vmem>>, %arg5: memref<1x96xf32, #tpu.memory_space<vmem>>, %arg6: memref<32x32xf32, #tpu.memory_space<vmem>>, %arg7: memref<1x32xf32, #tpu.memory_space<vmem>>, %arg8: memref<32x96xf32, #tpu.memory_space<vmem>>, %arg9: memref<1x96xf32, #tpu.memory_space<vmem>>, %arg10: memref<32x32xf32, #tpu.memory_space<vmem>>, %arg11: memref<1x32xf32, #tpu.memory_space<vmem>>, %arg12: memref<3x32xf32, #tpu.memory_space<vmem>>, %arg13: memref<3x32xf32, #tpu.memory_space<vmem>>, %arg14: memref<32x64xf32, #tpu.memory_space<vmem>>, %arg15: memref<1x64xf32, #tpu.memory_space<vmem>>, %arg16: memref<64x32xf32, #tpu.memory_space<vmem>>, %arg17: memref<1x32xf32, #tpu.memory_space<vmem>>, %arg18: memref<32x128xf32, #tpu.memory_space<vmem>>, %arg19: memref<1x128xf32, #tpu.memory_space<vmem>>, %arg20: memref<16x128xf32, #tpu.memory_space<vmem>>) attributes {dimension_semantics = [], scalar_prefetch = 0 : i64, scratch_operands = 0 : i64, tpu.core_type = #tpu.core_type<tc>} {
    %c0 = arith.constant 0 : index
    %c0_0 = arith.constant 0 : index
    %0 = vector.load %arg0[%c0, %c0_0] : memref<16x32xf32, #tpu.memory_space<vmem>>, vector<16x32xf32>
    %c0_1 = arith.constant 0 : index
    %c0_2 = arith.constant 0 : index
    %1 = vector.load %arg1[%c0_1, %c0_2] : memref<128x32xf32, #tpu.memory_space<vmem>>, vector<128x32xf32>
    %c0_3 = arith.constant 0 : index
    %c0_4 = arith.constant 0 : index
    %2 = vector.load %arg2[%c0_3, %c0_4] : memref<8x8xf32, #tpu.memory_space<vmem>>, vector<8x8xf32>
    %c0_5 = arith.constant 0 : index
    %c0_6 = arith.constant 0 : index
    %3 = vector.load %arg3[%c0_5, %c0_6] : memref<2x8xf32, #tpu.memory_space<vmem>>, vector<2x8xf32>
    %c0_7 = arith.constant 0 : index
    %c0_8 = arith.constant 0 : index
    %4 = vector.load %arg4[%c0_7, %c0_8] : memref<32x96xf32, #tpu.memory_space<vmem>>, vector<32x96xf32>
    %cst = arith.constant dense<0.000000e+00> : vector<16x96xf32>
    %5 = tpu.matmul %0, %4, %cst {dimension_numbers = #tpu.dot_dimension_numbers<[1], [0], [0], [1], [0, 0, 1, 1], [], []>} : vector<16x32xf32>, vector<32x96xf32>, vector<16x96xf32> -> vector<16x96xf32>
    %c0_9 = arith.constant 0 : index
    %c0_10 = arith.constant 0 : index
    %6 = vector.load %arg5[%c0_9, %c0_10] : memref<1x96xf32, #tpu.memory_space<vmem>>, vector<1x96xf32>
    %7 = vector.broadcast %6 : vector<1x96xf32> to vector<16x96xf32>
    %8 = arith.addf %5, %7 : vector<16x96xf32>
    %9 = vector.extract_strided_slice %8 {offsets = [0, 0], sizes = [16, 32], strides = [1, 1]} : vector<16x96xf32> to vector<16x32xf32>
    %cst_11 = arith.constant 0.353553385 : f32
    %10 = vector.broadcast %cst_11 : f32 to vector<16x32xf32>
    %11 = arith.mulf %9, %10 : vector<16x32xf32>
    %12 = vector.extract_strided_slice %8 {offsets = [0, 32], sizes = [16, 32], strides = [1, 1]} : vector<16x96xf32> to vector<16x32xf32>
    %13 = vector.extract_strided_slice %8 {offsets = [0, 64], sizes = [16, 32], strides = [1, 1]} : vector<16x96xf32> to vector<16x32xf32>
    %14 = vector.extract_strided_slice %3 {offsets = [0, 0], sizes = [1, 8], strides = [1, 1]} : vector<2x8xf32> to vector<1x8xf32>
    %15 = vector.broadcast %14 : vector<1x8xf32> to vector<8x8xf32>
    %16 = arith.addf %2, %15 : vector<8x8xf32>
    %17 = vector.extract_strided_slice %3 {offsets = [1, 0], sizes = [1, 8], strides = [1, 1]} : vector<2x8xf32> to vector<1x8xf32>
    %18 = vector.broadcast %17 : vector<1x8xf32> to vector<8x8xf32>
    %19 = arith.addf %2, %18 : vector<8x8xf32>
    %20 = vector.extract_strided_slice %11 {offsets = [0, 0], sizes = [8, 32], strides = [1, 1]} : vector<16x32xf32> to vector<8x32xf32>
    %21 = vector.extract_strided_slice %12 {offsets = [0, 0], sizes = [8, 32], strides = [1, 1]} : vector<16x32xf32> to vector<8x32xf32>
    %22 = vector.extract_strided_slice %13 {offsets = [0, 0], sizes = [8, 32], strides = [1, 1]} : vector<16x32xf32> to vector<8x32xf32>
    %23 = vector.extract_strided_slice %20 {offsets = [0, 0], sizes = [8, 8], strides = [1, 1]} : vector<8x32xf32> to vector<8x8xf32>
    %24 = vector.extract_strided_slice %21 {offsets = [0, 0], sizes = [8, 8], strides = [1, 1]} : vector<8x32xf32> to vector<8x8xf32>
    %cst_12 = arith.constant dense<0.000000e+00> : vector<8x8xf32>
    %25 = tpu.matmul %23, %24, %cst_12 {dimension_numbers = #tpu.dot_dimension_numbers<[1], [1], [0], [0], [0, 0, 1, 0], [], []>} : vector<8x8xf32>, vector<8x8xf32>, vector<8x8xf32> -> vector<8x8xf32>
    %26 = arith.addf %25, %16 : vector<8x8xf32>
    %cst_13 = arith.constant dense<0xFF800000> : vector<8xf32>
    %27 = vector.multi_reduction <maximumf>, %26, %cst_13 [1] : vector<8x8xf32> to vector<8xf32>
    %28 = vector.shape_cast %27 : vector<8xf32> to vector<8x1xf32>
    %29 = vector.broadcast %28 : vector<8x1xf32> to vector<8x8xf32>
    %30 = arith.subf %26, %29 : vector<8x8xf32>
    %31 = math.exp %30 : vector<8x8xf32>
    %cst_14 = arith.constant dense<0.000000e+00> : vector<8xf32>
    %32 = vector.multi_reduction <add>, %31, %cst_14 [1] : vector<8x8xf32> to vector<8xf32>
    %33 = vector.shape_cast %32 : vector<8xf32> to vector<8x1xf32>
    %34 = tpu.reciprocal %33 {approx = true} : vector<8x1xf32> -> vector<8x1xf32>
    %35 = vector.broadcast %34 : vector<8x1xf32> to vector<8x8xf32>
    %36 = arith.mulf %31, %35 : vector<8x8xf32>
    %37 = vector.extract_strided_slice %22 {offsets = [0, 0], sizes = [8, 8], strides = [1, 1]} : vector<8x32xf32> to vector<8x8xf32>
    %cst_15 = arith.constant dense<0.000000e+00> : vector<8x8xf32>
    %38 = tpu.matmul %36, %37, %cst_15 {dimension_numbers = #tpu.dot_dimension_numbers<[1], [0], [0], [1], [0, 0, 1, 1], [], []>} : vector<8x8xf32>, vector<8x8xf32>, vector<8x8xf32> -> vector<8x8xf32>
    %39 = vector.extract_strided_slice %20 {offsets = [0, 8], sizes = [8, 8], strides = [1, 1]} : vector<8x32xf32> to vector<8x8xf32>
    %40 = vector.extract_strided_slice %21 {offsets = [0, 8], sizes = [8, 8], strides = [1, 1]} : vector<8x32xf32> to vector<8x8xf32>
    %cst_16 = arith.constant dense<0.000000e+00> : vector<8x8xf32>
    %41 = tpu.matmul %39, %40, %cst_16 {dimension_numbers = #tpu.dot_dimension_numbers<[1], [1], [0], [0], [0, 0, 1, 0], [], []>} : vector<8x8xf32>, vector<8x8xf32>, vector<8x8xf32> -> vector<8x8xf32>
    %42 = arith.addf %41, %16 : vector<8x8xf32>
    %cst_17 = arith.constant dense<0xFF800000> : vector<8xf32>
    %43 = vector.multi_reduction <maximumf>, %42, %cst_17 [1] : vector<8x8xf32> to vector<8xf32>
    %44 = vector.shape_cast %43 : vector<8xf32> to vector<8x1xf32>
    %45 = vector.broadcast %44 : vector<8x1xf32> to vector<8x8xf32>
    %46 = arith.subf %42, %45 : vector<8x8xf32>
    %47 = math.exp %46 : vector<8x8xf32>
    %cst_18 = arith.constant dense<0.000000e+00> : vector<8xf32>
    %48 = vector.multi_reduction <add>, %47, %cst_18 [1] : vector<8x8xf32> to vector<8xf32>
    %49 = vector.shape_cast %48 : vector<8xf32> to vector<8x1xf32>
    %50 = tpu.reciprocal %49 {approx = true} : vector<8x1xf32> -> vector<8x1xf32>
    %51 = vector.broadcast %50 : vector<8x1xf32> to vector<8x8xf32>
    %52 = arith.mulf %47, %51 : vector<8x8xf32>
    %53 = vector.extract_strided_slice %22 {offsets = [0, 8], sizes = [8, 8], strides = [1, 1]} : vector<8x32xf32> to vector<8x8xf32>
    %cst_19 = arith.constant dense<0.000000e+00> : vector<8x8xf32>
    %54 = tpu.matmul %52, %53, %cst_19 {dimension_numbers = #tpu.dot_dimension_numbers<[1], [0], [0], [1], [0, 0, 1, 1], [], []>} : vector<8x8xf32>, vector<8x8xf32>, vector<8x8xf32> -> vector<8x8xf32>
    %55 = vector.extract_strided_slice %20 {offsets = [0, 16], sizes = [8, 8], strides = [1, 1]} : vector<8x32xf32> to vector<8x8xf32>
    %56 = vector.extract_strided_slice %21 {offsets = [0, 16], sizes = [8, 8], strides = [1, 1]} : vector<8x32xf32> to vector<8x8xf32>
    %cst_20 = arith.constant dense<0.000000e+00> : vector<8x8xf32>
    %57 = tpu.matmul %55, %56, %cst_20 {dimension_numbers = #tpu.dot_dimension_numbers<[1], [1], [0], [0], [0, 0, 1, 0], [], []>} : vector<8x8xf32>, vector<8x8xf32>, vector<8x8xf32> -> vector<8x8xf32>
    %58 = arith.addf %57, %16 : vector<8x8xf32>
    %cst_21 = arith.constant dense<0xFF800000> : vector<8xf32>
    %59 = vector.multi_reduction <maximumf>, %58, %cst_21 [1] : vector<8x8xf32> to vector<8xf32>
    %60 = vector.shape_cast %59 : vector<8xf32> to vector<8x1xf32>
    %61 = vector.broadcast %60 : vector<8x1xf32> to vector<8x8xf32>
    %62 = arith.subf %58, %61 : vector<8x8xf32>
    %63 = math.exp %62 : vector<8x8xf32>
    %cst_22 = arith.constant dense<0.000000e+00> : vector<8xf32>
    %64 = vector.multi_reduction <add>, %63, %cst_22 [1] : vector<8x8xf32> to vector<8xf32>
    %65 = vector.shape_cast %64 : vector<8xf32> to vector<8x1xf32>
    %66 = tpu.reciprocal %65 {approx = true} : vector<8x1xf32> -> vector<8x1xf32>
    %67 = vector.broadcast %66 : vector<8x1xf32> to vector<8x8xf32>
    %68 = arith.mulf %63, %67 : vector<8x8xf32>
    %69 = vector.extract_strided_slice %22 {offsets = [0, 16], sizes = [8, 8], strides = [1, 1]} : vector<8x32xf32> to vector<8x8xf32>
    %cst_23 = arith.constant dense<0.000000e+00> : vector<8x8xf32>
    %70 = tpu.matmul %68, %69, %cst_23 {dimension_numbers = #tpu.dot_dimension_numbers<[1], [0], [0], [1], [0, 0, 1, 1], [], []>} : vector<8x8xf32>, vector<8x8xf32>, vector<8x8xf32> -> vector<8x8xf32>
    %71 = vector.extract_strided_slice %20 {offsets = [0, 24], sizes = [8, 8], strides = [1, 1]} : vector<8x32xf32> to vector<8x8xf32>
    %72 = vector.extract_strided_slice %21 {offsets = [0, 24], sizes = [8, 8], strides = [1, 1]} : vector<8x32xf32> to vector<8x8xf32>
    %cst_24 = arith.constant dense<0.000000e+00> : vector<8x8xf32>
    %73 = tpu.matmul %71, %72, %cst_24 {dimension_numbers = #tpu.dot_dimension_numbers<[1], [1], [0], [0], [0, 0, 1, 0], [], []>} : vector<8x8xf32>, vector<8x8xf32>, vector<8x8xf32> -> vector<8x8xf32>
    %74 = arith.addf %73, %16 : vector<8x8xf32>
    %cst_25 = arith.constant dense<0xFF800000> : vector<8xf32>
    %75 = vector.multi_reduction <maximumf>, %74, %cst_25 [1] : vector<8x8xf32> to vector<8xf32>
    %76 = vector.shape_cast %75 : vector<8xf32> to vector<8x1xf32>
    %77 = vector.broadcast %76 : vector<8x1xf32> to vector<8x8xf32>
    %78 = arith.subf %74, %77 : vector<8x8xf32>
    %79 = math.exp %78 : vector<8x8xf32>
    %cst_26 = arith.constant dense<0.000000e+00> : vector<8xf32>
    %80 = vector.multi_reduction <add>, %79, %cst_26 [1] : vector<8x8xf32> to vector<8xf32>
    %81 = vector.shape_cast %80 : vector<8xf32> to vector<8x1xf32>
    %82 = tpu.reciprocal %81 {approx = true} : vector<8x1xf32> -> vector<8x1xf32>
    %83 = vector.broadcast %82 : vector<8x1xf32> to vector<8x8xf32>
    %84 = arith.mulf %79, %83 : vector<8x8xf32>
    %85 = vector.extract_strided_slice %22 {offsets = [0, 24], sizes = [8, 8], strides = [1, 1]} : vector<8x32xf32> to vector<8x8xf32>
    %cst_27 = arith.constant dense<0.000000e+00> : vector<8x8xf32>
    %86 = tpu.matmul %84, %85, %cst_27 {dimension_numbers = #tpu.dot_dimension_numbers<[1], [0], [0], [1], [0, 0, 1, 1], [], []>} : vector<8x8xf32>, vector<8x8xf32>, vector<8x8xf32> -> vector<8x8xf32>
    %87 = tpu.concatenate %38, %54, %70, %86 in 1 : vector<8x8xf32>, vector<8x8xf32>, vector<8x8xf32>, vector<8x8xf32> -> vector<8x32xf32>
    %88 = vector.extract_strided_slice %11 {offsets = [8, 0], sizes = [8, 32], strides = [1, 1]} : vector<16x32xf32> to vector<8x32xf32>
    %89 = vector.extract_strided_slice %12 {offsets = [8, 0], sizes = [8, 32], strides = [1, 1]} : vector<16x32xf32> to vector<8x32xf32>
    %90 = vector.extract_strided_slice %13 {offsets = [8, 0], sizes = [8, 32], strides = [1, 1]} : vector<16x32xf32> to vector<8x32xf32>
    %91 = vector.extract_strided_slice %88 {offsets = [0, 0], sizes = [8, 8], strides = [1, 1]} : vector<8x32xf32> to vector<8x8xf32>
    %92 = vector.extract_strided_slice %89 {offsets = [0, 0], sizes = [8, 8], strides = [1, 1]} : vector<8x32xf32> to vector<8x8xf32>
    %cst_28 = arith.constant dense<0.000000e+00> : vector<8x8xf32>
    %93 = tpu.matmul %91, %92, %cst_28 {dimension_numbers = #tpu.dot_dimension_numbers<[1], [1], [0], [0], [0, 0, 1, 0], [], []>} : vector<8x8xf32>, vector<8x8xf32>, vector<8x8xf32> -> vector<8x8xf32>
    %94 = arith.addf %93, %19 : vector<8x8xf32>
    %cst_29 = arith.constant dense<0xFF800000> : vector<8xf32>
    %95 = vector.multi_reduction <maximumf>, %94, %cst_29 [1] : vector<8x8xf32> to vector<8xf32>
    %96 = vector.shape_cast %95 : vector<8xf32> to vector<8x1xf32>
    %97 = vector.broadcast %96 : vector<8x1xf32> to vector<8x8xf32>
    %98 = arith.subf %94, %97 : vector<8x8xf32>
    %99 = math.exp %98 : vector<8x8xf32>
    %cst_30 = arith.constant dense<0.000000e+00> : vector<8xf32>
    %100 = vector.multi_reduction <add>, %99, %cst_30 [1] : vector<8x8xf32> to vector<8xf32>
    %101 = vector.shape_cast %100 : vector<8xf32> to vector<8x1xf32>
    %102 = tpu.reciprocal %101 {approx = true} : vector<8x1xf32> -> vector<8x1xf32>
    %103 = vector.broadcast %102 : vector<8x1xf32> to vector<8x8xf32>
    %104 = arith.mulf %99, %103 : vector<8x8xf32>
    %105 = vector.extract_strided_slice %90 {offsets = [0, 0], sizes = [8, 8], strides = [1, 1]} : vector<8x32xf32> to vector<8x8xf32>
    %cst_31 = arith.constant dense<0.000000e+00> : vector<8x8xf32>
    %106 = tpu.matmul %104, %105, %cst_31 {dimension_numbers = #tpu.dot_dimension_numbers<[1], [0], [0], [1], [0, 0, 1, 1], [], []>} : vector<8x8xf32>, vector<8x8xf32>, vector<8x8xf32> -> vector<8x8xf32>
    %107 = vector.extract_strided_slice %88 {offsets = [0, 8], sizes = [8, 8], strides = [1, 1]} : vector<8x32xf32> to vector<8x8xf32>
    %108 = vector.extract_strided_slice %89 {offsets = [0, 8], sizes = [8, 8], strides = [1, 1]} : vector<8x32xf32> to vector<8x8xf32>
    %cst_32 = arith.constant dense<0.000000e+00> : vector<8x8xf32>
    %109 = tpu.matmul %107, %108, %cst_32 {dimension_numbers = #tpu.dot_dimension_numbers<[1], [1], [0], [0], [0, 0, 1, 0], [], []>} : vector<8x8xf32>, vector<8x8xf32>, vector<8x8xf32> -> vector<8x8xf32>
    %110 = arith.addf %109, %19 : vector<8x8xf32>
    %cst_33 = arith.constant dense<0xFF800000> : vector<8xf32>
    %111 = vector.multi_reduction <maximumf>, %110, %cst_33 [1] : vector<8x8xf32> to vector<8xf32>
    %112 = vector.shape_cast %111 : vector<8xf32> to vector<8x1xf32>
    %113 = vector.broadcast %112 : vector<8x1xf32> to vector<8x8xf32>
    %114 = arith.subf %110, %113 : vector<8x8xf32>
    %115 = math.exp %114 : vector<8x8xf32>
    %cst_34 = arith.constant dense<0.000000e+00> : vector<8xf32>
    %116 = vector.multi_reduction <add>, %115, %cst_34 [1] : vector<8x8xf32> to vector<8xf32>
    %117 = vector.shape_cast %116 : vector<8xf32> to vector<8x1xf32>
    %118 = tpu.reciprocal %117 {approx = true} : vector<8x1xf32> -> vector<8x1xf32>
    %119 = vector.broadcast %118 : vector<8x1xf32> to vector<8x8xf32>
    %120 = arith.mulf %115, %119 : vector<8x8xf32>
    %121 = vector.extract_strided_slice %90 {offsets = [0, 8], sizes = [8, 8], strides = [1, 1]} : vector<8x32xf32> to vector<8x8xf32>
    %cst_35 = arith.constant dense<0.000000e+00> : vector<8x8xf32>
    %122 = tpu.matmul %120, %121, %cst_35 {dimension_numbers = #tpu.dot_dimension_numbers<[1], [0], [0], [1], [0, 0, 1, 1], [], []>} : vector<8x8xf32>, vector<8x8xf32>, vector<8x8xf32> -> vector<8x8xf32>
    %123 = vector.extract_strided_slice %88 {offsets = [0, 16], sizes = [8, 8], strides = [1, 1]} : vector<8x32xf32> to vector<8x8xf32>
    %124 = vector.extract_strided_slice %89 {offsets = [0, 16], sizes = [8, 8], strides = [1, 1]} : vector<8x32xf32> to vector<8x8xf32>
    %cst_36 = arith.constant dense<0.000000e+00> : vector<8x8xf32>
    %125 = tpu.matmul %123, %124, %cst_36 {dimension_numbers = #tpu.dot_dimension_numbers<[1], [1], [0], [0], [0, 0, 1, 0], [], []>} : vector<8x8xf32>, vector<8x8xf32>, vector<8x8xf32> -> vector<8x8xf32>
    %126 = arith.addf %125, %19 : vector<8x8xf32>
    %cst_37 = arith.constant dense<0xFF800000> : vector<8xf32>
    %127 = vector.multi_reduction <maximumf>, %126, %cst_37 [1] : vector<8x8xf32> to vector<8xf32>
    %128 = vector.shape_cast %127 : vector<8xf32> to vector<8x1xf32>
    %129 = vector.broadcast %128 : vector<8x1xf32> to vector<8x8xf32>
    %130 = arith.subf %126, %129 : vector<8x8xf32>
    %131 = math.exp %130 : vector<8x8xf32>
    %cst_38 = arith.constant dense<0.000000e+00> : vector<8xf32>
    %132 = vector.multi_reduction <add>, %131, %cst_38 [1] : vector<8x8xf32> to vector<8xf32>
    %133 = vector.shape_cast %132 : vector<8xf32> to vector<8x1xf32>
    %134 = tpu.reciprocal %133 {approx = true} : vector<8x1xf32> -> vector<8x1xf32>
    %135 = vector.broadcast %134 : vector<8x1xf32> to vector<8x8xf32>
    %136 = arith.mulf %131, %135 : vector<8x8xf32>
    %137 = vector.extract_strided_slice %90 {offsets = [0, 16], sizes = [8, 8], strides = [1, 1]} : vector<8x32xf32> to vector<8x8xf32>
    %cst_39 = arith.constant dense<0.000000e+00> : vector<8x8xf32>
    %138 = tpu.matmul %136, %137, %cst_39 {dimension_numbers = #tpu.dot_dimension_numbers<[1], [0], [0], [1], [0, 0, 1, 1], [], []>} : vector<8x8xf32>, vector<8x8xf32>, vector<8x8xf32> -> vector<8x8xf32>
    %139 = vector.extract_strided_slice %88 {offsets = [0, 24], sizes = [8, 8], strides = [1, 1]} : vector<8x32xf32> to vector<8x8xf32>
    %140 = vector.extract_strided_slice %89 {offsets = [0, 24], sizes = [8, 8], strides = [1, 1]} : vector<8x32xf32> to vector<8x8xf32>
    %cst_40 = arith.constant dense<0.000000e+00> : vector<8x8xf32>
    %141 = tpu.matmul %139, %140, %cst_40 {dimension_numbers = #tpu.dot_dimension_numbers<[1], [1], [0], [0], [0, 0, 1, 0], [], []>} : vector<8x8xf32>, vector<8x8xf32>, vector<8x8xf32> -> vector<8x8xf32>
    %142 = arith.addf %141, %19 : vector<8x8xf32>
    %cst_41 = arith.constant dense<0xFF800000> : vector<8xf32>
    %143 = vector.multi_reduction <maximumf>, %142, %cst_41 [1] : vector<8x8xf32> to vector<8xf32>
    %144 = vector.shape_cast %143 : vector<8xf32> to vector<8x1xf32>
    %145 = vector.broadcast %144 : vector<8x1xf32> to vector<8x8xf32>
    %146 = arith.subf %142, %145 : vector<8x8xf32>
    %147 = math.exp %146 : vector<8x8xf32>
    %cst_42 = arith.constant dense<0.000000e+00> : vector<8xf32>
    %148 = vector.multi_reduction <add>, %147, %cst_42 [1] : vector<8x8xf32> to vector<8xf32>
    %149 = vector.shape_cast %148 : vector<8xf32> to vector<8x1xf32>
    %150 = tpu.reciprocal %149 {approx = true} : vector<8x1xf32> -> vector<8x1xf32>
    %151 = vector.broadcast %150 : vector<8x1xf32> to vector<8x8xf32>
    %152 = arith.mulf %147, %151 : vector<8x8xf32>
    %153 = vector.extract_strided_slice %90 {offsets = [0, 24], sizes = [8, 8], strides = [1, 1]} : vector<8x32xf32> to vector<8x8xf32>
    %cst_43 = arith.constant dense<0.000000e+00> : vector<8x8xf32>
    %154 = tpu.matmul %152, %153, %cst_43 {dimension_numbers = #tpu.dot_dimension_numbers<[1], [0], [0], [1], [0, 0, 1, 1], [], []>} : vector<8x8xf32>, vector<8x8xf32>, vector<8x8xf32> -> vector<8x8xf32>
    %155 = tpu.concatenate %106, %122, %138, %154 in 1 : vector<8x8xf32>, vector<8x8xf32>, vector<8x8xf32>, vector<8x8xf32> -> vector<8x32xf32>
    %156 = tpu.concatenate %87, %155 in 0 : vector<8x32xf32>, vector<8x32xf32> -> vector<16x32xf32>
    %c0_44 = arith.constant 0 : index
    %c0_45 = arith.constant 0 : index
    %157 = vector.load %arg6[%c0_44, %c0_45] : memref<32x32xf32, #tpu.memory_space<vmem>>, vector<32x32xf32>
    %cst_46 = arith.constant dense<0.000000e+00> : vector<16x32xf32>
    %158 = tpu.matmul %156, %157, %cst_46 {dimension_numbers = #tpu.dot_dimension_numbers<[1], [0], [0], [1], [0, 0, 1, 1], [], []>} : vector<16x32xf32>, vector<32x32xf32>, vector<16x32xf32> -> vector<16x32xf32>
    %c0_47 = arith.constant 0 : index
    %c0_48 = arith.constant 0 : index
    %159 = vector.load %arg7[%c0_47, %c0_48] : memref<1x32xf32, #tpu.memory_space<vmem>>, vector<1x32xf32>
    %160 = vector.broadcast %159 : vector<1x32xf32> to vector<16x32xf32>
    %161 = arith.addf %158, %160 : vector<16x32xf32>
    %162 = arith.addf %0, %161 : vector<16x32xf32>
    %c0_49 = arith.constant 0 : index
    %c0_50 = arith.constant 0 : index
    %163 = vector.load %arg12[%c0_49, %c0_50] : memref<3x32xf32, #tpu.memory_space<vmem>>, vector<1x32xf32>
    %c0_51 = arith.constant 0 : index
    %c0_52 = arith.constant 0 : index
    %164 = vector.load %arg13[%c0_51, %c0_52] : memref<3x32xf32, #tpu.memory_space<vmem>>, vector<1x32xf32>
    %cst_53 = arith.constant dense<0.000000e+00> : vector<16xf32>
    %165 = vector.multi_reduction <add>, %162, %cst_53 [1] : vector<16x32xf32> to vector<16xf32>
    %166 = vector.shape_cast %165 : vector<16xf32> to vector<16x1xf32>
    %cst_54 = arith.constant 3.200000e+01 : f32
    %167 = vector.broadcast %cst_54 : f32 to vector<16x1xf32>
    %168 = arith.divf %166, %167 : vector<16x1xf32>
    %169 = vector.broadcast %168 : vector<16x1xf32> to vector<16x32xf32>
    %170 = arith.subf %162, %169 : vector<16x32xf32>
    %171 = vector.broadcast %168 : vector<16x1xf32> to vector<16x32xf32>
    %172 = arith.subf %162, %171 : vector<16x32xf32>
    %173 = arith.mulf %170, %172 : vector<16x32xf32>
    %cst_55 = arith.constant dense<0.000000e+00> : vector<16xf32>
    %174 = vector.multi_reduction <add>, %173, %cst_55 [1] : vector<16x32xf32> to vector<16xf32>
    %175 = vector.shape_cast %174 : vector<16xf32> to vector<16x1xf32>
    %cst_56 = arith.constant 3.200000e+01 : f32
    %176 = vector.broadcast %cst_56 : f32 to vector<16x1xf32>
    %177 = arith.divf %175, %176 : vector<16x1xf32>
    %178 = vector.broadcast %168 : vector<16x1xf32> to vector<16x32xf32>
    %179 = arith.subf %162, %178 : vector<16x32xf32>
    %cst_57 = arith.constant 9.99999974E-6 : f32
    %180 = vector.broadcast %cst_57 : f32 to vector<16x1xf32>
    %181 = arith.addf %177, %180 : vector<16x1xf32>
    %182 = math.rsqrt %181 : vector<16x1xf32>
    %183 = vector.broadcast %182 : vector<16x1xf32> to vector<16x32xf32>
    %184 = arith.mulf %179, %183 : vector<16x32xf32>
    %185 = vector.broadcast %163 : vector<1x32xf32> to vector<16x32xf32>
    %186 = arith.mulf %184, %185 : vector<16x32xf32>
    %187 = vector.broadcast %164 : vector<1x32xf32> to vector<16x32xf32>
    %188 = arith.addf %186, %187 : vector<16x32xf32>
    %c0_58 = arith.constant 0 : index
    %c0_59 = arith.constant 0 : index
    %189 = vector.load %arg8[%c0_58, %c0_59] : memref<32x96xf32, #tpu.memory_space<vmem>>, vector<32x96xf32>
    %c0_60 = arith.constant 0 : index
    %c0_61 = arith.constant 0 : index
    %190 = vector.load %arg9[%c0_60, %c0_61] : memref<1x96xf32, #tpu.memory_space<vmem>>, vector<1x96xf32>
    %191 = vector.extract_strided_slice %189 {offsets = [0, 0], sizes = [32, 32], strides = [1, 1]} : vector<32x96xf32> to vector<32x32xf32>
    %cst_62 = arith.constant dense<0.000000e+00> : vector<16x32xf32>
    %192 = tpu.matmul %188, %191, %cst_62 {dimension_numbers = #tpu.dot_dimension_numbers<[1], [0], [0], [1], [0, 0, 1, 1], [], []>} : vector<16x32xf32>, vector<32x32xf32>, vector<16x32xf32> -> vector<16x32xf32>
    %193 = vector.extract_strided_slice %190 {offsets = [0, 0], sizes = [1, 32], strides = [1, 1]} : vector<1x96xf32> to vector<1x32xf32>
    %194 = vector.broadcast %193 : vector<1x32xf32> to vector<16x32xf32>
    %195 = arith.addf %192, %194 : vector<16x32xf32>
    %cst_63 = arith.constant 0.353553385 : f32
    %196 = vector.broadcast %cst_63 : f32 to vector<16x32xf32>
    %197 = arith.mulf %195, %196 : vector<16x32xf32>
    %198 = vector.extract_strided_slice %189 {offsets = [0, 32], sizes = [32, 64], strides = [1, 1]} : vector<32x96xf32> to vector<32x64xf32>
    %cst_64 = arith.constant dense<0.000000e+00> : vector<128x64xf32>
    %199 = tpu.matmul %1, %198, %cst_64 {dimension_numbers = #tpu.dot_dimension_numbers<[1], [0], [0], [1], [0, 0, 1, 1], [], []>} : vector<128x32xf32>, vector<32x64xf32>, vector<128x64xf32> -> vector<128x64xf32>
    %200 = vector.extract_strided_slice %190 {offsets = [0, 32], sizes = [1, 64], strides = [1, 1]} : vector<1x96xf32> to vector<1x64xf32>
    %201 = vector.broadcast %200 : vector<1x64xf32> to vector<128x64xf32>
    %202 = arith.addf %199, %201 : vector<128x64xf32>
    %203 = vector.extract_strided_slice %202 {offsets = [0, 0], sizes = [128, 32], strides = [1, 1]} : vector<128x64xf32> to vector<128x32xf32>
    %204 = vector.extract_strided_slice %202 {offsets = [0, 32], sizes = [128, 32], strides = [1, 1]} : vector<128x64xf32> to vector<128x32xf32>
    %205 = vector.extract_strided_slice %197 {offsets = [0, 0], sizes = [8, 32], strides = [1, 1]} : vector<16x32xf32> to vector<8x32xf32>
    %206 = vector.extract_strided_slice %203 {offsets = [0, 0], sizes = [64, 32], strides = [1, 1]} : vector<128x32xf32> to vector<64x32xf32>
    %207 = vector.extract_strided_slice %204 {offsets = [0, 0], sizes = [64, 32], strides = [1, 1]} : vector<128x32xf32> to vector<64x32xf32>
    %208 = vector.extract_strided_slice %205 {offsets = [0, 0], sizes = [8, 8], strides = [1, 1]} : vector<8x32xf32> to vector<8x8xf32>
    %209 = vector.extract_strided_slice %206 {offsets = [0, 0], sizes = [64, 8], strides = [1, 1]} : vector<64x32xf32> to vector<64x8xf32>
    %cst_65 = arith.constant dense<0.000000e+00> : vector<8x64xf32>
    %210 = tpu.matmul %208, %209, %cst_65 {dimension_numbers = #tpu.dot_dimension_numbers<[1], [1], [0], [0], [0, 0, 1, 0], [], []>} : vector<8x8xf32>, vector<64x8xf32>, vector<8x64xf32> -> vector<8x64xf32>
    %cst_66 = arith.constant dense<0xFF800000> : vector<8xf32>
    %211 = vector.multi_reduction <maximumf>, %210, %cst_66 [1] : vector<8x64xf32> to vector<8xf32>
    %212 = vector.shape_cast %211 : vector<8xf32> to vector<8x1xf32>
    %213 = vector.broadcast %212 : vector<8x1xf32> to vector<8x64xf32>
    %214 = arith.subf %210, %213 : vector<8x64xf32>
    %215 = math.exp %214 : vector<8x64xf32>
    %cst_67 = arith.constant dense<0.000000e+00> : vector<8xf32>
    %216 = vector.multi_reduction <add>, %215, %cst_67 [1] : vector<8x64xf32> to vector<8xf32>
    %217 = vector.shape_cast %216 : vector<8xf32> to vector<8x1xf32>
    %218 = tpu.reciprocal %217 {approx = true} : vector<8x1xf32> -> vector<8x1xf32>
    %219 = vector.broadcast %218 : vector<8x1xf32> to vector<8x64xf32>
    %220 = arith.mulf %215, %219 : vector<8x64xf32>
    %221 = vector.extract_strided_slice %207 {offsets = [0, 0], sizes = [64, 8], strides = [1, 1]} : vector<64x32xf32> to vector<64x8xf32>
    %cst_68 = arith.constant dense<0.000000e+00> : vector<8x8xf32>
    %222 = tpu.matmul %220, %221, %cst_68 {dimension_numbers = #tpu.dot_dimension_numbers<[1], [0], [0], [1], [0, 0, 1, 1], [], []>} : vector<8x64xf32>, vector<64x8xf32>, vector<8x8xf32> -> vector<8x8xf32>
    %223 = vector.extract_strided_slice %205 {offsets = [0, 8], sizes = [8, 8], strides = [1, 1]} : vector<8x32xf32> to vector<8x8xf32>
    %224 = vector.extract_strided_slice %206 {offsets = [0, 8], sizes = [64, 8], strides = [1, 1]} : vector<64x32xf32> to vector<64x8xf32>
    %cst_69 = arith.constant dense<0.000000e+00> : vector<8x64xf32>
    %225 = tpu.matmul %223, %224, %cst_69 {dimension_numbers = #tpu.dot_dimension_numbers<[1], [1], [0], [0], [0, 0, 1, 0], [], []>} : vector<8x8xf32>, vector<64x8xf32>, vector<8x64xf32> -> vector<8x64xf32>
    %cst_70 = arith.constant dense<0xFF800000> : vector<8xf32>
    %226 = vector.multi_reduction <maximumf>, %225, %cst_70 [1] : vector<8x64xf32> to vector<8xf32>
    %227 = vector.shape_cast %226 : vector<8xf32> to vector<8x1xf32>
    %228 = vector.broadcast %227 : vector<8x1xf32> to vector<8x64xf32>
    %229 = arith.subf %225, %228 : vector<8x64xf32>
    %230 = math.exp %229 : vector<8x64xf32>
    %cst_71 = arith.constant dense<0.000000e+00> : vector<8xf32>
    %231 = vector.multi_reduction <add>, %230, %cst_71 [1] : vector<8x64xf32> to vector<8xf32>
    %232 = vector.shape_cast %231 : vector<8xf32> to vector<8x1xf32>
    %233 = tpu.reciprocal %232 {approx = true} : vector<8x1xf32> -> vector<8x1xf32>
    %234 = vector.broadcast %233 : vector<8x1xf32> to vector<8x64xf32>
    %235 = arith.mulf %230, %234 : vector<8x64xf32>
    %236 = vector.extract_strided_slice %207 {offsets = [0, 8], sizes = [64, 8], strides = [1, 1]} : vector<64x32xf32> to vector<64x8xf32>
    %cst_72 = arith.constant dense<0.000000e+00> : vector<8x8xf32>
    %237 = tpu.matmul %235, %236, %cst_72 {dimension_numbers = #tpu.dot_dimension_numbers<[1], [0], [0], [1], [0, 0, 1, 1], [], []>} : vector<8x64xf32>, vector<64x8xf32>, vector<8x8xf32> -> vector<8x8xf32>
    %238 = vector.extract_strided_slice %205 {offsets = [0, 16], sizes = [8, 8], strides = [1, 1]} : vector<8x32xf32> to vector<8x8xf32>
    %239 = vector.extract_strided_slice %206 {offsets = [0, 16], sizes = [64, 8], strides = [1, 1]} : vector<64x32xf32> to vector<64x8xf32>
    %cst_73 = arith.constant dense<0.000000e+00> : vector<8x64xf32>
    %240 = tpu.matmul %238, %239, %cst_73 {dimension_numbers = #tpu.dot_dimension_numbers<[1], [1], [0], [0], [0, 0, 1, 0], [], []>} : vector<8x8xf32>, vector<64x8xf32>, vector<8x64xf32> -> vector<8x64xf32>
    %cst_74 = arith.constant dense<0xFF800000> : vector<8xf32>
    %241 = vector.multi_reduction <maximumf>, %240, %cst_74 [1] : vector<8x64xf32> to vector<8xf32>
    %242 = vector.shape_cast %241 : vector<8xf32> to vector<8x1xf32>
    %243 = vector.broadcast %242 : vector<8x1xf32> to vector<8x64xf32>
    %244 = arith.subf %240, %243 : vector<8x64xf32>
    %245 = math.exp %244 : vector<8x64xf32>
    %cst_75 = arith.constant dense<0.000000e+00> : vector<8xf32>
    %246 = vector.multi_reduction <add>, %245, %cst_75 [1] : vector<8x64xf32> to vector<8xf32>
    %247 = vector.shape_cast %246 : vector<8xf32> to vector<8x1xf32>
    %248 = tpu.reciprocal %247 {approx = true} : vector<8x1xf32> -> vector<8x1xf32>
    %249 = vector.broadcast %248 : vector<8x1xf32> to vector<8x64xf32>
    %250 = arith.mulf %245, %249 : vector<8x64xf32>
    %251 = vector.extract_strided_slice %207 {offsets = [0, 16], sizes = [64, 8], strides = [1, 1]} : vector<64x32xf32> to vector<64x8xf32>
    %cst_76 = arith.constant dense<0.000000e+00> : vector<8x8xf32>
    %252 = tpu.matmul %250, %251, %cst_76 {dimension_numbers = #tpu.dot_dimension_numbers<[1], [0], [0], [1], [0, 0, 1, 1], [], []>} : vector<8x64xf32>, vector<64x8xf32>, vector<8x8xf32> -> vector<8x8xf32>
    %253 = vector.extract_strided_slice %205 {offsets = [0, 24], sizes = [8, 8], strides = [1, 1]} : vector<8x32xf32> to vector<8x8xf32>
    %254 = vector.extract_strided_slice %206 {offsets = [0, 24], sizes = [64, 8], strides = [1, 1]} : vector<64x32xf32> to vector<64x8xf32>
    %cst_77 = arith.constant dense<0.000000e+00> : vector<8x64xf32>
    %255 = tpu.matmul %253, %254, %cst_77 {dimension_numbers = #tpu.dot_dimension_numbers<[1], [1], [0], [0], [0, 0, 1, 0], [], []>} : vector<8x8xf32>, vector<64x8xf32>, vector<8x64xf32> -> vector<8x64xf32>
    %cst_78 = arith.constant dense<0xFF800000> : vector<8xf32>
    %256 = vector.multi_reduction <maximumf>, %255, %cst_78 [1] : vector<8x64xf32> to vector<8xf32>
    %257 = vector.shape_cast %256 : vector<8xf32> to vector<8x1xf32>
    %258 = vector.broadcast %257 : vector<8x1xf32> to vector<8x64xf32>
    %259 = arith.subf %255, %258 : vector<8x64xf32>
    %260 = math.exp %259 : vector<8x64xf32>
    %cst_79 = arith.constant dense<0.000000e+00> : vector<8xf32>
    %261 = vector.multi_reduction <add>, %260, %cst_79 [1] : vector<8x64xf32> to vector<8xf32>
    %262 = vector.shape_cast %261 : vector<8xf32> to vector<8x1xf32>
    %263 = tpu.reciprocal %262 {approx = true} : vector<8x1xf32> -> vector<8x1xf32>
    %264 = vector.broadcast %263 : vector<8x1xf32> to vector<8x64xf32>
    %265 = arith.mulf %260, %264 : vector<8x64xf32>
    %266 = vector.extract_strided_slice %207 {offsets = [0, 24], sizes = [64, 8], strides = [1, 1]} : vector<64x32xf32> to vector<64x8xf32>
    %cst_80 = arith.constant dense<0.000000e+00> : vector<8x8xf32>
    %267 = tpu.matmul %265, %266, %cst_80 {dimension_numbers = #tpu.dot_dimension_numbers<[1], [0], [0], [1], [0, 0, 1, 1], [], []>} : vector<8x64xf32>, vector<64x8xf32>, vector<8x8xf32> -> vector<8x8xf32>
    %268 = tpu.concatenate %222, %237, %252, %267 in 1 : vector<8x8xf32>, vector<8x8xf32>, vector<8x8xf32>, vector<8x8xf32> -> vector<8x32xf32>
    %269 = vector.extract_strided_slice %197 {offsets = [8, 0], sizes = [8, 32], strides = [1, 1]} : vector<16x32xf32> to vector<8x32xf32>
    %270 = vector.extract_strided_slice %203 {offsets = [64, 0], sizes = [64, 32], strides = [1, 1]} : vector<128x32xf32> to vector<64x32xf32>
    %271 = vector.extract_strided_slice %204 {offsets = [64, 0], sizes = [64, 32], strides = [1, 1]} : vector<128x32xf32> to vector<64x32xf32>
    %272 = vector.extract_strided_slice %269 {offsets = [0, 0], sizes = [8, 8], strides = [1, 1]} : vector<8x32xf32> to vector<8x8xf32>
    %273 = vector.extract_strided_slice %270 {offsets = [0, 0], sizes = [64, 8], strides = [1, 1]} : vector<64x32xf32> to vector<64x8xf32>
    %cst_81 = arith.constant dense<0.000000e+00> : vector<8x64xf32>
    %274 = tpu.matmul %272, %273, %cst_81 {dimension_numbers = #tpu.dot_dimension_numbers<[1], [1], [0], [0], [0, 0, 1, 0], [], []>} : vector<8x8xf32>, vector<64x8xf32>, vector<8x64xf32> -> vector<8x64xf32>
    %cst_82 = arith.constant dense<0xFF800000> : vector<8xf32>
    %275 = vector.multi_reduction <maximumf>, %274, %cst_82 [1] : vector<8x64xf32> to vector<8xf32>
    %276 = vector.shape_cast %275 : vector<8xf32> to vector<8x1xf32>
    %277 = vector.broadcast %276 : vector<8x1xf32> to vector<8x64xf32>
    %278 = arith.subf %274, %277 : vector<8x64xf32>
    %279 = math.exp %278 : vector<8x64xf32>
    %cst_83 = arith.constant dense<0.000000e+00> : vector<8xf32>
    %280 = vector.multi_reduction <add>, %279, %cst_83 [1] : vector<8x64xf32> to vector<8xf32>
    %281 = vector.shape_cast %280 : vector<8xf32> to vector<8x1xf32>
    %282 = tpu.reciprocal %281 {approx = true} : vector<8x1xf32> -> vector<8x1xf32>
    %283 = vector.broadcast %282 : vector<8x1xf32> to vector<8x64xf32>
    %284 = arith.mulf %279, %283 : vector<8x64xf32>
    %285 = vector.extract_strided_slice %271 {offsets = [0, 0], sizes = [64, 8], strides = [1, 1]} : vector<64x32xf32> to vector<64x8xf32>
    %cst_84 = arith.constant dense<0.000000e+00> : vector<8x8xf32>
    %286 = tpu.matmul %284, %285, %cst_84 {dimension_numbers = #tpu.dot_dimension_numbers<[1], [0], [0], [1], [0, 0, 1, 1], [], []>} : vector<8x64xf32>, vector<64x8xf32>, vector<8x8xf32> -> vector<8x8xf32>
    %287 = vector.extract_strided_slice %269 {offsets = [0, 8], sizes = [8, 8], strides = [1, 1]} : vector<8x32xf32> to vector<8x8xf32>
    %288 = vector.extract_strided_slice %270 {offsets = [0, 8], sizes = [64, 8], strides = [1, 1]} : vector<64x32xf32> to vector<64x8xf32>
    %cst_85 = arith.constant dense<0.000000e+00> : vector<8x64xf32>
    %289 = tpu.matmul %287, %288, %cst_85 {dimension_numbers = #tpu.dot_dimension_numbers<[1], [1], [0], [0], [0, 0, 1, 0], [], []>} : vector<8x8xf32>, vector<64x8xf32>, vector<8x64xf32> -> vector<8x64xf32>
    %cst_86 = arith.constant dense<0xFF800000> : vector<8xf32>
    %290 = vector.multi_reduction <maximumf>, %289, %cst_86 [1] : vector<8x64xf32> to vector<8xf32>
    %291 = vector.shape_cast %290 : vector<8xf32> to vector<8x1xf32>
    %292 = vector.broadcast %291 : vector<8x1xf32> to vector<8x64xf32>
    %293 = arith.subf %289, %292 : vector<8x64xf32>
    %294 = math.exp %293 : vector<8x64xf32>
    %cst_87 = arith.constant dense<0.000000e+00> : vector<8xf32>
    %295 = vector.multi_reduction <add>, %294, %cst_87 [1] : vector<8x64xf32> to vector<8xf32>
    %296 = vector.shape_cast %295 : vector<8xf32> to vector<8x1xf32>
    %297 = tpu.reciprocal %296 {approx = true} : vector<8x1xf32> -> vector<8x1xf32>
    %298 = vector.broadcast %297 : vector<8x1xf32> to vector<8x64xf32>
    %299 = arith.mulf %294, %298 : vector<8x64xf32>
    %300 = vector.extract_strided_slice %271 {offsets = [0, 8], sizes = [64, 8], strides = [1, 1]} : vector<64x32xf32> to vector<64x8xf32>
    %cst_88 = arith.constant dense<0.000000e+00> : vector<8x8xf32>
    %301 = tpu.matmul %299, %300, %cst_88 {dimension_numbers = #tpu.dot_dimension_numbers<[1], [0], [0], [1], [0, 0, 1, 1], [], []>} : vector<8x64xf32>, vector<64x8xf32>, vector<8x8xf32> -> vector<8x8xf32>
    %302 = vector.extract_strided_slice %269 {offsets = [0, 16], sizes = [8, 8], strides = [1, 1]} : vector<8x32xf32> to vector<8x8xf32>
    %303 = vector.extract_strided_slice %270 {offsets = [0, 16], sizes = [64, 8], strides = [1, 1]} : vector<64x32xf32> to vector<64x8xf32>
    %cst_89 = arith.constant dense<0.000000e+00> : vector<8x64xf32>
    %304 = tpu.matmul %302, %303, %cst_89 {dimension_numbers = #tpu.dot_dimension_numbers<[1], [1], [0], [0], [0, 0, 1, 0], [], []>} : vector<8x8xf32>, vector<64x8xf32>, vector<8x64xf32> -> vector<8x64xf32>
    %cst_90 = arith.constant dense<0xFF800000> : vector<8xf32>
    %305 = vector.multi_reduction <maximumf>, %304, %cst_90 [1] : vector<8x64xf32> to vector<8xf32>
    %306 = vector.shape_cast %305 : vector<8xf32> to vector<8x1xf32>
    %307 = vector.broadcast %306 : vector<8x1xf32> to vector<8x64xf32>
    %308 = arith.subf %304, %307 : vector<8x64xf32>
    %309 = math.exp %308 : vector<8x64xf32>
    %cst_91 = arith.constant dense<0.000000e+00> : vector<8xf32>
    %310 = vector.multi_reduction <add>, %309, %cst_91 [1] : vector<8x64xf32> to vector<8xf32>
    %311 = vector.shape_cast %310 : vector<8xf32> to vector<8x1xf32>
    %312 = tpu.reciprocal %311 {approx = true} : vector<8x1xf32> -> vector<8x1xf32>
    %313 = vector.broadcast %312 : vector<8x1xf32> to vector<8x64xf32>
    %314 = arith.mulf %309, %313 : vector<8x64xf32>
    %315 = vector.extract_strided_slice %271 {offsets = [0, 16], sizes = [64, 8], strides = [1, 1]} : vector<64x32xf32> to vector<64x8xf32>
    %cst_92 = arith.constant dense<0.000000e+00> : vector<8x8xf32>
    %316 = tpu.matmul %314, %315, %cst_92 {dimension_numbers = #tpu.dot_dimension_numbers<[1], [0], [0], [1], [0, 0, 1, 1], [], []>} : vector<8x64xf32>, vector<64x8xf32>, vector<8x8xf32> -> vector<8x8xf32>
    %317 = vector.extract_strided_slice %269 {offsets = [0, 24], sizes = [8, 8], strides = [1, 1]} : vector<8x32xf32> to vector<8x8xf32>
    %318 = vector.extract_strided_slice %270 {offsets = [0, 24], sizes = [64, 8], strides = [1, 1]} : vector<64x32xf32> to vector<64x8xf32>
    %cst_93 = arith.constant dense<0.000000e+00> : vector<8x64xf32>
    %319 = tpu.matmul %317, %318, %cst_93 {dimension_numbers = #tpu.dot_dimension_numbers<[1], [1], [0], [0], [0, 0, 1, 0], [], []>} : vector<8x8xf32>, vector<64x8xf32>, vector<8x64xf32> -> vector<8x64xf32>
    %cst_94 = arith.constant dense<0xFF800000> : vector<8xf32>
    %320 = vector.multi_reduction <maximumf>, %319, %cst_94 [1] : vector<8x64xf32> to vector<8xf32>
    %321 = vector.shape_cast %320 : vector<8xf32> to vector<8x1xf32>
    %322 = vector.broadcast %321 : vector<8x1xf32> to vector<8x64xf32>
    %323 = arith.subf %319, %322 : vector<8x64xf32>
    %324 = math.exp %323 : vector<8x64xf32>
    %cst_95 = arith.constant dense<0.000000e+00> : vector<8xf32>
    %325 = vector.multi_reduction <add>, %324, %cst_95 [1] : vector<8x64xf32> to vector<8xf32>
    %326 = vector.shape_cast %325 : vector<8xf32> to vector<8x1xf32>
    %327 = tpu.reciprocal %326 {approx = true} : vector<8x1xf32> -> vector<8x1xf32>
    %328 = vector.broadcast %327 : vector<8x1xf32> to vector<8x64xf32>
    %329 = arith.mulf %324, %328 : vector<8x64xf32>
    %330 = vector.extract_strided_slice %271 {offsets = [0, 24], sizes = [64, 8], strides = [1, 1]} : vector<64x32xf32> to vector<64x8xf32>
    %cst_96 = arith.constant dense<0.000000e+00> : vector<8x8xf32>
    %331 = tpu.matmul %329, %330, %cst_96 {dimension_numbers = #tpu.dot_dimension_numbers<[1], [0], [0], [1], [0, 0, 1, 1], [], []>} : vector<8x64xf32>, vector<64x8xf32>, vector<8x8xf32> -> vector<8x8xf32>
    %332 = tpu.concatenate %286, %301, %316, %331 in 1 : vector<8x8xf32>, vector<8x8xf32>, vector<8x8xf32>, vector<8x8xf32> -> vector<8x32xf32>
    %333 = tpu.concatenate %268, %332 in 0 : vector<8x32xf32>, vector<8x32xf32> -> vector<16x32xf32>
    %c0_97 = arith.constant 0 : index
    %c0_98 = arith.constant 0 : index
    %334 = vector.load %arg10[%c0_97, %c0_98] : memref<32x32xf32, #tpu.memory_space<vmem>>, vector<32x32xf32>
    %cst_99 = arith.constant dense<0.000000e+00> : vector<16x32xf32>
    %335 = tpu.matmul %333, %334, %cst_99 {dimension_numbers = #tpu.dot_dimension_numbers<[1], [0], [0], [1], [0, 0, 1, 1], [], []>} : vector<16x32xf32>, vector<32x32xf32>, vector<16x32xf32> -> vector<16x32xf32>
    %c0_100 = arith.constant 0 : index
    %c0_101 = arith.constant 0 : index
    %336 = vector.load %arg11[%c0_100, %c0_101] : memref<1x32xf32, #tpu.memory_space<vmem>>, vector<1x32xf32>
    %337 = vector.broadcast %336 : vector<1x32xf32> to vector<16x32xf32>
    %338 = arith.addf %335, %337 : vector<16x32xf32>
    %339 = arith.addf %188, %338 : vector<16x32xf32>
    %c1 = arith.constant 1 : index
    %c0_102 = arith.constant 0 : index
    %340 = vector.load %arg12[%c1, %c0_102] : memref<3x32xf32, #tpu.memory_space<vmem>>, vector<1x32xf32>
    %c1_103 = arith.constant 1 : index
    %c0_104 = arith.constant 0 : index
    %341 = vector.load %arg13[%c1_103, %c0_104] : memref<3x32xf32, #tpu.memory_space<vmem>>, vector<1x32xf32>
    %cst_105 = arith.constant dense<0.000000e+00> : vector<16xf32>
    %342 = vector.multi_reduction <add>, %339, %cst_105 [1] : vector<16x32xf32> to vector<16xf32>
    %343 = vector.shape_cast %342 : vector<16xf32> to vector<16x1xf32>
    %cst_106 = arith.constant 3.200000e+01 : f32
    %344 = vector.broadcast %cst_106 : f32 to vector<16x1xf32>
    %345 = arith.divf %343, %344 : vector<16x1xf32>
    %346 = vector.broadcast %345 : vector<16x1xf32> to vector<16x32xf32>
    %347 = arith.subf %339, %346 : vector<16x32xf32>
    %348 = vector.broadcast %345 : vector<16x1xf32> to vector<16x32xf32>
    %349 = arith.subf %339, %348 : vector<16x32xf32>
    %350 = arith.mulf %347, %349 : vector<16x32xf32>
    %cst_107 = arith.constant dense<0.000000e+00> : vector<16xf32>
    %351 = vector.multi_reduction <add>, %350, %cst_107 [1] : vector<16x32xf32> to vector<16xf32>
    %352 = vector.shape_cast %351 : vector<16xf32> to vector<16x1xf32>
    %cst_108 = arith.constant 3.200000e+01 : f32
    %353 = vector.broadcast %cst_108 : f32 to vector<16x1xf32>
    %354 = arith.divf %352, %353 : vector<16x1xf32>
    %355 = vector.broadcast %345 : vector<16x1xf32> to vector<16x32xf32>
    %356 = arith.subf %339, %355 : vector<16x32xf32>
    %cst_109 = arith.constant 9.99999974E-6 : f32
    %357 = vector.broadcast %cst_109 : f32 to vector<16x1xf32>
    %358 = arith.addf %354, %357 : vector<16x1xf32>
    %359 = math.rsqrt %358 : vector<16x1xf32>
    %360 = vector.broadcast %359 : vector<16x1xf32> to vector<16x32xf32>
    %361 = arith.mulf %356, %360 : vector<16x32xf32>
    %362 = vector.broadcast %340 : vector<1x32xf32> to vector<16x32xf32>
    %363 = arith.mulf %361, %362 : vector<16x32xf32>
    %364 = vector.broadcast %341 : vector<1x32xf32> to vector<16x32xf32>
    %365 = arith.addf %363, %364 : vector<16x32xf32>
    %c0_110 = arith.constant 0 : index
    %c0_111 = arith.constant 0 : index
    %366 = vector.load %arg14[%c0_110, %c0_111] : memref<32x64xf32, #tpu.memory_space<vmem>>, vector<32x64xf32>
    %cst_112 = arith.constant dense<0.000000e+00> : vector<16x64xf32>
    %367 = tpu.matmul %365, %366, %cst_112 {dimension_numbers = #tpu.dot_dimension_numbers<[1], [0], [0], [1], [0, 0, 1, 1], [], []>} : vector<16x32xf32>, vector<32x64xf32>, vector<16x64xf32> -> vector<16x64xf32>
    %c0_113 = arith.constant 0 : index
    %c0_114 = arith.constant 0 : index
    %368 = vector.load %arg15[%c0_113, %c0_114] : memref<1x64xf32, #tpu.memory_space<vmem>>, vector<1x64xf32>
    %369 = vector.broadcast %368 : vector<1x64xf32> to vector<16x64xf32>
    %370 = arith.addf %367, %369 : vector<16x64xf32>
    %cst_115 = arith.constant 0.000000e+00 : f32
    %371 = vector.broadcast %cst_115 : f32 to vector<16x64xf32>
    %372 = arith.maximumf %370, %371 : vector<16x64xf32>
    %c0_116 = arith.constant 0 : index
    %c0_117 = arith.constant 0 : index
    %373 = vector.load %arg16[%c0_116, %c0_117] : memref<64x32xf32, #tpu.memory_space<vmem>>, vector<64x32xf32>
    %cst_118 = arith.constant dense<0.000000e+00> : vector<16x32xf32>
    %374 = tpu.matmul %372, %373, %cst_118 {dimension_numbers = #tpu.dot_dimension_numbers<[1], [0], [0], [1], [0, 0, 1, 1], [], []>} : vector<16x64xf32>, vector<64x32xf32>, vector<16x32xf32> -> vector<16x32xf32>
    %c0_119 = arith.constant 0 : index
    %c0_120 = arith.constant 0 : index
    %375 = vector.load %arg17[%c0_119, %c0_120] : memref<1x32xf32, #tpu.memory_space<vmem>>, vector<1x32xf32>
    %376 = vector.broadcast %375 : vector<1x32xf32> to vector<16x32xf32>
    %377 = arith.addf %374, %376 : vector<16x32xf32>
    %378 = arith.addf %365, %377 : vector<16x32xf32>
    %c2 = arith.constant 2 : index
    %c0_121 = arith.constant 0 : index
    %379 = vector.load %arg12[%c2, %c0_121] : memref<3x32xf32, #tpu.memory_space<vmem>>, vector<1x32xf32>
    %c2_122 = arith.constant 2 : index
    %c0_123 = arith.constant 0 : index
    %380 = vector.load %arg13[%c2_122, %c0_123] : memref<3x32xf32, #tpu.memory_space<vmem>>, vector<1x32xf32>
    %cst_124 = arith.constant dense<0.000000e+00> : vector<16xf32>
    %381 = vector.multi_reduction <add>, %378, %cst_124 [1] : vector<16x32xf32> to vector<16xf32>
    %382 = vector.shape_cast %381 : vector<16xf32> to vector<16x1xf32>
    %cst_125 = arith.constant 3.200000e+01 : f32
    %383 = vector.broadcast %cst_125 : f32 to vector<16x1xf32>
    %384 = arith.divf %382, %383 : vector<16x1xf32>
    %385 = vector.broadcast %384 : vector<16x1xf32> to vector<16x32xf32>
    %386 = arith.subf %378, %385 : vector<16x32xf32>
    %387 = vector.broadcast %384 : vector<16x1xf32> to vector<16x32xf32>
    %388 = arith.subf %378, %387 : vector<16x32xf32>
    %389 = arith.mulf %386, %388 : vector<16x32xf32>
    %cst_126 = arith.constant dense<0.000000e+00> : vector<16xf32>
    %390 = vector.multi_reduction <add>, %389, %cst_126 [1] : vector<16x32xf32> to vector<16xf32>
    %391 = vector.shape_cast %390 : vector<16xf32> to vector<16x1xf32>
    %cst_127 = arith.constant 3.200000e+01 : f32
    %392 = vector.broadcast %cst_127 : f32 to vector<16x1xf32>
    %393 = arith.divf %391, %392 : vector<16x1xf32>
    %394 = vector.broadcast %384 : vector<16x1xf32> to vector<16x32xf32>
    %395 = arith.subf %378, %394 : vector<16x32xf32>
    %cst_128 = arith.constant 9.99999974E-6 : f32
    %396 = vector.broadcast %cst_128 : f32 to vector<16x1xf32>
    %397 = arith.addf %393, %396 : vector<16x1xf32>
    %398 = math.rsqrt %397 : vector<16x1xf32>
    %399 = vector.broadcast %398 : vector<16x1xf32> to vector<16x32xf32>
    %400 = arith.mulf %395, %399 : vector<16x32xf32>
    %401 = vector.broadcast %379 : vector<1x32xf32> to vector<16x32xf32>
    %402 = arith.mulf %400, %401 : vector<16x32xf32>
    %403 = vector.broadcast %380 : vector<1x32xf32> to vector<16x32xf32>
    %404 = arith.addf %402, %403 : vector<16x32xf32>
    %c0_129 = arith.constant 0 : index
    %c0_130 = arith.constant 0 : index
    %405 = vector.load %arg18[%c0_129, %c0_130] : memref<32x128xf32, #tpu.memory_space<vmem>>, vector<32x128xf32>
    %cst_131 = arith.constant dense<0.000000e+00> : vector<16x128xf32>
    %406 = tpu.matmul %404, %405, %cst_131 {dimension_numbers = #tpu.dot_dimension_numbers<[1], [0], [0], [1], [0, 0, 1, 1], [], []>} : vector<16x32xf32>, vector<32x128xf32>, vector<16x128xf32> -> vector<16x128xf32>
    %c0_132 = arith.constant 0 : index
    %c0_133 = arith.constant 0 : index
    %407 = vector.load %arg19[%c0_132, %c0_133] : memref<1x128xf32, #tpu.memory_space<vmem>>, vector<1x128xf32>
    %408 = vector.broadcast %407 : vector<1x128xf32> to vector<16x128xf32>
    %409 = arith.addf %406, %408 : vector<16x128xf32>
    %c0_134 = arith.constant 0 : index
    %c0_135 = arith.constant 0 : index
    %410 = vector.load %arg20[%c0_134, %c0_135] : memref<16x128xf32, #tpu.memory_space<vmem>>, vector<16x128xf32>
    tpu.vector_store %arg20[%c0_134, %c0_135], %409 {strides = array<i32>} : memref<16x128xf32, #tpu.memory_space<vmem>>, vector<16x128xf32>,
    return
  }
}

</mosaic_0001>

<llo_original>
// kernel: image_caption_forward.2
$region0: #{image_caption_forward.2}
  #allocation0 [shape = 'u32[]', space=smem, size = 0x4, offset = 0x4, fixed_abs, tag = 'smem constant byte address 0x4 - core index']
  #allocation1 [shape = 'u32[144,128]{1,0:T(1,128)}', space=vmem, size = 0x12000, scoped, tag = 'internal scratch']
  %s0 = inlined_call_operand.vmem [shape: f32[128,32], index: 0, kind: input, shape index: {}]
  %s1 = inlined_call_operand.vmem [shape: f32[32,32], index: 1, kind: input, shape index: {}]
  %s2 = inlined_call_operand.vmem [shape: f32[1,32], index: 2, kind: input, shape index: {}]
  %s3 = inlined_call_operand.vmem [shape: f32[128,32], index: 3, kind: output, shape index: {}]
  %s4 = sld [smem:[#allocation0]]
  $region22: #{image_caption_forward.2} parent=0
    _
  %s6 = ssub.s32 1, %s4
  %s7 = scalar_select 0, %s6, %s4
  // Predicated region
  $region2: #{image_caption_forward.2} parent=0 // pred_check
    _
  $region3: #{image_caption_forward.2} parent=0 // pred_check_branch
    %9 = sbr.rel (0) target = $region5
  $region4: #{image_caption_forward.2} parent=0 // pred_region
    _
  $region5: #{image_caption_forward.2} parent=0 // pred_fallthru
    _
  // Predicated region
  $region6: #{image_caption_forward.2} parent=0 // pred_check
    _
  $region7: #{image_caption_forward.2} parent=0 // pred_check_branch
    %11 = sbr.rel (0) target = $region9
  $region8: #{image_caption_forward.2} parent=0 // pred_region
    _
  $region9: #{image_caption_forward.2} parent=0 // pred_fallthru
    _
  // Predicated region
  $region10: #{image_caption_forward.2} parent=0 // pred_check
    _
  $region11: #{image_caption_forward.2} parent=0 // pred_check_branch
    %13 = sbr.rel (0) target = $region13
  $region12: #{image_caption_forward.2} parent=0 // pred_region
    _
  $region13: #{image_caption_forward.2} parent=0 // pred_fallthru
    _
  %v14 = vld [vmem:[%s0] sm:$0xff]
  %v15 = vld [vmem:[%s0 + $0x8] sm:$0xff]
  %v16 = vld [vmem:[%s0 + $0x10] sm:$0xff]
  %v17 = vld [vmem:[%s0 + $0x18] sm:$0xff]
  %v18 = vld [vmem:[%s0 + $0x20] sm:$0xff]
  %v19 = vld [vmem:[%s0 + $0x28] sm:$0xff]
  %v20 = vld [vmem:[%s0 + $0x30] sm:$0xff]
  %v21 = vld [vmem:[%s0 + $0x38] sm:$0xff]
  %v22 = vld [vmem:[%s0 + $0x40] sm:$0xff]
  %v23 = vld [vmem:[%s0 + $0x48] sm:$0xff]
  %v24 = vld [vmem:[%s0 + $0x50] sm:$0xff]
  %v25 = vld [vmem:[%s0 + $0x58] sm:$0xff]
  %v26 = vld [vmem:[%s0 + $0x60] sm:$0xff]
  %v27 = vld [vmem:[%s0 + $0x68] sm:$0xff]
  %v28 = vld [vmem:[%s0 + $0x70] sm:$0xff]
  %v29 = vld [vmem:[%s0 + $0x78] sm:$0xff]
  %v30 = vld [vmem:[%s1] sm:$0xff]
  %v31 = vld [vmem:[%s1 + $0x8] sm:$0xff]
  %v32 = vld [vmem:[%s1 + $0x10] sm:$0xff]
  %v33 = vld [vmem:[%s1 + $0x18] sm:$0xff]
  %v34 = vld [vmem:[%s2] sm:$0x1]
  %v36 = vlaneseq
  %v37 = vshrl.u32 %v36, 7
  %v38 = vsub.s32 0, %v37
  %v39 = vrot.slane %v34, %v38
  %vm41 = vcmask 261120
  %v43 = vsel %vm41, %v14, 0
  %v46 = vsel %vm41, %v15, 0
  %v49 = vsel %vm41, %v16, 0
  %v52 = vsel %vm41, %v17, 0
  %v55 = vsel %vm41, %v18, 0
  %v58 = vsel %vm41, %v19, 0
  %v61 = vsel %vm41, %v20, 0
  %v64 = vsel %vm41, %v21, 0
  %v67 = vsel %vm41, %v22, 0
  %v70 = vsel %vm41, %v23, 0
  %v73 = vsel %vm41, %v24, 0
  %v76 = vsel %vm41, %v25, 0
  %v79 = vsel %vm41, %v26, 0
  %v82 = vsel %vm41, %v27, 0
  %v85 = vsel %vm41, %v28, 0
  %v88 = vsel %vm41, %v29, 0
  %90 = vmatprep.subr.mxu0 0.0
  %91 = vmatpush1.msra.mxu0 0.0
  %92 = vmatprep.subr.mxu0 0.0
  %93 = vmatpush1.msra.mxu0 0.0
  %94 = vmatprep.subr.mxu0 0.0
  %95 = vmatpush1.msra.mxu0 0.0
  %96 = vmatprep.subr.mxu0 0.0
  %97 = vmatpush1.msra.mxu0 0.0
  %98 = vmatprep.subr.mxu0 0.0
  %99 = vmatpush1.msra.mxu0 0.0
  %100 = vmatprep.subr.mxu0 0.0
  %101 = vmatpush1.msra.mxu0 0.0
  %102 = vmatprep.subr.mxu0 0.0
  %103 = vmatpush1.msra.mxu0 0.0
  %104 = vmatprep.subr.mxu0 0.0
  %105 = vmatpush1.msra.mxu0 0.0
  %106 = vmatprep.subr.mxu0 0.0
  %107 = vmatpush1.msra.mxu0 0.0
  %108 = vmatprep.subr.mxu0 0.0
  %109 = vmatpush1.msra.mxu0 0.0
  %110 = vmatprep.subr.mxu0 0.0
  %111 = vmatpush1.msra.mxu0 0.0
  %112 = vmatprep.subr.mxu0 0.0
  %113 = vmatpush1.msra.mxu0 0.0
  %114 = vmatprep.subr.mxu0 0.0
  %115 = vmatpush1.msra.mxu0 %v33
  %116 = vmatprep.subr.mxu0 0.0
  %117 = vmatpush1.msra.mxu0 %v32
  %118 = vmatprep.subr.mxu0 0.0
  %119 = vmatpush1.msra.mxu0 %v31
  %120 = vmatprep.subr.mxu0 0.0
  %121 = vmatpush1.msra.mxu0 %v30
  %122 = vmatprep.subr.mxu0 0.0
  %123 = vmatpush2.msra.mxu0 0.0
  %124 = vmatprep.subr.mxu0 0.0
  %125 = vmatpush2.msra.mxu0 0.0
  %126 = vmatprep.subr.mxu0 0.0
  %127 = vmatpush2.msra.mxu0 0.0
  %128 = vmatprep.subr.mxu0 0.0
  %129 = vmatpush2.msra.mxu0 0.0
  %130 = vmatprep.subr.mxu0 0.0
  %131 = vmatpush2.msra.mxu0 0.0
  %132 = vmatprep.subr.mxu0 0.0
  %133 = vmatpush2.msra.mxu0 0.0
  %134 = vmatprep.subr.mxu0 0.0
  %135 = vmatpush2.msra.mxu0 0.0
  %136 = vmatprep.subr.mxu0 0.0
  %137 = vmatpush2.msra.mxu0 0.0
  %138 = vmatprep.subr.mxu0 0.0
  %139 = vmatpush2.msra.mxu0 0.0
  %140 = vmatprep.subr.mxu0 0.0
  %141 = vmatpush2.msra.mxu0 0.0
  %142 = vmatprep.subr.mxu0 0.0
  %143 = vmatpush2.msra.mxu0 0.0
  %144 = vmatprep.subr.mxu0 0.0
  %145 = vmatpush2.msra.mxu0 0.0
  %146 = vmatprep.subr.mxu0 0.0
  %147 = vmatpush2.msra.mxu0 0.0
  %148 = vmatprep.subr.mxu0 0.0
  %149 = vmatpush2.msra.mxu0 0.0
  %150 = vmatprep.subr.mxu0 0.0
  %151 = vmatpush2.msra.mxu0 0.0
  %152 = vmatprep.subr.mxu0 0.0
  %153 = vmatpush2.msra.mxu0 0.0
  %154 = vmatprep.mubr.f32.mxu0 0.0
  %155 = vmatmul.mubr.f32.gmra.mxu0 %v43
  %v156 = vpop.f32.mrf.mxu0
  %v157 = vadd.f32 %v39, %v156
  %v158 = vpop.f32.mrf.mxu0
  %159 = vmatprep.mubr.f32.mxu0 0.0
  %160 = vmatmul.mubr.f32.gmra.mxu0 %v46
  %v161 = vpop.f32.mrf.mxu0
  %v162 = vadd.f32 %v39, %v161
  %v163 = vpop.f32.mrf.mxu0
  %164 = vmatprep.mubr.f32.mxu0 0.0
  %165 = vmatmul.mubr.f32.gmra.mxu0 %v49
  %v166 = vpop.f32.mrf.mxu0
  %v167 = vadd.f32 %v39, %v166
  %v168 = vpop.f32.mrf.mxu0
  %169 = vmatprep.mubr.f32.mxu0 0.0
  %170 = vmatmul.mubr.f32.gmra.mxu0 %v52
  %v171 = vpop.f32.mrf.mxu0
  %v172 = vadd.f32 %v39, %v171
  %v173 = vpop.f32.mrf.mxu0
  %174 = vmatprep.mubr.f32.mxu0 0.0
  %175 = vmatmul.mubr.f32.gmra.mxu0 %v55
  %v176 = vpop.f32.mrf.mxu0
  %v177 = vadd.f32 %v39, %v176
  %v178 = vpop.f32.mrf.mxu0
  %179 = vmatprep.mubr.f32.mxu0 0.0
  %180 = vmatmul.mubr.f32.gmra.mxu0 %v58
  %v181 = vpop.f32.mrf.mxu0
  %v182 = vadd.f32 %v39, %v181
  %v183 = vpop.f32.mrf.mxu0
  %184 = vmatprep.mubr.f32.mxu0 0.0
  %185 = vmatmul.mubr.f32.gmra.mxu0 %v61
  %v186 = vpop.f32.mrf.mxu0
  %v187 = vadd.f32 %v39, %v186
  %v188 = vpop.f32.mrf.mxu0
  %189 = vmatprep.mubr.f32.mxu0 0.0
  %190 = vmatmul.mubr.f32.gmra.mxu0 %v64
  %v191 = vpop.f32.mrf.mxu0
  %v192 = vadd.f32 %v39, %v191
  %v193 = vpop.f32.mrf.mxu0
  %194 = vmatprep.mubr.f32.mxu0 0.0
  %195 = vmatmul.mubr.f32.gmra.mxu0 %v67
  %v196 = vpop.f32.mrf.mxu0
  %v197 = vadd.f32 %v39, %v196
  %v198 = vpop.f32.mrf.mxu0
  %199 = vmatprep.mubr.f32.mxu0 0.0
  %200 = vmatmul.mubr.f32.gmra.mxu0 %v70
  %v201 = vpop.f32.mrf.mxu0
  %v202 = vadd.f32 %v39, %v201
  %v203 = vpop.f32.mrf.mxu0
  %204 = vmatprep.mubr.f32.mxu0 0.0
  %205 = vmatmul.mubr.f32.gmra.mxu0 %v73
  %v206 = vpop.f32.mrf.mxu0
  %v207 = vadd.f32 %v39, %v206
  %v208 = vpop.f32.mrf.mxu0
  %209 = vmatprep.mubr.f32.mxu0 0.0
  %210 = vmatmul.mubr.f32.gmra.mxu0 %v76
  %v211 = vpop.f32.mrf.mxu0
  %v212 = vadd.f32 %v39, %v211
  %v213 = vpop.f32.mrf.mxu0
  %214 = vmatprep.mubr.f32.mxu0 0.0
  %215 = vmatmul.mubr.f32.gmra.mxu0 %v79
  %v216 = vpop.f32.mrf.mxu0
  %v217 = vadd.f32 %v39, %v216
  %v218 = vpop.f32.mrf.mxu0
  %219 = vmatprep.mubr.f32.mxu0 0.0
  %220 = vmatmul.mubr.f32.gmra.mxu0 %v82
  %v221 = vpop.f32.mrf.mxu0
  %v222 = vadd.f32 %v39, %v221
  %v223 = vpop.f32.mrf.mxu0
  %224 = vmatprep.mubr.f32.mxu0 0.0
  %225 = vmatmul.mubr.f32.gmra.mxu0 %v85
  %v226 = vpop.f32.mrf.mxu0
  %v227 = vadd.f32 %v39, %v226
  %v228 = vpop.f32.mrf.mxu0
  %229 = vmatprep.mubr.f32.mxu0 0.0
  %230 = vmatmul.mubr.f32.gmra.mxu0 %v88
  %v231 = vpop.f32.mrf.mxu0
  %v232 = vadd.f32 %v39, %v231
  %v233 = vpop.f32.mrf.mxu0
  %234 = vdwg.mxu0
  %v235 = vmax.f32 %v157, 0.0
  %v236 = vmax.f32 %v162, 0.0
  %v237 = vmax.f32 %v167, 0.0
  %v238 = vmax.f32 %v172, 0.0
  %v239 = vmax.f32 %v177, 0.0
  %v240 = vmax.f32 %v182, 0.0
  %v241 = vmax.f32 %v187, 0.0
  %v242 = vmax.f32 %v192, 0.0
  %v243 = vmax.f32 %v197, 0.0
  %v244 = vmax.f32 %v202, 0.0
  %v245 = vmax.f32 %v207, 0.0
  %v246 = vmax.f32 %v212, 0.0
  %v247 = vmax.f32 %v217, 0.0
  %v248 = vmax.f32 %v222, 0.0
  %v249 = vmax.f32 %v227, 0.0
  %v250 = vmax.f32 %v232, 0.0
  %251 = vst.msk [vmem:[%s3] sm:$0xff] %vm41, %v235
  %252 = vst.msk [vmem:[%s3 + $0x8] sm:$0xff] %vm41, %v236
  %253 = vst.msk [vmem:[%s3 + $0x10] sm:$0xff] %vm41, %v237
  %254 = vst.msk [vmem:[%s3 + $0x18] sm:$0xff] %vm41, %v238
  %255 = vst.msk [vmem:[%s3 + $0x20] sm:$0xff] %vm41, %v239
  %256 = vst.msk [vmem:[%s3 + $0x28] sm:$0xff] %vm41, %v240
  %257 = vst.msk [vmem:[%s3 + $0x30] sm:$0xff] %vm41, %v241
  %258 = vst.msk [vmem:[%s3 + $0x38] sm:$0xff] %vm41, %v242
  %259 = vst.msk [vmem:[%s3 + $0x40] sm:$0xff] %vm41, %v243
  %260 = vst.msk [vmem:[%s3 + $0x48] sm:$0xff] %vm41, %v244
  %261 = vst.msk [vmem:[%s3 + $0x50] sm:$0xff] %vm41, %v245
  %262 = vst.msk [vmem:[%s3 + $0x58] sm:$0xff] %vm41, %v246
  %263 = vst.msk [vmem:[%s3 + $0x60] sm:$0xff] %vm41, %v247
  %264 = vst.msk [vmem:[%s3 + $0x68] sm:$0xff] %vm41, %v248
  %265 = vst.msk [vmem:[%s3 + $0x70] sm:$0xff] %vm41, %v249
  %266 = vst.msk [vmem:[%s3 + $0x78] sm:$0xff] %vm41, %v250
  // Predicated region
  $region14: #{image_caption_forward.2} parent=0 // pred_check
    _
  $region15: #{image_caption_forward.2} parent=0 // pred_check_branch
    %268 = sbr.rel (0) target = $region17
  $region16: #{image_caption_forward.2} parent=0 // pred_region
    _
  $region17: #{image_caption_forward.2} parent=0 // pred_fallthru
    _
  // Predicated region
  $region18: #{image_caption_forward.2} parent=0 // pred_check
    _
  $region19: #{image_caption_forward.2} parent=0 // pred_check_branch
    %270 = sbr.rel (0) target = $region21
  $region20: #{image_caption_forward.2} parent=0 // pred_region
    _
  $region21: #{image_caption_forward.2} parent=0 // pred_fallthru
    _

// kernel: image_caption_forward.3
$region0: #{image_caption_forward.3}
  #allocation0 [shape = 'u32[]', space=smem, size = 0x4, offset = 0x4, fixed_abs, tag = 'smem constant byte address 0x4 - core index']
  #allocation1 [shape = 'u32[144,128]{1,0:T(1,128)}', space=vmem, size = 0x12000, scoped, tag = 'internal scratch']
  %s0 = inlined_call_operand.vmem [shape: f32[16,32], index: 0, kind: input, shape index: {}]
  %s1 = inlined_call_operand.vmem [shape: f32[128,32], index: 1, kind: input, shape index: {}]
  %s2 = inlined_call_operand.vmem [shape: f32[8,8], index: 2, kind: input, shape index: {}]
  %s3 = inlined_call_operand.vmem [shape: f32[2,8], index: 3, kind: input, shape index: {}]
  %s4 = inlined_call_operand.vmem [shape: f32[32,96], index: 4, kind: input, shape index: {}]
  %s5 = inlined_call_operand.vmem [shape: f32[1,96], index: 5, kind: input, shape index: {}]
  %s6 = inlined_call_operand.vmem [shape: f32[32,32], index: 6, kind: input, shape index: {}]
  %s7 = inlined_call_operand.vmem [shape: f32[1,32], index: 7, kind: input, shape index: {}]
  %s8 = inlined_call_operand.vmem [shape: f32[32,96], index: 8, kind: input, shape index: {}]
  %s9 = inlined_call_operand.vmem [shape: f32[1,96], index: 9, kind: input, shape index: {}]
  %s10 = inlined_call_operand.vmem [shape: f32[32,32], index: 10, kind: input, shape index: {}]
  %s11 = inlined_call_operand.vmem [shape: f32[1,32], index: 11, kind: input, shape index: {}]
  %s12 = inlined_call_operand.vmem [shape: f32[3,32], index: 12, kind: input, shape index: {}]
  %s13 = inlined_call_operand.vmem [shape: f32[3,32], index: 13, kind: input, shape index: {}]
  %s14 = inlined_call_operand.vmem [shape: f32[32,64], index: 14, kind: input, shape index: {}]
  %s15 = inlined_call_operand.vmem [shape: f32[1,64], index: 15, kind: input, shape index: {}]
  %s16 = inlined_call_operand.vmem [shape: f32[64,32], index: 16, kind: input, shape index: {}]
  %s17 = inlined_call_operand.vmem [shape: f32[1,32], index: 17, kind: input, shape index: {}]
  %s18 = inlined_call_operand.vmem [shape: f32[32,128], index: 18, kind: input, shape index: {}]
  %s19 = inlined_call_operand.vmem [shape: f32[1,128], index: 19, kind: input, shape index: {}]
  %s20 = inlined_call_operand.hbm [shape: f32[16,128], index: 20, kind: output, shape index: {}]
  %s21 = sld [smem:[#allocation0]]
  $region90: #{image_caption_forward.3} parent=0
    _
  %s23 = ssub.s32 1, %s21
  %s24 = scalar_select 0, %s23, %s21
  $region1: #{image_caption_forward.3} parent=0
    #allocation2 [shape = 'u8[8192]{0}', space=vmem, size = 0x2000, scoped, tag = 'output window, operand 0, single buffered']
    #allocation3 [shape = 's32[1]{0}', space=sflag, size = 0x4, scoped, tag = 'scoped memory for image_caption_forward.3']
    %25 = vsyncpa [#allocation3], 0
    // Predicated region
    $region2: #{image_caption_forward.3} parent=1 // pred_check
      _
    $region3: #{image_caption_forward.3} parent=1 // pred_check_branch
      %27 = sbr.rel (0) target = $region5
    $region4: #{image_caption_forward.3} parent=1 // pred_region
      _
    $region5: #{image_caption_forward.3} parent=1 // pred_fallthru
      _
    // Predicated region
    $region6: #{image_caption_forward.3} parent=1 // pred_check
      _
    $region7: #{image_caption_forward.3} parent=1 // pred_check_branch
      %29 = sbr.rel (0) target = $region9
    $region8: #{image_caption_forward.3} parent=1 // pred_region
      _
    $region9: #{image_caption_forward.3} parent=1 // pred_fallthru
      _
    // Predicated region
    $region10: #{image_caption_forward.3} parent=1 // pred_check
      _
    $region11: #{image_caption_forward.3} parent=1 // pred_check_branch
      %31 = sbr.rel (0) target = $region13
    $region12: #{image_caption_forward.3} parent=1 // pred_region
      _
    $region13: #{image_caption_forward.3} parent=1 // pred_fallthru
      _
    // Predicated region
    $region14: #{image_caption_forward.3} parent=1 // pred_check
      _
    $region15: #{image_caption_forward.3} parent=1 // pred_check_branch
      %33 = sbr.rel (0) target = $region17
    $region16: #{image_caption_forward.3} parent=1 // pred_region
      _
    $region17: #{image_caption_forward.3} parent=1 // pred_fallthru
      _
    // Predicated region
    $region18: #{image_caption_forward.3} parent=1 // pred_check
      _
    $region19: #{image_caption_forward.3} parent=1 // pred_check_branch
      %35 = sbr.rel (0) target = $region21
    $region20: #{image_caption_forward.3} parent=1 // pred_region
      _
    $region21: #{image_caption_forward.3} parent=1 // pred_fallthru
      _
    // Predicated region
    $region22: #{image_caption_forward.3} parent=1 // pred_check
      _
    $region23: #{image_caption_forward.3} parent=1 // pred_check_branch
      %37 = sbr.rel (0) target = $region25
    $region24: #{image_caption_forward.3} parent=1 // pred_region
      _
    $region25: #{image_caption_forward.3} parent=1 // pred_fallthru
      _
    // Predicated region
    $region26: #{image_caption_forward.3} parent=1 // pred_check
      _
    $region27: #{image_caption_forward.3} parent=1 // pred_check_branch
      %39 = sbr.rel (0) target = $region29
    $region28: #{image_caption_forward.3} parent=1 // pred_region
      _
    $region29: #{image_caption_forward.3} parent=1 // pred_fallthru
      _
    // Predicated region
    $region30: #{image_caption_forward.3} parent=1 // pred_check
      _
    $region31: #{image_caption_forward.3} parent=1 // pred_check_branch
      %41 = sbr.rel (0) target = $region33
    $region32: #{image_caption_forward.3} parent=1 // pred_region
      _
    $region33: #{image_caption_forward.3} parent=1 // pred_fallthru
      _
    // Predicated region
    $region34: #{image_caption_forward.3} parent=1 // pred_check
      _
    $region35: #{image_caption_forward.3} parent=1 // pred_check_branch
      %43 = sbr.rel (0) target = $region37
    $region36: #{image_caption_forward.3} parent=1 // pred_region
      _
    $region37: #{image_caption_forward.3} parent=1 // pred_fallthru
      _
    // Predicated region
    $region38: #{image_caption_forward.3} parent=1 // pred_check
      _
    $region39: #{image_caption_forward.3} parent=1 // pred_check_branch
      %45 = sbr.rel (0) target = $region41
    $region40: #{image_caption_forward.3} parent=1 // pred_region
      _
    $region41: #{image_caption_forward.3} parent=1 // pred_fallthru
      _
    // Predicated region
    $region42: #{image_caption_forward.3} parent=1 // pred_check
      _
    $region43: #{image_caption_forward.3} parent=1 // pred_check_branch
      %47 = sbr.rel (0) target = $region45
    $region44: #{image_caption_forward.3} parent=1 // pred_region
      _
    $region45: #{image_caption_forward.3} parent=1 // pred_fallthru
      _
    // Predicated region
    $region46: #{image_caption_forward.3} parent=1 // pred_check
      _
    $region47: #{image_caption_forward.3} parent=1 // pred_check_branch
      %49 = sbr.rel (0) target = $region49
    $region48: #{image_caption_forward.3} parent=1 // pred_region
      _
    $region49: #{image_caption_forward.3} parent=1 // pred_fallthru
      _
    // Predicated region
    $region50: #{image_caption_forward.3} parent=1 // pred_check
      _
    $region51: #{image_caption_forward.3} parent=1 // pred_check_branch
      %51 = sbr.rel (0) target = $region53
    $region52: #{image_caption_forward.3} parent=1 // pred_region
      _
    $region53: #{image_caption_forward.3} parent=1 // pred_fallthru
      _
    // Predicated region
    $region54: #{image_caption_forward.3} parent=1 // pred_check
      _
    $region55: #{image_caption_forward.3} parent=1 // pred_check_branch
      %53 = sbr.rel (0) target = $region57
    $region56: #{image_caption_forward.3} parent=1 // pred_region
      _
    $region57: #{image_caption_forward.3} parent=1 // pred_fallthru
      _
    // Predicated region
    $region58: #{image_caption_forward.3} parent=1 // pred_check
      _
    $region59: #{image_caption_forward.3} parent=1 // pred_check_branch
      %55 = sbr.rel (0) target = $region61
    $region60: #{image_caption_forward.3} parent=1 // pred_region
      _
    $region61: #{image_caption_forward.3} parent=1 // pred_fallthru
      _
    // Predicated region
    $region62: #{image_caption_forward.3} parent=1 // pred_check
      _
    $region63: #{image_caption_forward.3} parent=1 // pred_check_branch
      %57 = sbr.rel (0) target = $region65
    $region64: #{image_caption_forward.3} parent=1 // pred_region
      _
    $region65: #{image_caption_forward.3} parent=1 // pred_fallthru
      _
    // Predicated region
    $region66: #{image_caption_forward.3} parent=1 // pred_check
      _
    $region67: #{image_caption_forward.3} parent=1 // pred_check_branch
      %59 = sbr.rel (0) target = $region69
    $region68: #{image_caption_forward.3} parent=1 // pred_region
      _
    $region69: #{image_caption_forward.3} parent=1 // pred_fallthru
      _
    // Predicated region
    $region70: #{image_caption_forward.3} parent=1 // pred_check
      _
    $region71: #{image_caption_forward.3} parent=1 // pred_check_branch
      %61 = sbr.rel (0) target = $region73
    $region72: #{image_caption_forward.3} parent=1 // pred_region
      _
    $region73: #{image_caption_forward.3} parent=1 // pred_fallthru
      _
    // Predicated region
    $region74: #{image_caption_forward.3} parent=1 // pred_check
      _
    $region75: #{image_caption_forward.3} parent=1 // pred_check_branch
      %63 = sbr.rel (0) target = $region77
    $region76: #{image_caption_forward.3} parent=1 // pred_region
      _
    $region77: #{image_caption_forward.3} parent=1 // pred_fallthru
      _
    // Predicated region
    $region78: #{image_caption_forward.3} parent=1 // pred_check
      _
    $region79: #{image_caption_forward.3} parent=1 // pred_check_branch
      %65 = sbr.rel (0) target = $region81
    $region80: #{image_caption_forward.3} parent=1 // pred_region
      _
    $region81: #{image_caption_forward.3} parent=1 // pred_fallthru
      _
    %v66 = vld [vmem:[%s0] sm:$0xff]
    %v67 = vld [vmem:[%s0 + $0x8] sm:$0xff]
    %v68 = vld [vmem:[%s1] sm:$0xff]
    %v69 = vld [vmem:[%s1 + $0x8] sm:$0xff]
    %v70 = vld [vmem:[%s1 + $0x10] sm:$0xff]
    %v71 = vld [vmem:[%s1 + $0x18] sm:$0xff]
    %v72 = vld [vmem:[%s1 + $0x20] sm:$0xff]
    %v73 = vld [vmem:[%s1 + $0x28] sm:$0xff]
    %v74 = vld [vmem:[%s1 + $0x30] sm:$0xff]
    %v75 = vld [vmem:[%s1 + $0x38] sm:$0xff]
    %v76 = vld [vmem:[%s1 + $0x40] sm:$0xff]
    %v77 = vld [vmem:[%s1 + $0x48] sm:$0xff]
    %v78 = vld [vmem:[%s1 + $0x50] sm:$0xff]
    %v79 = vld [vmem:[%s1 + $0x58] sm:$0xff]
    %v80 = vld [vmem:[%s1 + $0x60] sm:$0xff]
    %v81 = vld [vmem:[%s1 + $0x68] sm:$0xff]
    %v82 = vld [vmem:[%s1 + $0x70] sm:$0xff]
    %v83 = vld [vmem:[%s1 + $0x78] sm:$0xff]
    %v84 = vld [vmem:[%s2] sm:$0xff]
    %v85 = vld [vmem:[%s3] sm:$0x3]
    %v86 = vld [vmem:[%s4] sm:$0xff]
    %v87 = vld [vmem:[%s4 + $0x8] sm:$0xff]
    %v88 = vld [vmem:[%s4 + $0x10] sm:$0xff]
    %v89 = vld [vmem:[%s4 + $0x18] sm:$0xff]
    %v90 = vld [vmem:[%s5] sm:$0x1]
    %v92 = vlaneseq
    %v93 = vshrl.u32 %v92, 7
    %v94 = vsub.s32 0, %v93
    %v95 = vrot.slane %v90, %v94
    %vm97 = vcmask 261120
    %v99 = vsel %vm97, %v66, 0
    %v102 = vsel %vm97, %v67, 0
    %104 = vmatprep.subr.mxu0 0.0
    %105 = vmatpush1.msra.mxu0 0.0
    %106 = vmatprep.subr.mxu0 0.0
    %107 = vmatpush1.msra.mxu0 0.0
    %108 = vmatprep.subr.mxu0 0.0
    %109 = vmatpush1.msra.mxu0 0.0
    %110 = vmatprep.subr.mxu0 0.0
    %111 = vmatpush1.msra.mxu0 0.0
    %112 = vmatprep.subr.mxu0 0.0
    %113 = vmatpush1.msra.mxu0 0.0
    %114 = vmatprep.subr.mxu0 0.0
    %115 = vmatpush1.msra.mxu0 0.0
    %116 = vmatprep.subr.mxu0 0.0
    %117 = vmatpush1.msra.mxu0 0.0
    %118 = vmatprep.subr.mxu0 0.0
    %119 = vmatpush1.msra.mxu0 0.0
    %120 = vmatprep.subr.mxu0 0.0
    %121 = vmatpush1.msra.mxu0 0.0
    %122 = vmatprep.subr.mxu0 0.0
    %123 = vmatpush1.msra.mxu0 0.0
    %124 = vmatprep.subr.mxu0 0.0
    %125 = vmatpush1.msra.mxu0 0.0
    %126 = vmatprep.subr.mxu0 0.0
    %127 = vmatpush1.msra.mxu0 0.0
    %128 = vmatprep.subr.mxu0 0.0
    %129 = vmatpush1.msra.mxu0 %v89
    %130 = vmatprep.subr.mxu0 0.0
    %131 = vmatpush1.msra.mxu0 %v88
    %132 = vmatprep.subr.mxu0 0.0
    %133 = vmatpush1.msra.mxu0 %v87
    %134 = vmatprep.subr.mxu0 0.0
    %135 = vmatpush1.msra.mxu0 %v86
    %136 = vmatprep.subr.mxu0 0.0
    %137 = vmatpush2.msra.mxu0 0.0
    %138 = vmatprep.subr.mxu0 0.0
    %139 = vmatpush2.msra.mxu0 0.0
    %140 = vmatprep.subr.mxu0 0.0
    %141 = vmatpush2.msra.mxu0 0.0
    %142 = vmatprep.subr.mxu0 0.0
    %143 = vmatpush2.msra.mxu0 0.0
    %144 = vmatprep.subr.mxu0 0.0
    %145 = vmatpush2.msra.mxu0 0.0
    %146 = vmatprep.subr.mxu0 0.0
    %147 = vmatpush2.msra.mxu0 0.0
    %148 = vmatprep.subr.mxu0 0.0
    %149 = vmatpush2.msra.mxu0 0.0
    %150 = vmatprep.subr.mxu0 0.0
    %151 = vmatpush2.msra.mxu0 0.0
    %152 = vmatprep.subr.mxu0 0.0
    %153 = vmatpush2.msra.mxu0 0.0
    %154 = vmatprep.subr.mxu0 0.0
    %155 = vmatpush2.msra.mxu0 0.0
    %156 = vmatprep.subr.mxu0 0.0
    %157 = vmatpush2.msra.mxu0 0.0
    %158 = vmatprep.subr.mxu0 0.0
    %159 = vmatpush2.msra.mxu0 0.0
    %160 = vmatprep.subr.mxu0 0.0
    %161 = vmatpush2.msra.mxu0 0.0
    %162 = vmatprep.subr.mxu0 0.0
    %163 = vmatpush2.msra.mxu0 0.0
    %164 = vmatprep.subr.mxu0 0.0
    %165 = vmatpush2.msra.mxu0 0.0
    %166 = vmatprep.subr.mxu0 0.0
    %167 = vmatpush2.msra.mxu0 0.0
    %168 = vmatprep.mubr.f32.mxu0 0.0
    %169 = vmatmul.mubr.f32.gmra.mxu0 %v99
    %v170 = vpop.f32.mrf.mxu0
    %v171 = vadd.f32 %v95, %v170
    %v172 = vpop.f32.mrf.mxu0
    %173 = vmatprep.mubr.f32.mxu0 0.0
    %174 = vmatmul.mubr.f32.gmra.mxu0 %v102
    %v175 = vpop.f32.mrf.mxu0
    %v176 = vadd.f32 %v95, %v175
    %v177 = vpop.f32.mrf.mxu0
    %178 = vdwg.mxu0
    %v179 = vmul.f32 %v171, 0.35355338
    %v180 = vmul.f32 %v176, 0.35355338
    %v181 = vlaneseq
    %v182 = vshrl.u32 %v181, 7
    %v183 = vsub.s32 0, %v182
    %v184 = vrot.slane %v85, %v183
    %v185 = vadd.f32 %v84, %v184
    %v186 = vlaneseq
    %v187 = vshrl.u32 %v186, 7
    %v188 = vsub.s32 1, %v187
    %v189 = vrot.slane %v85, %v188
    %v190 = vadd.f32 %v84, %v189
    %192 = vrot.lane.b32.xlu0 %v171, 96
    %v193 = vpop.permute.xlu0 %192
    %vm194 = vcmask 64512
    %v196 = vsel %vm194, %v179, 0
    %v198 = vsel %vm194, %v193, 0
    %200 = vmatprep.subr.mxu0 0.0
    %201 = vmatpush1.xpose.msra.mxu0 0.0
    %202 = vmatprep.subr.mxu0 0.0
    %203 = vmatpush1.xpose.msra.mxu0 0.0
    %204 = vmatprep.subr.mxu0 0.0
    %205 = vmatpush1.xpose.msra.mxu0 0.0
    %206 = vmatprep.subr.mxu0 0.0
    %207 = vmatpush1.xpose.msra.mxu0 0.0
    %208 = vmatprep.subr.mxu0 0.0
    %209 = vmatpush1.xpose.msra.mxu0 0.0
    %210 = vmatprep.subr.mxu0 0.0
    %211 = vmatpush1.xpose.msra.mxu0 0.0
    %212 = vmatprep.subr.mxu0 0.0
    %213 = vmatpush1.xpose.msra.mxu0 0.0
    %214 = vmatprep.subr.mxu0 0.0
    %215 = vmatpush1.xpose.msra.mxu0 0.0
    %216 = vmatprep.subr.mxu0 0.0
    %217 = vmatpush1.xpose.msra.mxu0 0.0
    %218 = vmatprep.subr.mxu0 0.0
    %219 = vmatpush1.xpose.msra.mxu0 0.0
    %220 = vmatprep.subr.mxu0 0.0
    %221 = vmatpush1.xpose.msra.mxu0 0.0
    %222 = vmatprep.subr.mxu0 0.0
    %223 = vmatpush1.xpose.msra.mxu0 0.0
    %224 = vmatprep.subr.mxu0 0.0
    %225 = vmatpush1.xpose.msra.mxu0 0.0
    %226 = vmatprep.subr.mxu0 0.0
    %227 = vmatpush1.xpose.msra.mxu0 0.0
    %228 = vmatprep.subr.mxu0 0.0
    %229 = vmatpush1.xpose.msra.mxu0 0.0
    %230 = vmatprep.subr.mxu0 0.0
    %231 = vmatpush1.xpose.msra.mxu0 %v198
    %232 = vmatprep.subr.mxu0 0.0
    %233 = vmatpush2.xpose.msra.mxu0 0.0
    %234 = vmatprep.subr.mxu0 0.0
    %235 = vmatpush2.xpose.msra.mxu0 0.0
    %236 = vmatprep.subr.mxu0 0.0
    %237 = vmatpush2.xpose.msra.mxu0 0.0
    %238 = vmatprep.subr.mxu0 0.0
    %239 = vmatpush2.xpose.msra.mxu0 0.0
    %240 = vmatprep.subr.mxu0 0.0
    %241 = vmatpush2.xpose.msra.mxu0 0.0
    %242 = vmatprep.subr.mxu0 0.0
    %243 = vmatpush2.xpose.msra.mxu0 0.0
    %244 = vmatprep.subr.mxu0 0.0
    %245 = vmatpush2.xpose.msra.mxu0 0.0
    %246 = vmatprep.subr.mxu0 0.0
    %247 = vmatpush2.xpose.msra.mxu0 0.0
    %248 = vmatprep.subr.mxu0 0.0
    %249 = vmatpush2.xpose.msra.mxu0 0.0
    %250 = vmatprep.subr.mxu0 0.0
    %251 = vmatpush2.xpose.msra.mxu0 0.0
    %252 = vmatprep.subr.mxu0 0.0
    %253 = vmatpush2.xpose.msra.mxu0 0.0
    %254 = vmatprep.subr.mxu0 0.0
    %255 = vmatpush2.xpose.msra.mxu0 0.0
    %256 = vmatprep.subr.mxu0 0.0
    %257 = vmatpush2.xpose.msra.mxu0 0.0
    %258 = vmatprep.subr.mxu0 0.0
    %259 = vmatpush2.xpose.msra.mxu0 0.0
    %260 = vmatprep.subr.mxu0 0.0
    %261 = vmatpush2.xpose.msra.mxu0 0.0
    %262 = vmatprep.subr.mxu0 0.0
    %263 = vmatpush2.xpose.msra.mxu0 0.0
    %264 = vmatprep.mubr.f32.mxu0 0.0
    %265 = vmatmul.mubr.f32.gmra.mxu0 %v196
    %v266 = vpop.f32.mrf.mxu0
    %v267 = vadd.f32 %v185, %v266
    %v268 = vpop.f32.mrf.mxu0
    %269 = vdwg.mxu0
    %v270 = vsel %vm194, %v267, -inf
    %271 = vmax.xlane.f32.xlu0 %v270
    %v272 = vpop.xlane.xlu0 %271
    %v273 = vsub.f32 %v267, %v272
    %v274 = vmul.f32 %v273, 1.442695
    %v275 = vpow.pop %v274
    %v276 = vsel %vm194, %v275, 0.0
    %277 = vadd.xlane.f32.xlu0 %v276
    %v278 = vpop.xlane.xlu0 %277
    %v279 = vrcp.pop %v278
    %v280 = vmul.f32 %v275, %v279
    %281 = vrot.lane.b32.xlu0 %v171, 64
    %v282 = vpop.permute.xlu0 %281
    %v285 = vsel %vm194, %v280, 0
    %287 = vmatprep.subr.mxu0 0.0
    %288 = vmatpush1.msra.mxu0 0.0
    %289 = vmatprep.subr.mxu0 0.0
    %290 = vmatpush1.msra.mxu0 0.0
    %291 = vmatprep.subr.mxu0 0.0
    %292 = vmatpush1.msra.mxu0 0.0
    %293 = vmatprep.subr.mxu0 0.0
    %294 = vmatpush1.msra.mxu0 0.0
    %295 = vmatprep.subr.mxu0 0.0
    %296 = vmatpush1.msra.mxu0 0.0
    %297 = vmatprep.subr.mxu0 0.0
    %298 = vmatpush1.msra.mxu0 0.0
    %299 = vmatprep.subr.mxu0 0.0
    %300 = vmatpush1.msra.mxu0 0.0
    %301 = vmatprep.subr.mxu0 0.0
    %302 = vmatpush1.msra.mxu0 0.0
    %303 = vmatprep.subr.mxu0 0.0
    %304 = vmatpush1.msra.mxu0 0.0
    %305 = vmatprep.subr.mxu0 0.0
    %306 = vmatpush1.msra.mxu0 0.0
    %307 = vmatprep.subr.mxu0 0.0
    %308 = vmatpush1.msra.mxu0 0.0
    %309 = vmatprep.subr.mxu0 0.0
    %310 = vmatpush1.msra.mxu0 0.0
    %311 = vmatprep.subr.mxu0 0.0
    %312 = vmatpush1.msra.mxu0 0.0
    %313 = vmatprep.subr.mxu0 0.0
    %314 = vmatpush1.msra.mxu0 0.0
    %315 = vmatprep.subr.mxu0 0.0
    %316 = vmatpush1.msra.mxu0 0.0
    %317 = vmatprep.subr.mxu0 0.0
    %318 = vmatpush1.msra.mxu0 %v282
    %319 = vmatprep.subr.mxu0 0.0
    %320 = vmatpush2.msra.mxu0 0.0
    %321 = vmatprep.subr.mxu0 0.0
    %322 = vmatpush2.msra.mxu0 0.0
    %323 = vmatprep.subr.mxu0 0.0
    %324 = vmatpush2.msra.mxu0 0.0
    %325 = vmatprep.subr.mxu0 0.0
    %326 = vmatpush2.msra.mxu0 0.0
    %327 = vmatprep.subr.mxu0 0.0
    %328 = vmatpush2.msra.mxu0 0.0
    %329 = vmatprep.subr.mxu0 0.0
    %330 = vmatpush2.msra.mxu0 0.0
    %331 = vmatprep.subr.mxu0 0.0
    %332 = vmatpush2.msra.mxu0 0.0
    %333 = vmatprep.subr.mxu0 0.0
    %334 = vmatpush2.msra.mxu0 0.0
    %335 = vmatprep.subr.mxu0 0.0
    %336 = vmatpush2.msra.mxu0 0.0
    %337 = vmatprep.subr.mxu0 0.0
    %338 = vmatpush2.msra.mxu0 0.0
    %339 = vmatprep.subr.mxu0 0.0
    %340 = vmatpush2.msra.mxu0 0.0
    %341 = vmatprep.subr.mxu0 0.0
    %342 = vmatpush2.msra.mxu0 0.0
    %343 = vmatprep.subr.mxu0 0.0
    %344 = vmatpush2.msra.mxu0 0.0
    %345 = vmatprep.subr.mxu0 0.0
    %346 = vmatpush2.msra.mxu0 0.0
    %347 = vmatprep.subr.mxu0 0.0
    %348 = vmatpush2.msra.mxu0 0.0
    %349 = vmatprep.subr.mxu0 0.0
    %350 = vmatpush2.msra.mxu0 0.0
    %351 = vmatprep.mubr.f32.mxu0 0.0
    %352 = vmatmul.mubr.f32.gmra.mxu0 %v285
    %v353 = vpop.f32.mrf.mxu0
    %v354 = vadd.f32 0.0, %v353
    %v355 = vpop.f32.mrf.mxu0
    %356 = vdwg.mxu0
    %357 = vrot.lane.b32.xlu0 %v179, 120
    %v358 = vpop.permute.xlu0 %357
    %359 = vrot.lane.b32.xlu0 %v171, 88
    %v360 = vpop.permute.xlu0 %359
    %v361 = vsel %vm194, %v358, 0
    %v363 = vsel %vm194, %v360, 0
    %365 = vmatprep.subr.mxu0 0.0
    %366 = vmatpush1.xpose.msra.mxu0 0.0
    %367 = vmatprep.subr.mxu0 0.0
    %368 = vmatpush1.xpose.msra.mxu0 0.0
    %369 = vmatprep.subr.mxu0 0.0
    %370 = vmatpush1.xpose.msra.mxu0 0.0
    %371 = vmatprep.subr.mxu0 0.0
    %372 = vmatpush1.xpose.msra.mxu0 0.0
    %373 = vmatprep.subr.mxu0 0.0
    %374 = vmatpush1.xpose.msra.mxu0 0.0
    %375 = vmatprep.subr.mxu0 0.0
    %376 = vmatpush1.xpose.msra.mxu0 0.0
    %377 = vmatprep.subr.mxu0 0.0
    %378 = vmatpush1.xpose.msra.mxu0 0.0
    %379 = vmatprep.subr.mxu0 0.0
    %380 = vmatpush1.xpose.msra.mxu0 0.0
    %381 = vmatprep.subr.mxu0 0.0
    %382 = vmatpush1.xpose.msra.mxu0 0.0
    %383 = vmatprep.subr.mxu0 0.0
    %384 = vmatpush1.xpose.msra.mxu0 0.0
    %385 = vmatprep.subr.mxu0 0.0
    %386 = vmatpush1.xpose.msra.mxu0 0.0
    %387 = vmatprep.subr.mxu0 0.0
    %388 = vmatpush1.xpose.msra.mxu0 0.0
    %389 = vmatprep.subr.mxu0 0.0
    %390 = vmatpush1.xpose.msra.mxu0 0.0
    %391 = vmatprep.subr.mxu0 0.0
    %392 = vmatpush1.xpose.msra.mxu0 0.0
    %393 = vmatprep.subr.mxu0 0.0
    %394 = vmatpush1.xpose.msra.mxu0 0.0
    %395 = vmatprep.subr.mxu0 0.0
    %396 = vmatpush1.xpose.msra.mxu0 %v363
    %397 = vmatprep.subr.mxu0 0.0
    %398 = vmatpush2.xpose.msra.mxu0 0.0
    %399 = vmatprep.subr.mxu0 0.0
    %400 = vmatpush2.xpose.msra.mxu0 0.0
    %401 = vmatprep.subr.mxu0 0.0
    %402 = vmatpush2.xpose.msra.mxu0 0.0
    %403 = vmatprep.subr.mxu0 0.0
    %404 = vmatpush2.xpose.msra.mxu0 0.0
    %405 = vmatprep.subr.mxu0 0.0
    %406 = vmatpush2.xpose.msra.mxu0 0.0
    %407 = vmatprep.subr.mxu0 0.0
    %408 = vmatpush2.xpose.msra.mxu0 0.0
    %409 = vmatprep.subr.mxu0 0.0
    %410 = vmatpush2.xpose.msra.mxu0 0.0
    %411 = vmatprep.subr.mxu0 0.0
    %412 = vmatpush2.xpose.msra.mxu0 0.0
    %413 = vmatprep.subr.mxu0 0.0
    %414 = vmatpush2.xpose.msra.mxu0 0.0
    %415 = vmatprep.subr.mxu0 0.0
    %416 = vmatpush2.xpose.msra.mxu0 0.0
    %417 = vmatprep.subr.mxu0 0.0
    %418 = vmatpush2.xpose.msra.mxu0 0.0
    %419 = vmatprep.subr.mxu0 0.0
    %420 = vmatpush2.xpose.msra.mxu0 0.0
    %421 = vmatprep.subr.mxu0 0.0
    %422 = vmatpush2.xpose.msra.mxu0 0.0
    %423 = vmatprep.subr.mxu0 0.0
    %424 = vmatpush2.xpose.msra.mxu0 0.0
    %425 = vmatprep.subr.mxu0 0.0
    %426 = vmatpush2.xpose.msra.mxu0 0.0
    %427 = vmatprep.subr.mxu0 0.0
    %428 = vmatpush2.xpose.msra.mxu0 0.0
    %429 = vmatprep.mubr.f32.mxu0 0.0
    %430 = vmatmul.mubr.f32.gmra.mxu0 %v361
    %v431 = vpop.f32.mrf.mxu0
    %v432 = vadd.f32 %v185, %v431
    %v433 = vpop.f32.mrf.mxu0
    %434 = vdwg.mxu0
    %v435 = vsel %vm194, %v432, -inf
    %436 = vmax.xlane.f32.xlu0 %v435
    %v437 = vpop.xlane.xlu0 %436
    %v438 = vsub.f32 %v432, %v437
    %v439 = vmul.f32 %v438, 1.442695
    %v440 = vpow.pop %v439
    %v441 = vsel %vm194, %v440, 0.0
    %442 = vadd.xlane.f32.xlu0 %v441
    %v443 = vpop.xlane.xlu0 %442
    %v444 = vrcp.pop %v443
    %v445 = vmul.f32 %v440, %v444
    %446 = vrot.lane.b32.xlu0 %v171, 56
    %v447 = vpop.permute.xlu0 %446
    %v450 = vsel %vm194, %v445, 0
    %452 = vmatprep.subr.mxu0 0.0
    %453 = vmatpush1.msra.mxu0 0.0
    %454 = vmatprep.subr.mxu0 0.0
    %455 = vmatpush1.msra.mxu0 0.0
    %456 = vmatprep.subr.mxu0 0.0
    %457 = vmatpush1.msra.mxu0 0.0
    %458 = vmatprep.subr.mxu0 0.0
    %459 = vmatpush1.msra.mxu0 0.0
    %460 = vmatprep.subr.mxu0 0.0
    %461 = vmatpush1.msra.mxu0 0.0
    %462 = vmatprep.subr.mxu0 0.0
    %463 = vmatpush1.msra.mxu0 0.0
    %464 = vmatprep.subr.mxu0 0.0
    %465 = vmatpush1.msra.mxu0 0.0
    %466 = vmatprep.subr.mxu0 0.0
    %467 = vmatpush1.msra.mxu0 0.0
    %468 = vmatprep.subr.mxu0 0.0
    %469 = vmatpush1.msra.mxu0 0.0
    %470 = vmatprep.subr.mxu0 0.0
    %471 = vmatpush1.msra.mxu0 0.0
    %472 = vmatprep.subr.mxu0 0.0
    %473 = vmatpush1.msra.mxu0 0.0
    %474 = vmatprep.subr.mxu0 0.0
    %475 = vmatpush1.msra.mxu0 0.0
    %476 = vmatprep.subr.mxu0 0.0
    %477 = vmatpush1.msra.mxu0 0.0
    %478 = vmatprep.subr.mxu0 0.0
    %479 = vmatpush1.msra.mxu0 0.0
    %480 = vmatprep.subr.mxu0 0.0
    %481 = vmatpush1.msra.mxu0 0.0
    %482 = vmatprep.subr.mxu0 0.0
    %483 = vmatpush1.msra.mxu0 %v447
    %484 = vmatprep.subr.mxu0 0.0
    %485 = vmatpush2.msra.mxu0 0.0
    %486 = vmatprep.subr.mxu0 0.0
    %487 = vmatpush2.msra.mxu0 0.0
    %488 = vmatprep.subr.mxu0 0.0
    %489 = vmatpush2.msra.mxu0 0.0
    %490 = vmatprep.subr.mxu0 0.0
    %491 = vmatpush2.msra.mxu0 0.0
    %492 = vmatprep.subr.mxu0 0.0
    %493 = vmatpush2.msra.mxu0 0.0
    %494 = vmatprep.subr.mxu0 0.0
    %495 = vmatpush2.msra.mxu0 0.0
    %496 = vmatprep.subr.mxu0 0.0
    %497 = vmatpush2.msra.mxu0 0.0
    %498 = vmatprep.subr.mxu0 0.0
    %499 = vmatpush2.msra.mxu0 0.0
    %500 = vmatprep.subr.mxu0 0.0
    %501 = vmatpush2.msra.mxu0 0.0
    %502 = vmatprep.subr.mxu0 0.0
    %503 = vmatpush2.msra.mxu0 0.0
    %504 = vmatprep.subr.mxu0 0.0
    %505 = vmatpush2.msra.mxu0 0.0
    %506 = vmatprep.subr.mxu0 0.0
    %507 = vmatpush2.msra.mxu0 0.0
    %508 = vmatprep.subr.mxu0 0.0
    %509 = vmatpush2.msra.mxu0 0.0
    %510 = vmatprep.subr.mxu0 0.0
    %511 = vmatpush2.msra.mxu0 0.0
    %512 = vmatprep.subr.mxu0 0.0
    %513 = vmatpush2.msra.mxu0 0.0
    %514 = vmatprep.subr.mxu0 0.0
    %515 = vmatpush2.msra.mxu0 0.0
    %516 = vmatprep.mubr.f32.mxu0 0.0
    %517 = vmatmul.mubr.f32.gmra.mxu0 %v450
    %v518 = vpop.f32.mrf.mxu0
    %v519 = vadd.f32 0.0, %v518
    %v520 = vpop.f32.mrf.mxu0
    %521 = vdwg.mxu0
    %522 = vrot.lane.b32.xlu0 %v179, 112
    %v523 = vpop.permute.xlu0 %522
    %524 = vrot.lane.b32.xlu0 %v171, 80
    %v525 = vpop.permute.xlu0 %524
    %v526 = vsel %vm194, %v523, 0
    %v528 = vsel %vm194, %v525, 0
    %530 = vmatprep.subr.mxu0 0.0
    %531 = vmatpush1.xpose.msra.mxu0 0.0
    %532 = vmatprep.subr.mxu0 0.0
    %533 = vmatpush1.xpose.msra.mxu0 0.0
    %534 = vmatprep.subr.mxu0 0.0
    %535 = vmatpush1.xpose.msra.mxu0 0.0
    %536 = vmatprep.subr.mxu0 0.0
    %537 = vmatpush1.xpose.msra.mxu0 0.0
    %538 = vmatprep.subr.mxu0 0.0
    %539 = vmatpush1.xpose.msra.mxu0 0.0
    %540 = vmatprep.subr.mxu0 0.0
    %541 = vmatpush1.xpose.msra.mxu0 0.0
    %542 = vmatprep.subr.mxu0 0.0
    %543 = vmatpush1.xpose.msra.mxu0 0.0
    %544 = vmatprep.subr.mxu0 0.0
    %545 = vmatpush1.xpose.msra.mxu0 0.0
    %546 = vmatprep.subr.mxu0 0.0
    %547 = vmatpush1.xpose.msra.mxu0 0.0
    %548 = vmatprep.subr.mxu0 0.0
    %549 = vmatpush1.xpose.msra.mxu0 0.0
    %550 = vmatprep.subr.mxu0 0.0
    %551 = vmatpush1.xpose.msra.mxu0 0.0
    %552 = vmatprep.subr.mxu0 0.0
    %553 = vmatpush1.xpose.msra.mxu0 0.0
    %554 = vmatprep.subr.mxu0 0.0
    %555 = vmatpush1.xpose.msra.mxu0 0.0
    %556 = vmatprep.subr.mxu0 0.0
    %557 = vmatpush1.xpose.msra.mxu0 0.0
    %558 = vmatprep.subr.mxu0 0.0
    %559 = vmatpush1.xpose.msra.mxu0 0.0
    %560 = vmatprep.subr.mxu0 0.0
    %561 = vmatpush1.xpose.msra.mxu0 %v528
    %562 = vmatprep.subr.mxu0 0.0
    %563 = vmatpush2.xpose.msra.mxu0 0.0
    %564 = vmatprep.subr.mxu0 0.0
    %565 = vmatpush2.xpose.msra.mxu0 0.0
    %566 = vmatprep.subr.mxu0 0.0
    %567 = vmatpush2.xpose.msra.mxu0 0.0
    %568 = vmatprep.subr.mxu0 0.0
    %569 = vmatpush2.xpose.msra.mxu0 0.0
    %570 = vmatprep.subr.mxu0 0.0
    %571 = vmatpush2.xpose.msra.mxu0 0.0
    %572 = vmatprep.subr.mxu0 0.0
    %573 = vmatpush2.xpose.msra.mxu0 0.0
    %574 = vmatprep.subr.mxu0 0.0
    %575 = vmatpush2.xpose.msra.mxu0 0.0
    %576 = vmatprep.subr.mxu0 0.0
    %577 = vmatpush2.xpose.msra.mxu0 0.0
    %578 = vmatprep.subr.mxu0 0.0
    %579 = vmatpush2.xpose.msra.mxu0 0.0
    %580 = vmatprep.subr.mxu0 0.0
    %581 = vmatpush2.xpose.msra.mxu0 0.0
    %582 = vmatprep.subr.mxu0 0.0
    %583 = vmatpush2.xpose.msra.mxu0 0.0
    %584 = vmatprep.subr.mxu0 0.0
    %585 = vmatpush2.xpose.msra.mxu0 0.0
    %586 = vmatprep.subr.mxu0 0.0
    %587 = vmatpush2.xpose.msra.mxu0 0.0
    %588 = vmatprep.subr.mxu0 0.0
    %589 = vmatpush2.xpose.msra.mxu0 0.0
    %590 = vmatprep.subr.mxu0 0.0
    %591 = vmatpush2.xpose.msra.mxu0 0.0
    %592 = vmatprep.subr.mxu0 0.0
    %593 = vmatpush2.xpose.msra.mxu0 0.0
    %594 = vmatprep.mubr.f32.mxu0 0.0
    %595 = vmatmul.mubr.f32.gmra.mxu0 %v526
    %v596 = vpop.f32.mrf.mxu0
    %v597 = vadd.f32 %v185, %v596
    %v598 = vpop.f32.mrf.mxu0
    %599 = vdwg.mxu0
    %v600 = vsel %vm194, %v597, -inf
    %601 = vmax.xlane.f32.xlu0 %v600
    %v602 = vpop.xlane.xlu0 %601
    %v603 = vsub.f32 %v597, %v602
    %v604 = vmul.f32 %v603, 1.442695
    %v605 = vpow.pop %v604
    %v606 = vsel %vm194, %v605, 0.0
    %607 = vadd.xlane.f32.xlu0 %v606
    %v608 = vpop.xlane.xlu0 %607
    %v609 = vrcp.pop %v608
    %v610 = vmul.f32 %v605, %v609
    %611 = vrot.lane.b32.xlu0 %v171, 48
    %v612 = vpop.permute.xlu0 %611
    %v615 = vsel %vm194, %v610, 0
    %617 = vmatprep.subr.mxu0 0.0
    %618 = vmatpush1.msra.mxu0 0.0
    %619 = vmatprep.subr.mxu0 0.0
    %620 = vmatpush1.msra.mxu0 0.0
    %621 = vmatprep.subr.mxu0 0.0
    %622 = vmatpush1.msra.mxu0 0.0
    %623 = vmatprep.subr.mxu0 0.0
    %624 = vmatpush1.msra.mxu0 0.0
    %625 = vmatprep.subr.mxu0 0.0
    %626 = vmatpush1.msra.mxu0 0.0
    %627 = vmatprep.subr.mxu0 0.0
    %628 = vmatpush1.msra.mxu0 0.0
    %629 = vmatprep.subr.mxu0 0.0
    %630 = vmatpush1.msra.mxu0 0.0
    %631 = vmatprep.subr.mxu0 0.0
    %632 = vmatpush1.msra.mxu0 0.0
    %633 = vmatprep.subr.mxu0 0.0
    %634 = vmatpush1.msra.mxu0 0.0
    %635 = vmatprep.subr.mxu0 0.0
    %636 = vmatpush1.msra.mxu0 0.0
    %637 = vmatprep.subr.mxu0 0.0
    %638 = vmatpush1.msra.mxu0 0.0
    %639 = vmatprep.subr.mxu0 0.0
    %640 = vmatpush1.msra.mxu0 0.0
    %641 = vmatprep.subr.mxu0 0.0
    %642 = vmatpush1.msra.mxu0 0.0
    %643 = vmatprep.subr.mxu0 0.0
    %644 = vmatpush1.msra.mxu0 0.0
    %645 = vmatprep.subr.mxu0 0.0
    %646 = vmatpush1.msra.mxu0 0.0
    %647 = vmatprep.subr.mxu0 0.0
    %648 = vmatpush1.msra.mxu0 %v612
    %649 = vmatprep.subr.mxu0 0.0
    %650 = vmatpush2.msra.mxu0 0.0
    %651 = vmatprep.subr.mxu0 0.0
    %652 = vmatpush2.msra.mxu0 0.0
    %653 = vmatprep.subr.mxu0 0.0
    %654 = vmatpush2.msra.mxu0 0.0
    %655 = vmatprep.subr.mxu0 0.0
    %656 = vmatpush2.msra.mxu0 0.0
    %657 = vmatprep.subr.mxu0 0.0
    %658 = vmatpush2.msra.mxu0 0.0
    %659 = vmatprep.subr.mxu0 0.0
    %660 = vmatpush2.msra.mxu0 0.0
    %661 = vmatprep.subr.mxu0 0.0
    %662 = vmatpush2.msra.mxu0 0.0
    %663 = vmatprep.subr.mxu0 0.0
    %664 = vmatpush2.msra.mxu0 0.0
    %665 = vmatprep.subr.mxu0 0.0
    %666 = vmatpush2.msra.mxu0 0.0
    %667 = vmatprep.subr.mxu0 0.0
    %668 = vmatpush2.msra.mxu0 0.0
    %669 = vmatprep.subr.mxu0 0.0
    %670 = vmatpush2.msra.mxu0 0.0
    %671 = vmatprep.subr.mxu0 0.0
    %672 = vmatpush2.msra.mxu0 0.0
    %673 = vmatprep.subr.mxu0 0.0
    %674 = vmatpush2.msra.mxu0 0.0
    %675 = vmatprep.subr.mxu0 0.0
    %676 = vmatpush2.msra.mxu0 0.0
    %677 = vmatprep.subr.mxu0 0.0
    %678 = vmatpush2.msra.mxu0 0.0
    %679 = vmatprep.subr.mxu0 0.0
    %680 = vmatpush2.msra.mxu0 0.0
    %681 = vmatprep.mubr.f32.mxu0 0.0
    %682 = vmatmul.mubr.f32.gmra.mxu0 %v615
    %v683 = vpop.f32.mrf.mxu0
    %v684 = vadd.f32 0.0, %v683
    %v685 = vpop.f32.mrf.mxu0
    %686 = vdwg.mxu0
    %687 = vrot.lane.b32.xlu0 %v179, 104
    %v688 = vpop.permute.xlu0 %687
    %689 = vrot.lane.b32.xlu0 %v171, 72
    %v690 = vpop.permute.xlu0 %689
    %v691 = vsel %vm194, %v688, 0
    %v693 = vsel %vm194, %v690, 0
    %695 = vmatprep.subr.mxu0 0.0
    %696 = vmatpush1.xpose.msra.mxu0 0.0
    %697 = vmatprep.subr.mxu0 0.0
    %698 = vmatpush1.xpose.msra.mxu0 0.0
    %699 = vmatprep.subr.mxu0 0.0
    %700 = vmatpush1.xpose.msra.mxu0 0.0
    %701 = vmatprep.subr.mxu0 0.0
    %702 = vmatpush1.xpose.msra.mxu0 0.0
    %703 = vmatprep.subr.mxu0 0.0
    %704 = vmatpush1.xpose.msra.mxu0 0.0
    %705 = vmatprep.subr.mxu0 0.0
    %706 = vmatpush1.xpose.msra.mxu0 0.0
    %707 = vmatprep.subr.mxu0 0.0
    %708 = vmatpush1.xpose.msra.mxu0 0.0
    %709 = vmatprep.subr.mxu0 0.0
    %710 = vmatpush1.xpose.msra.mxu0 0.0
    %711 = vmatprep.subr.mxu0 0.0
    %712 = vmatpush1.xpose.msra.mxu0 0.0
    %713 = vmatprep.subr.mxu0 0.0
    %714 = vmatpush1.xpose.msra.mxu0 0.0
    %715 = vmatprep.subr.mxu0 0.0
    %716 = vmatpush1.xpose.msra.mxu0 0.0
    %717 = vmatprep.subr.mxu0 0.0
    %718 = vmatpush1.xpose.msra.mxu0 0.0
    %719 = vmatprep.subr.mxu0 0.0
    %720 = vmatpush1.xpose.msra.mxu0 0.0
    %721 = vmatprep.subr.mxu0 0.0
    %722 = vmatpush1.xpose.msra.mxu0 0.0
    %723 = vmatprep.subr.mxu0 0.0
    %724 = vmatpush1.xpose.msra.mxu0 0.0
    %725 = vmatprep.subr.mxu0 0.0
    %726 = vmatpush1.xpose.msra.mxu0 %v693
    %727 = vmatprep.subr.mxu0 0.0
    %728 = vmatpush2.xpose.msra.mxu0 0.0
    %729 = vmatprep.subr.mxu0 0.0
    %730 = vmatpush2.xpose.msra.mxu0 0.0
    %731 = vmatprep.subr.mxu0 0.0
    %732 = vmatpush2.xpose.msra.mxu0 0.0
    %733 = vmatprep.subr.mxu0 0.0
    %734 = vmatpush2.xpose.msra.mxu0 0.0
    %735 = vmatprep.subr.mxu0 0.0
    %736 = vmatpush2.xpose.msra.mxu0 0.0
    %737 = vmatprep.subr.mxu0 0.0
    %738 = vmatpush2.xpose.msra.mxu0 0.0
    %739 = vmatprep.subr.mxu0 0.0
    %740 = vmatpush2.xpose.msra.mxu0 0.0
    %741 = vmatprep.subr.mxu0 0.0
    %742 = vmatpush2.xpose.msra.mxu0 0.0
    %743 = vmatprep.subr.mxu0 0.0
    %744 = vmatpush2.xpose.msra.mxu0 0.0
    %745 = vmatprep.subr.mxu0 0.0
    %746 = vmatpush2.xpose.msra.mxu0 0.0
    %747 = vmatprep.subr.mxu0 0.0
    %748 = vmatpush2.xpose.msra.mxu0 0.0
    %749 = vmatprep.subr.mxu0 0.0
    %750 = vmatpush2.xpose.msra.mxu0 0.0
    %751 = vmatprep.subr.mxu0 0.0
    %752 = vmatpush2.xpose.msra.mxu0 0.0
    %753 = vmatprep.subr.mxu0 0.0
    %754 = vmatpush2.xpose.msra.mxu0 0.0
    %755 = vmatprep.subr.mxu0 0.0
    %756 = vmatpush2.xpose.msra.mxu0 0.0
    %757 = vmatprep.subr.mxu0 0.0
    %758 = vmatpush2.xpose.msra.mxu0 0.0
    %759 = vmatprep.mubr.f32.mxu0 0.0
    %760 = vmatmul.mubr.f32.gmra.mxu0 %v691
    %v761 = vpop.f32.mrf.mxu0
    %v762 = vadd.f32 %v185, %v761
    %v763 = vpop.f32.mrf.mxu0
    %764 = vdwg.mxu0
    %v765 = vsel %vm194, %v762, -inf
    %766 = vmax.xlane.f32.xlu0 %v765
    %v767 = vpop.xlane.xlu0 %766
    %v768 = vsub.f32 %v762, %v767
    %v769 = vmul.f32 %v768, 1.442695
    %v770 = vpow.pop %v769
    %v771 = vsel %vm194, %v770, 0.0
    %772 = vadd.xlane.f32.xlu0 %v771
    %v773 = vpop.xlane.xlu0 %772
    %v774 = vrcp.pop %v773
    %v775 = vmul.f32 %v770, %v774
    %776 = vrot.lane.b32.xlu0 %v171, 40
    %v777 = vpop.permute.xlu0 %776
    %v780 = vsel %vm194, %v775, 0
    %782 = vmatprep.subr.mxu0 0.0
    %783 = vmatpush1.msra.mxu0 0.0
    %784 = vmatprep.subr.mxu0 0.0
    %785 = vmatpush1.msra.mxu0 0.0
    %786 = vmatprep.subr.mxu0 0.0
    %787 = vmatpush1.msra.mxu0 0.0
    %788 = vmatprep.subr.mxu0 0.0
    %789 = vmatpush1.msra.mxu0 0.0
    %790 = vmatprep.subr.mxu0 0.0
    %791 = vmatpush1.msra.mxu0 0.0
    %792 = vmatprep.subr.mxu0 0.0
    %793 = vmatpush1.msra.mxu0 0.0
    %794 = vmatprep.subr.mxu0 0.0
    %795 = vmatpush1.msra.mxu0 0.0
    %796 = vmatprep.subr.mxu0 0.0
    %797 = vmatpush1.msra.mxu0 0.0
    %798 = vmatprep.subr.mxu0 0.0
    %799 = vmatpush1.msra.mxu0 0.0
    %800 = vmatprep.subr.mxu0 0.0
    %801 = vmatpush1.msra.mxu0 0.0
    %802 = vmatprep.subr.mxu0 0.0
    %803 = vmatpush1.msra.mxu0 0.0
    %804 = vmatprep.subr.mxu0 0.0
    %805 = vmatpush1.msra.mxu0 0.0
    %806 = vmatprep.subr.mxu0 0.0
    %807 = vmatpush1.msra.mxu0 0.0
    %808 = vmatprep.subr.mxu0 0.0
    %809 = vmatpush1.msra.mxu0 0.0
    %810 = vmatprep.subr.mxu0 0.0
    %811 = vmatpush1.msra.mxu0 0.0
    %812 = vmatprep.subr.mxu0 0.0
    %813 = vmatpush1.msra.mxu0 %v777
    %814 = vmatprep.subr.mxu0 0.0
    %815 = vmatpush2.msra.mxu0 0.0
    %816 = vmatprep.subr.mxu0 0.0
    %817 = vmatpush2.msra.mxu0 0.0
    %818 = vmatprep.subr.mxu0 0.0
    %819 = vmatpush2.msra.mxu0 0.0
    %820 = vmatprep.subr.mxu0 0.0
    %821 = vmatpush2.msra.mxu0 0.0
    %822 = vmatprep.subr.mxu0 0.0
    %823 = vmatpush2.msra.mxu0 0.0
    %824 = vmatprep.subr.mxu0 0.0
    %825 = vmatpush2.msra.mxu0 0.0
    %826 = vmatprep.subr.mxu0 0.0
    %827 = vmatpush2.msra.mxu0 0.0
    %828 = vmatprep.subr.mxu0 0.0
    %829 = vmatpush2.msra.mxu0 0.0
    %830 = vmatprep.subr.mxu0 0.0
    %831 = vmatpush2.msra.mxu0 0.0
    %832 = vmatprep.subr.mxu0 0.0
    %833 = vmatpush2.msra.mxu0 0.0
    %834 = vmatprep.subr.mxu0 0.0
    %835 = vmatpush2.msra.mxu0 0.0
    %836 = vmatprep.subr.mxu0 0.0
    %837 = vmatpush2.msra.mxu0 0.0
    %838 = vmatprep.subr.mxu0 0.0
    %839 = vmatpush2.msra.mxu0 0.0
    %840 = vmatprep.subr.mxu0 0.0
    %841 = vmatpush2.msra.mxu0 0.0
    %842 = vmatprep.subr.mxu0 0.0
    %843 = vmatpush2.msra.mxu0 0.0
    %844 = vmatprep.subr.mxu0 0.0
    %845 = vmatpush2.msra.mxu0 0.0
    %846 = vmatprep.mubr.f32.mxu0 0.0
    %847 = vmatmul.mubr.f32.gmra.mxu0 %v780
    %v848 = vpop.f32.mrf.mxu0
    %v849 = vadd.f32 0.0, %v848
    %v850 = vpop.f32.mrf.mxu0
    %851 = vdwg.mxu0
    %853 = vrot.lane.b32.xlu0 %v519, 8
    %v854 = vpop.permute.xlu0 %853
    %857 = vrot.lane.b32.xlu0 %v684, 16
    %v858 = vpop.permute.xlu0 %857
    %861 = vrot.lane.b32.xlu0 %v849, 24
    %v862 = vpop.permute.xlu0 %861
    %v864 = vsel %vm194, %v354, %v854
    %vm865 = vcmask 130048
    %v866 = vsel %vm865, %v864, %v858
    %vm867 = vcmask 195584
    %v868 = vsel %vm867, %v866, %v862
    %870 = vrot.lane.b32.xlu0 %v176, 96
    %v871 = vpop.permute.xlu0 %870
    %v873 = vsel %vm194, %v180, 0
    %v875 = vsel %vm194, %v871, 0
    %877 = vmatprep.subr.mxu0 0.0
    %878 = vmatpush1.xpose.msra.mxu0 0.0
    %879 = vmatprep.subr.mxu0 0.0
    %880 = vmatpush1.xpose.msra.mxu0 0.0
    %881 = vmatprep.subr.mxu0 0.0
    %882 = vmatpush1.xpose.msra.mxu0 0.0
    %883 = vmatprep.subr.mxu0 0.0
    %884 = vmatpush1.xpose.msra.mxu0 0.0
    %885 = vmatprep.subr.mxu0 0.0
    %886 = vmatpush1.xpose.msra.mxu0 0.0
    %887 = vmatprep.subr.mxu0 0.0
    %888 = vmatpush1.xpose.msra.mxu0 0.0
    %889 = vmatprep.subr.mxu0 0.0
    %890 = vmatpush1.xpose.msra.mxu0 0.0
    %891 = vmatprep.subr.mxu0 0.0
    %892 = vmatpush1.xpose.msra.mxu0 0.0
    %893 = vmatprep.subr.mxu0 0.0
    %894 = vmatpush1.xpose.msra.mxu0 0.0
    %895 = vmatprep.subr.mxu0 0.0
    %896 = vmatpush1.xpose.msra.mxu0 0.0
    %897 = vmatprep.subr.mxu0 0.0
    %898 = vmatpush1.xpose.msra.mxu0 0.0
    %899 = vmatprep.subr.mxu0 0.0
    %900 = vmatpush1.xpose.msra.mxu0 0.0
    %901 = vmatprep.subr.mxu0 0.0
    %902 = vmatpush1.xpose.msra.mxu0 0.0
    %903 = vmatprep.subr.mxu0 0.0
    %904 = vmatpush1.xpose.msra.mxu0 0.0
    %905 = vmatprep.subr.mxu0 0.0
    %906 = vmatpush1.xpose.msra.mxu0 0.0
    %907 = vmatprep.subr.mxu0 0.0
    %908 = vmatpush1.xpose.msra.mxu0 %v875
    %909 = vmatprep.subr.mxu0 0.0
    %910 = vmatpush2.xpose.msra.mxu0 0.0
    %911 = vmatprep.subr.mxu0 0.0
    %912 = vmatpush2.xpose.msra.mxu0 0.0
    %913 = vmatprep.subr.mxu0 0.0
    %914 = vmatpush2.xpose.msra.mxu0 0.0
    %915 = vmatprep.subr.mxu0 0.0
    %916 = vmatpush2.xpose.msra.mxu0 0.0
    %917 = vmatprep.subr.mxu0 0.0
    %918 = vmatpush2.xpose.msra.mxu0 0.0
    %919 = vmatprep.subr.mxu0 0.0
    %920 = vmatpush2.xpose.msra.mxu0 0.0
    %921 = vmatprep.subr.mxu0 0.0
    %922 = vmatpush2.xpose.msra.mxu0 0.0
    %923 = vmatprep.subr.mxu0 0.0
    %924 = vmatpush2.xpose.msra.mxu0 0.0
    %925 = vmatprep.subr.mxu0 0.0
    %926 = vmatpush2.xpose.msra.mxu0 0.0
    %927 = vmatprep.subr.mxu0 0.0
    %928 = vmatpush2.xpose.msra.mxu0 0.0
    %929 = vmatprep.subr.mxu0 0.0
    %930 = vmatpush2.xpose.msra.mxu0 0.0
    %931 = vmatprep.subr.mxu0 0.0
    %932 = vmatpush2.xpose.msra.mxu0 0.0
    %933 = vmatprep.subr.mxu0 0.0
    %934 = vmatpush2.xpose.msra.mxu0 0.0
    %935 = vmatprep.subr.mxu0 0.0
    %936 = vmatpush2.xpose.msra.mxu0 0.0
    %937 = vmatprep.subr.mxu0 0.0
    %938 = vmatpush2.xpose.msra.mxu0 0.0
    %939 = vmatprep.subr.mxu0 0.0
    %940 = vmatpush2.xpose.msra.mxu0 0.0
    %941 = vmatprep.mubr.f32.mxu0 0.0
    %942 = vmatmul.mubr.f32.gmra.mxu0 %v873
    %v943 = vpop.f32.mrf.mxu0
    %v944 = vadd.f32 %v190, %v943
    %v945 = vpop.f32.mrf.mxu0
    %946 = vdwg.mxu0
    %v947 = vsel %vm194, %v944, -inf
    %948 = vmax.xlane.f32.xlu0 %v947
    %v949 = vpop.xlane.xlu0 %948
    %v950 = vsub.f32 %v944, %v949
    %v951 = vmul.f32 %v950, 1.442695
    %v952 = vpow.pop %v951
    %v953 = vsel %vm194, %v952, 0.0
    %954 = vadd.xlane.f32.xlu0 %v953
    %v955 = vpop.xlane.xlu0 %954
    %v956 = vrcp.pop %v955
    %v957 = vmul.f32 %v952, %v956
    %958 = vrot.lane.b32.xlu0 %v176, 64
    %v959 = vpop.permute.xlu0 %958
    %v962 = vsel %vm194, %v957, 0
    %964 = vmatprep.subr.mxu0 0.0
    %965 = vmatpush1.msra.mxu0 0.0
    %966 = vmatprep.subr.mxu0 0.0
    %967 = vmatpush1.msra.mxu0 0.0
    %968 = vmatprep.subr.mxu0 0.0
    %969 = vmatpush1.msra.mxu0 0.0
    %970 = vmatprep.subr.mxu0 0.0
    %971 = vmatpush1.msra.mxu0 0.0
    %972 = vmatprep.subr.mxu0 0.0
    %973 = vmatpush1.msra.mxu0 0.0
    %974 = vmatprep.subr.mxu0 0.0
    %975 = vmatpush1.msra.mxu0 0.0
    %976 = vmatprep.subr.mxu0 0.0
    %977 = vmatpush1.msra.mxu0 0.0
    %978 = vmatprep.subr.mxu0 0.0
    %979 = vmatpush1.msra.mxu0 0.0
    %980 = vmatprep.subr.mxu0 0.0
    %981 = vmatpush1.msra.mxu0 0.0
    %982 = vmatprep.subr.mxu0 0.0
    %983 = vmatpush1.msra.mxu0 0.0
    %984 = vmatprep.subr.mxu0 0.0
    %985 = vmatpush1.msra.mxu0 0.0
    %986 = vmatprep.subr.mxu0 0.0
    %987 = vmatpush1.msra.mxu0 0.0
    %988 = vmatprep.subr.mxu0 0.0
    %989 = vmatpush1.msra.mxu0 0.0
    %990 = vmatprep.subr.mxu0 0.0
    %991 = vmatpush1.msra.mxu0 0.0
    %992 = vmatprep.subr.mxu0 0.0
    %993 = vmatpush1.msra.mxu0 0.0
    %994 = vmatprep.subr.mxu0 0.0
    %995 = vmatpush1.msra.mxu0 %v959
    %996 = vmatprep.subr.mxu0 0.0
    %997 = vmatpush2.msra.mxu0 0.0
    %998 = vmatprep.subr.mxu0 0.0
    %999 = vmatpush2.msra.mxu0 0.0
    %1000 = vmatprep.subr.mxu0 0.0
    %1001 = vmatpush2.msra.mxu0 0.0
    %1002 = vmatprep.subr.mxu0 0.0
    %1003 = vmatpush2.msra.mxu0 0.0
    %1004 = vmatprep.subr.mxu0 0.0
    %1005 = vmatpush2.msra.mxu0 0.0
    %1006 = vmatprep.subr.mxu0 0.0
    %1007 = vmatpush2.msra.mxu0 0.0
    %1008 = vmatprep.subr.mxu0 0.0
    %1009 = vmatpush2.msra.mxu0 0.0
    %1010 = vmatprep.subr.mxu0 0.0
    %1011 = vmatpush2.msra.mxu0 0.0
    %1012 = vmatprep.subr.mxu0 0.0
    %1013 = vmatpush2.msra.mxu0 0.0
    %1014 = vmatprep.subr.mxu0 0.0
    %1015 = vmatpush2.msra.mxu0 0.0
    %1016 = vmatprep.subr.mxu0 0.0
    %1017 = vmatpush2.msra.mxu0 0.0
    %1018 = vmatprep.subr.mxu0 0.0
    %1019 = vmatpush2.msra.mxu0 0.0
    %1020 = vmatprep.subr.mxu0 0.0
    %1021 = vmatpush2.msra.mxu0 0.0
    %1022 = vmatprep.subr.mxu0 0.0
    %1023 = vmatpush2.msra.mxu0 0.0
    %1024 = vmatprep.subr.mxu0 0.0
    %1025 = vmatpush2.msra.mxu0 0.0
    %1026 = vmatprep.subr.mxu0 0.0
    %1027 = vmatpush2.msra.mxu0 0.0
    %1028 = vmatprep.mubr.f32.mxu0 0.0
    %1029 = vmatmul.mubr.f32.gmra.mxu0 %v962
    %v1030 = vpop.f32.mrf.mxu0
    %v1031 = vadd.f32 0.0, %v1030
    %v1032 = vpop.f32.mrf.mxu0
    %1033 = vdwg.mxu0
    %1034 = vrot.lane.b32.xlu0 %v180, 120
    %v1035 = vpop.permute.xlu0 %1034
    %1036 = vrot.lane.b32.xlu0 %v176, 88
    %v1037 = vpop.permute.xlu0 %1036
    %v1038 = vsel %vm194, %v1035, 0
    %v1040 = vsel %vm194, %v1037, 0
    %1042 = vmatprep.subr.mxu0 0.0
    %1043 = vmatpush1.xpose.msra.mxu0 0.0
    %1044 = vmatprep.subr.mxu0 0.0
    %1045 = vmatpush1.xpose.msra.mxu0 0.0
    %1046 = vmatprep.subr.mxu0 0.0
    %1047 = vmatpush1.xpose.msra.mxu0 0.0
    %1048 = vmatprep.subr.mxu0 0.0
    %1049 = vmatpush1.xpose.msra.mxu0 0.0
    %1050 = vmatprep.subr.mxu0 0.0
    %1051 = vmatpush1.xpose.msra.mxu0 0.0
    %1052 = vmatprep.subr.mxu0 0.0
    %1053 = vmatpush1.xpose.msra.mxu0 0.0
    %1054 = vmatprep.subr.mxu0 0.0
    %1055 = vmatpush1.xpose.msra.mxu0 0.0
    %1056 = vmatprep.subr.mxu0 0.0
    %1057 = vmatpush1.xpose.msra.mxu0 0.0
    %1058 = vmatprep.subr.mxu0 0.0
    %1059 = vmatpush1.xpose.msra.mxu0 0.0
    %1060 = vmatprep.subr.mxu0 0.0
    %1061 = vmatpush1.xpose.msra.mxu0 0.0
    %1062 = vmatprep.subr.mxu0 0.0
    %1063 = vmatpush1.xpose.msra.mxu0 0.0
    %1064 = vmatprep.subr.mxu0 0.0
    %1065 = vmatpush1.xpose.msra.mxu0 0.0
    %1066 = vmatprep.subr.mxu0 0.0
    %1067 = vmatpush1.xpose.msra.mxu0 0.0
    %1068 = vmatprep.subr.mxu0 0.0
    %1069 = vmatpush1.xpose.msra.mxu0 0.0
    %1070 = vmatprep.subr.mxu0 0.0
    %1071 = vmatpush1.xpose.msra.mxu0 0.0
    %1072 = vmatprep.subr.mxu0 0.0
    %1073 = vmatpush1.xpose.msra.mxu0 %v1040
    %1074 = vmatprep.subr.mxu0 0.0
    %1075 = vmatpush2.xpose.msra.mxu0 0.0
    %1076 = vmatprep.subr.mxu0 0.0
    %1077 = vmatpush2.xpose.msra.mxu0 0.0
    %1078 = vmatprep.subr.mxu0 0.0
    %1079 = vmatpush2.xpose.msra.mxu0 0.0
    %1080 = vmatprep.subr.mxu0 0.0
    %1081 = vmatpush2.xpose.msra.mxu0 0.0
    %1082 = vmatprep.subr.mxu0 0.0
    %1083 = vmatpush2.xpose.msra.mxu0 0.0
    %1084 = vmatprep.subr.mxu0 0.0
    %1085 = vmatpush2.xpose.msra.mxu0 0.0
    %1086 = vmatprep.subr.mxu0 0.0
    %1087 = vmatpush2.xpose.msra.mxu0 0.0
    %1088 = vmatprep.subr.mxu0 0.0
    %1089 = vmatpush2.xpose.msra.mxu0 0.0
    %1090 = vmatprep.subr.mxu0 0.0
    %1091 = vmatpush2.xpose.msra.mxu0 0.0
    %1092 = vmatprep.subr.mxu0 0.0
    %1093 = vmatpush2.xpose.msra.mxu0 0.0
    %1094 = vmatprep.subr.mxu0 0.0
    %1095 = vmatpush2.xpose.msra.mxu0 0.0
    %1096 = vmatprep.subr.mxu0 0.0
    %1097 = vmatpush2.xpose.msra.mxu0 0.0
    %1098 = vmatprep.subr.mxu0 0.0
    %1099 = vmatpush2.xpose.msra.mxu0 0.0
    %1100 = vmatprep.subr.mxu0 0.0
    %1101 = vmatpush2.xpose.msra.mxu0 0.0
    %1102 = vmatprep.subr.mxu0 0.0
    %1103 = vmatpush2.xpose.msra.mxu0 0.0
    %1104 = vmatprep.subr.mxu0 0.0
    %1105 = vmatpush2.xpose.msra.mxu0 0.0
    %1106 = vmatprep.mubr.f32.mxu0 0.0
    %1107 = vmatmul.mubr.f32.gmra.mxu0 %v1038
    %v1108 = vpop.f32.mrf.mxu0
    %v1109 = vadd.f32 %v190, %v1108
    %v1110 = vpop.f32.mrf.mxu0
    %1111 = vdwg.mxu0
    %v1112 = vsel %vm194, %v1109, -inf
    %1113 = vmax.xlane.f32.xlu0 %v1112
    %v1114 = vpop.xlane.xlu0 %1113
    %v1115 = vsub.f32 %v1109, %v1114
    %v1116 = vmul.f32 %v1115, 1.442695
    %v1117 = vpow.pop %v1116
    %v1118 = vsel %vm194, %v1117, 0.0
    %1119 = vadd.xlane.f32.xlu0 %v1118
    %v1120 = vpop.xlane.xlu0 %1119
    %v1121 = vrcp.pop %v1120
    %v1122 = vmul.f32 %v1117, %v1121
    %1123 = vrot.lane.b32.xlu0 %v176, 56
    %v1124 = vpop.permute.xlu0 %1123
    %v1127 = vsel %vm194, %v1122, 0
    %1129 = vmatprep.subr.mxu0 0.0
    %1130 = vmatpush1.msra.mxu0 0.0
    %1131 = vmatprep.subr.mxu0 0.0
    %1132 = vmatpush1.msra.mxu0 0.0
    %1133 = vmatprep.subr.mxu0 0.0
    %1134 = vmatpush1.msra.mxu0 0.0
    %1135 = vmatprep.subr.mxu0 0.0
    %1136 = vmatpush1.msra.mxu0 0.0
    %1137 = vmatprep.subr.mxu0 0.0
    %1138 = vmatpush1.msra.mxu0 0.0
    %1139 = vmatprep.subr.mxu0 0.0
    %1140 = vmatpush1.msra.mxu0 0.0
    %1141 = vmatprep.subr.mxu0 0.0
    %1142 = vmatpush1.msra.mxu0 0.0
    %1143 = vmatprep.subr.mxu0 0.0
    %1144 = vmatpush1.msra.mxu0 0.0
    %1145 = vmatprep.subr.mxu0 0.0
    %1146 = vmatpush1.msra.mxu0 0.0
    %1147 = vmatprep.subr.mxu0 0.0
    %1148 = vmatpush1.msra.mxu0 0.0
    %1149 = vmatprep.subr.mxu0 0.0
    %1150 = vmatpush1.msra.mxu0 0.0
    %1151 = vmatprep.subr.mxu0 0.0
    %1152 = vmatpush1.msra.mxu0 0.0
    %1153 = vmatprep.subr.mxu0 0.0
    %1154 = vmatpush1.msra.mxu0 0.0
    %1155 = vmatprep.subr.mxu0 0.0
    %1156 = vmatpush1.msra.mxu0 0.0
    %1157 = vmatprep.subr.mxu0 0.0
    %1158 = vmatpush1.msra.mxu0 0.0
    %1159 = vmatprep.subr.mxu0 0.0
    %1160 = vmatpush1.msra.mxu0 %v1124
    %1161 = vmatprep.subr.mxu0 0.0
    %1162 = vmatpush2.msra.mxu0 0.0
    %1163 = vmatprep.subr.mxu0 0.0
    %1164 = vmatpush2.msra.mxu0 0.0
    %1165 = vmatprep.subr.mxu0 0.0
    %1166 = vmatpush2.msra.mxu0 0.0
    %1167 = vmatprep.subr.mxu0 0.0
    %1168 = vmatpush2.msra.mxu0 0.0
    %1169 = vmatprep.subr.mxu0 0.0
    %1170 = vmatpush2.msra.mxu0 0.0
    %1171 = vmatprep.subr.mxu0 0.0
    %1172 = vmatpush2.msra.mxu0 0.0
    %1173 = vmatprep.subr.mxu0 0.0
    %1174 = vmatpush2.msra.mxu0 0.0
    %1175 = vmatprep.subr.mxu0 0.0
    %1176 = vmatpush2.msra.mxu0 0.0
    %1177 = vmatprep.subr.mxu0 0.0
    %1178 = vmatpush2.msra.mxu0 0.0
    %1179 = vmatprep.subr.mxu0 0.0
    %1180 = vmatpush2.msra.mxu0 0.0
    %1181 = vmatprep.subr.mxu0 0.0
    %1182 = vmatpush2.msra.mxu0 0.0
    %1183 = vmatprep.subr.mxu0 0.0
    %1184 = vmatpush2.msra.mxu0 0.0
    %1185 = vmatprep.subr.mxu0 0.0
    %1186 = vmatpush2.msra.mxu0 0.0
    %1187 = vmatprep.subr.mxu0 0.0
    %1188 = vmatpush2.msra.mxu0 0.0
    %1189 = vmatprep.subr.mxu0 0.0
    %1190 = vmatpush2.msra.mxu0 0.0
    %1191 = vmatprep.subr.mxu0 0.0
    %1192 = vmatpush2.msra.mxu0 0.0
    %1193 = vmatprep.mubr.f32.mxu0 0.0
    %1194 = vmatmul.mubr.f32.gmra.mxu0 %v1127
    %v1195 = vpop.f32.mrf.mxu0
    %v1196 = vadd.f32 0.0, %v1195
    %v1197 = vpop.f32.mrf.mxu0
    %1198 = vdwg.mxu0
    %1199 = vrot.lane.b32.xlu0 %v180, 112
    %v1200 = vpop.permute.xlu0 %1199
    %1201 = vrot.lane.b32.xlu0 %v176, 80
    %v1202 = vpop.permute.xlu0 %1201
    %v1203 = vsel %vm194, %v1200, 0
    %v1205 = vsel %vm194, %v1202, 0
    %1207 = vmatprep.subr.mxu0 0.0
    %1208 = vmatpush1.xpose.msra.mxu0 0.0
    %1209 = vmatprep.subr.mxu0 0.0
    %1210 = vmatpush1.xpose.msra.mxu0 0.0
    %1211 = vmatprep.subr.mxu0 0.0
    %1212 = vmatpush1.xpose.msra.mxu0 0.0
    %1213 = vmatprep.subr.mxu0 0.0
    %1214 = vmatpush1.xpose.msra.mxu0 0.0
    %1215 = vmatprep.subr.mxu0 0.0
    %1216 = vmatpush1.xpose.msra.mxu0 0.0
    %1217 = vmatprep.subr.mxu0 0.0
    %1218 = vmatpush1.xpose.msra.mxu0 0.0
    %1219 = vmatprep.subr.mxu0 0.0
    %1220 = vmatpush1.xpose.msra.mxu0 0.0
    %1221 = vmatprep.subr.mxu0 0.0
    %1222 = vmatpush1.xpose.msra.mxu0 0.0
    %1223 = vmatprep.subr.mxu0 0.0
    %1224 = vmatpush1.xpose.msra.mxu0 0.0
    %1225 = vmatprep.subr.mxu0 0.0
    %1226 = vmatpush1.xpose.msra.mxu0 0.0
    %1227 = vmatprep.subr.mxu0 0.0
    %1228 = vmatpush1.xpose.msra.mxu0 0.0
    %1229 = vmatprep.subr.mxu0 0.0
    %1230 = vmatpush1.xpose.msra.mxu0 0.0
    %1231 = vmatprep.subr.mxu0 0.0
    %1232 = vmatpush1.xpose.msra.mxu0 0.0
    %1233 = vmatprep.subr.mxu0 0.0
    %1234 = vmatpush1.xpose.msra.mxu0 0.0
    %1235 = vmatprep.subr.mxu0 0.0
    %1236 = vmatpush1.xpose.msra.mxu0 0.0
    %1237 = vmatprep.subr.mxu0 0.0
    %1238 = vmatpush1.xpose.msra.mxu0 %v1205
    %1239 = vmatprep.subr.mxu0 0.0
    %1240 = vmatpush2.xpose.msra.mxu0 0.0
    %1241 = vmatprep.subr.mxu0 0.0
    %1242 = vmatpush2.xpose.msra.mxu0 0.0
    %1243 = vmatprep.subr.mxu0 0.0
    %1244 = vmatpush2.xpose.msra.mxu0 0.0
    %1245 = vmatprep.subr.mxu0 0.0
    %1246 = vmatpush2.xpose.msra.mxu0 0.0
    %1247 = vmatprep.subr.mxu0 0.0
    %1248 = vmatpush2.xpose.msra.mxu0 0.0
    %1249 = vmatprep.subr.mxu0 0.0
    %1250 = vmatpush2.xpose.msra.mxu0 0.0
    %1251 = vmatprep.subr.mxu0 0.0
    %1252 = vmatpush2.xpose.msra.mxu0 0.0
    %1253 = vmatprep.subr.mxu0 0.0
    %1254 = vmatpush2.xpose.msra.mxu0 0.0
    %1255 = vmatprep.subr.mxu0 0.0
    %1256 = vmatpush2.xpose.msra.mxu0 0.0
    %1257 = vmatprep.subr.mxu0 0.0
    %1258 = vmatpush2.xpose.msra.mxu0 0.0
    %1259 = vmatprep.subr.mxu0 0.0
    %1260 = vmatpush2.xpose.msra.mxu0 0.0
    %1261 = vmatprep.subr.mxu0 0.0
    %1262 = vmatpush2.xpose.msra.mxu0 0.0
    %1263 = vmatprep.subr.mxu0 0.0
    %1264 = vmatpush2.xpose.msra.mxu0 0.0
    %1265 = vmatprep.subr.mxu0 0.0
    %1266 = vmatpush2.xpose.msra.mxu0 0.0
    %1267 = vmatprep.subr.mxu0 0.0
    %1268 = vmatpush2.xpose.msra.mxu0 0.0
    %1269 = vmatprep.subr.mxu0 0.0
    %1270 = vmatpush2.xpose.msra.mxu0 0.0
    %1271 = vmatprep.mubr.f32.mxu0 0.0
    %1272 = vmatmul.mubr.f32.gmra.mxu0 %v1203
    %v1273 = vpop.f32.mrf.mxu0
    %v1274 = vadd.f32 %v190, %v1273
    %v1275 = vpop.f32.mrf.mxu0
    %1276 = vdwg.mxu0
    %v1277 = vsel %vm194, %v1274, -inf
    %1278 = vmax.xlane.f32.xlu0 %v1277
    %v1279 = vpop.xlane.xlu0 %1278
    %v1280 = vsub.f32 %v1274, %v1279
    %v1281 = vmul.f32 %v1280, 1.442695
    %v1282 = vpow.pop %v1281
    %v1283 = vsel %vm194, %v1282, 0.0
    %1284 = vadd.xlane.f32.xlu0 %v1283
    %v1285 = vpop.xlane.xlu0 %1284
    %v1286 = vrcp.pop %v1285
    %v1287 = vmul.f32 %v1282, %v1286
    %1288 = vrot.lane.b32.xlu0 %v176, 48
    %v1289 = vpop.permute.xlu0 %1288
    %v1292 = vsel %vm194, %v1287, 0
    %1294 = vmatprep.subr.mxu0 0.0
    %1295 = vmatpush1.msra.mxu0 0.0
    %1296 = vmatprep.subr.mxu0 0.0
    %1297 = vmatpush1.msra.mxu0 0.0
    %1298 = vmatprep.subr.mxu0 0.0
    %1299 = vmatpush1.msra.mxu0 0.0
    %1300 = vmatprep.subr.mxu0 0.0
    %1301 = vmatpush1.msra.mxu0 0.0
    %1302 = vmatprep.subr.mxu0 0.0
    %1303 = vmatpush1.msra.mxu0 0.0
    %1304 = vmatprep.subr.mxu0 0.0
    %1305 = vmatpush1.msra.mxu0 0.0
    %1306 = vmatprep.subr.mxu0 0.0
    %1307 = vmatpush1.msra.mxu0 0.0
    %1308 = vmatprep.subr.mxu0 0.0
    %1309 = vmatpush1.msra.mxu0 0.0
    %1310 = vmatprep.subr.mxu0 0.0
    %1311 = vmatpush1.msra.mxu0 0.0
    %1312 = vmatprep.subr.mxu0 0.0
    %1313 = vmatpush1.msra.mxu0 0.0
    %1314 = vmatprep.subr.mxu0 0.0
    %1315 = vmatpush1.msra.mxu0 0.0
    %1316 = vmatprep.subr.mxu0 0.0
    %1317 = vmatpush1.msra.mxu0 0.0
    %1318 = vmatprep.subr.mxu0 0.0
    %1319 = vmatpush1.msra.mxu0 0.0
    %1320 = vmatprep.subr.mxu0 0.0
    %1321 = vmatpush1.msra.mxu0 0.0
    %1322 = vmatprep.subr.mxu0 0.0
    %1323 = vmatpush1.msra.mxu0 0.0
    %1324 = vmatprep.subr.mxu0 0.0
    %1325 = vmatpush1.msra.mxu0 %v1289
    %1326 = vmatprep.subr.mxu0 0.0
    %1327 = vmatpush2.msra.mxu0 0.0
    %1328 = vmatprep.subr.mxu0 0.0
    %1329 = vmatpush2.msra.mxu0 0.0
    %1330 = vmatprep.subr.mxu0 0.0
    %1331 = vmatpush2.msra.mxu0 0.0
    %1332 = vmatprep.subr.mxu0 0.0
    %1333 = vmatpush2.msra.mxu0 0.0
    %1334 = vmatprep.subr.mxu0 0.0
    %1335 = vmatpush2.msra.mxu0 0.0
    %1336 = vmatprep.subr.mxu0 0.0
    %1337 = vmatpush2.msra.mxu0 0.0
    %1338 = vmatprep.subr.mxu0 0.0
    %1339 = vmatpush2.msra.mxu0 0.0
    %1340 = vmatprep.subr.mxu0 0.0
    %1341 = vmatpush2.msra.mxu0 0.0
    %1342 = vmatprep.subr.mxu0 0.0
    %1343 = vmatpush2.msra.mxu0 0.0
    %1344 = vmatprep.subr.mxu0 0.0
    %1345 = vmatpush2.msra.mxu0 0.0
    %1346 = vmatprep.subr.mxu0 0.0
    %1347 = vmatpush2.msra.mxu0 0.0
    %1348 = vmatprep.subr.mxu0 0.0
    %1349 = vmatpush2.msra.mxu0 0.0
    %1350 = vmatprep.subr.mxu0 0.0
    %1351 = vmatpush2.msra.mxu0 0.0
    %1352 = vmatprep.subr.mxu0 0.0
    %1353 = vmatpush2.msra.mxu0 0.0
    %1354 = vmatprep.subr.mxu0 0.0
    %1355 = vmatpush2.msra.mxu0 0.0
    %1356 = vmatprep.subr.mxu0 0.0
    %1357 = vmatpush2.msra.mxu0 0.0
    %1358 = vmatprep.mubr.f32.mxu0 0.0
    %1359 = vmatmul.mubr.f32.gmra.mxu0 %v1292
    %v1360 = vpop.f32.mrf.mxu0
    %v1361 = vadd.f32 0.0, %v1360
    %v1362 = vpop.f32.mrf.mxu0
    %1363 = vdwg.mxu0
    %1364 = vrot.lane.b32.xlu0 %v180, 104
    %v1365 = vpop.permute.xlu0 %1364
    %1366 = vrot.lane.b32.xlu0 %v176, 72
    %v1367 = vpop.permute.xlu0 %1366
    %v1368 = vsel %vm194, %v1365, 0
    %v1370 = vsel %vm194, %v1367, 0
    %1372 = vmatprep.subr.mxu0 0.0
    %1373 = vmatpush1.xpose.msra.mxu0 0.0
    %1374 = vmatprep.subr.mxu0 0.0
    %1375 = vmatpush1.xpose.msra.mxu0 0.0
    %1376 = vmatprep.subr.mxu0 0.0
    %1377 = vmatpush1.xpose.msra.mxu0 0.0
    %1378 = vmatprep.subr.mxu0 0.0
    %1379 = vmatpush1.xpose.msra.mxu0 0.0
    %1380 = vmatprep.subr.mxu0 0.0
    %1381 = vmatpush1.xpose.msra.mxu0 0.0
    %1382 = vmatprep.subr.mxu0 0.0
    %1383 = vmatpush1.xpose.msra.mxu0 0.0
    %1384 = vmatprep.subr.mxu0 0.0
    %1385 = vmatpush1.xpose.msra.mxu0 0.0
    %1386 = vmatprep.subr.mxu0 0.0
    %1387 = vmatpush1.xpose.msra.mxu0 0.0
    %1388 = vmatprep.subr.mxu0 0.0
    %1389 = vmatpush1.xpose.msra.mxu0 0.0
    %1390 = vmatprep.subr.mxu0 0.0
    %1391 = vmatpush1.xpose.msra.mxu0 0.0
    %1392 = vmatprep.subr.mxu0 0.0
    %1393 = vmatpush1.xpose.msra.mxu0 0.0
    %1394 = vmatprep.subr.mxu0 0.0
    %1395 = vmatpush1.xpose.msra.mxu0 0.0
    %1396 = vmatprep.subr.mxu0 0.0
    %1397 = vmatpush1.xpose.msra.mxu0 0.0
    %1398 = vmatprep.subr.mxu0 0.0
    %1399 = vmatpush1.xpose.msra.mxu0 0.0
    %1400 = vmatprep.subr.mxu0 0.0
    %1401 = vmatpush1.xpose.msra.mxu0 0.0
    %1402 = vmatprep.subr.mxu0 0.0
    %1403 = vmatpush1.xpose.msra.mxu0 %v1370
    %1404 = vmatprep.subr.mxu0 0.0
    %1405 = vmatpush2.xpose.msra.mxu0 0.0
    %1406 = vmatprep.subr.mxu0 0.0
    %1407 = vmatpush2.xpose.msra.mxu0 0.0
    %1408 = vmatprep.subr.mxu0 0.0
    %1409 = vmatpush2.xpose.msra.mxu0 0.0
    %1410 = vmatprep.subr.mxu0 0.0
    %1411 = vmatpush2.xpose.msra.mxu0 0.0
    %1412 = vmatprep.subr.mxu0 0.0
    %1413 = vmatpush2.xpose.msra.mxu0 0.0
    %1414 = vmatprep.subr.mxu0 0.0
    %1415 = vmatpush2.xpose.msra.mxu0 0.0
    %1416 = vmatprep.subr.mxu0 0.0
    %1417 = vmatpush2.xpose.msra.mxu0 0.0
    %1418 = vmatprep.subr.mxu0 0.0
    %1419 = vmatpush2.xpose.msra.mxu0 0.0
    %1420 = vmatprep.subr.mxu0 0.0
    %1421 = vmatpush2.xpose.msra.mxu0 0.0
    %1422 = vmatprep.subr.mxu0 0.0
    %1423 = vmatpush2.xpose.msra.mxu0 0.0
    %1424 = vmatprep.subr.mxu0 0.0
    %1425 = vmatpush2.xpose.msra.mxu0 0.0
    %1426 = vmatprep.subr.mxu0 0.0
    %1427 = vmatpush2.xpose.msra.mxu0 0.0
    %1428 = vmatprep.subr.mxu0 0.0
    %1429 = vmatpush2.xpose.msra.mxu0 0.0
    %1430 = vmatprep.subr.mxu0 0.0
    %1431 = vmatpush2.xpose.msra.mxu0 0.0
    %1432 = vmatprep.subr.mxu0 0.0
    %1433 = vmatpush2.xpose.msra.mxu0 0.0
    %1434 = vmatprep.subr.mxu0 0.0
    %1435 = vmatpush2.xpose.msra.mxu0 0.0
    %1436 = vmatprep.mubr.f32.mxu0 0.0
    %1437 = vmatmul.mubr.f32.gmra.mxu0 %v1368
    %v1438 = vpop.f32.mrf.mxu0
    %v1439 = vadd.f32 %v190, %v1438
    %v1440 = vpop.f32.mrf.mxu0
    %1441 = vdwg.mxu0
    %v1442 = vsel %vm194, %v1439, -inf
    %1443 = vmax.xlane.f32.xlu0 %v1442
    %v1444 = vpop.xlane.xlu0 %1443
    %v1445 = vsub.f32 %v1439, %v1444
    %v1446 = vmul.f32 %v1445, 1.442695
    %v1447 = vpow.pop %v1446
    %v1448 = vsel %vm194, %v1447, 0.0
    %1449 = vadd.xlane.f32.xlu0 %v1448
    %v1450 = vpop.xlane.xlu0 %1449
    %v1451 = vrcp.pop %v1450
    %v1452 = vmul.f32 %v1447, %v1451
    %1453 = vrot.lane.b32.xlu0 %v176, 40
    %v1454 = vpop.permute.xlu0 %1453
    %v1457 = vsel %vm194, %v1452, 0
    %1459 = vmatprep.subr.mxu0 0.0
    %1460 = vmatpush1.msra.mxu0 0.0
    %1461 = vmatprep.subr.mxu0 0.0
    %1462 = vmatpush1.msra.mxu0 0.0
    %1463 = vmatprep.subr.mxu0 0.0
    %1464 = vmatpush1.msra.mxu0 0.0
    %1465 = vmatprep.subr.mxu0 0.0
    %1466 = vmatpush1.msra.mxu0 0.0
    %1467 = vmatprep.subr.mxu0 0.0
    %1468 = vmatpush1.msra.mxu0 0.0
    %1469 = vmatprep.subr.mxu0 0.0
    %1470 = vmatpush1.msra.mxu0 0.0
    %1471 = vmatprep.subr.mxu0 0.0
    %1472 = vmatpush1.msra.mxu0 0.0
    %1473 = vmatprep.subr.mxu0 0.0
    %1474 = vmatpush1.msra.mxu0 0.0
    %1475 = vmatprep.subr.mxu0 0.0
    %1476 = vmatpush1.msra.mxu0 0.0
    %1477 = vmatprep.subr.mxu0 0.0
    %1478 = vmatpush1.msra.mxu0 0.0
    %1479 = vmatprep.subr.mxu0 0.0
    %1480 = vmatpush1.msra.mxu0 0.0
    %1481 = vmatprep.subr.mxu0 0.0
    %1482 = vmatpush1.msra.mxu0 0.0
    %1483 = vmatprep.subr.mxu0 0.0
    %1484 = vmatpush1.msra.mxu0 0.0
    %1485 = vmatprep.subr.mxu0 0.0
    %1486 = vmatpush1.msra.mxu0 0.0
    %1487 = vmatprep.subr.mxu0 0.0
    %1488 = vmatpush1.msra.mxu0 0.0
    %1489 = vmatprep.subr.mxu0 0.0
    %1490 = vmatpush1.msra.mxu0 %v1454
    %1491 = vmatprep.subr.mxu0 0.0
    %1492 = vmatpush2.msra.mxu0 0.0
    %1493 = vmatprep.subr.mxu0 0.0
    %1494 = vmatpush2.msra.mxu0 0.0
    %1495 = vmatprep.subr.mxu0 0.0
    %1496 = vmatpush2.msra.mxu0 0.0
    %1497 = vmatprep.subr.mxu0 0.0
    %1498 = vmatpush2.msra.mxu0 0.0
    %1499 = vmatprep.subr.mxu0 0.0
    %1500 = vmatpush2.msra.mxu0 0.0
    %1501 = vmatprep.subr.mxu0 0.0
    %1502 = vmatpush2.msra.mxu0 0.0
    %1503 = vmatprep.subr.mxu0 0.0
    %1504 = vmatpush2.msra.mxu0 0.0
    %1505 = vmatprep.subr.mxu0 0.0
    %1506 = vmatpush2.msra.mxu0 0.0
    %1507 = vmatprep.subr.mxu0 0.0
    %1508 = vmatpush2.msra.mxu0 0.0
    %1509 = vmatprep.subr.mxu0 0.0
    %1510 = vmatpush2.msra.mxu0 0.0
    %1511 = vmatprep.subr.mxu0 0.0
    %1512 = vmatpush2.msra.mxu0 0.0
    %1513 = vmatprep.subr.mxu0 0.0
    %1514 = vmatpush2.msra.mxu0 0.0
    %1515 = vmatprep.subr.mxu0 0.0
    %1516 = vmatpush2.msra.mxu0 0.0
    %1517 = vmatprep.subr.mxu0 0.0
    %1518 = vmatpush2.msra.mxu0 0.0
    %1519 = vmatprep.subr.mxu0 0.0
    %1520 = vmatpush2.msra.mxu0 0.0
    %1521 = vmatprep.subr.mxu0 0.0
    %1522 = vmatpush2.msra.mxu0 0.0
    %1523 = vmatprep.mubr.f32.mxu0 0.0
    %1524 = vmatmul.mubr.f32.gmra.mxu0 %v1457
    %v1525 = vpop.f32.mrf.mxu0
    %v1526 = vadd.f32 0.0, %v1525
    %v1527 = vpop.f32.mrf.mxu0
    %1528 = vdwg.mxu0
    %1530 = vrot.lane.b32.xlu0 %v1196, 8
    %v1531 = vpop.permute.xlu0 %1530
    %1534 = vrot.lane.b32.xlu0 %v1361, 16
    %v1535 = vpop.permute.xlu0 %1534
    %1538 = vrot.lane.b32.xlu0 %v1526, 24
    %v1539 = vpop.permute.xlu0 %1538
    %v1541 = vsel %vm194, %v1031, %v1531
    %v1542 = vsel %vm865, %v1541, %v1535
    %v1543 = vsel %vm867, %v1542, %v1539
    %v1544 = vld [vmem:[%s6] sm:$0xff]
    %v1545 = vld [vmem:[%s6 + $0x8] sm:$0xff]
    %v1546 = vld [vmem:[%s6 + $0x10] sm:$0xff]
    %v1547 = vld [vmem:[%s6 + $0x18] sm:$0xff]
    %v1548 = vld [vmem:[%s7] sm:$0x1]
    %v1550 = vlaneseq
    %v1551 = vshrl.u32 %v1550, 7
    %v1552 = vsub.s32 0, %v1551
    %v1553 = vrot.slane %v1548, %v1552
    %v1556 = vsel %vm97, %v868, 0
    %v1559 = vsel %vm97, %v1543, 0
    %1561 = vmatprep.subr.mxu0 0.0
    %1562 = vmatpush1.msra.mxu0 0.0
    %1563 = vmatprep.subr.mxu0 0.0
    %1564 = vmatpush1.msra.mxu0 0.0
    %1565 = vmatprep.subr.mxu0 0.0
    %1566 = vmatpush1.msra.mxu0 0.0
    %1567 = vmatprep.subr.mxu0 0.0
    %1568 = vmatpush1.msra.mxu0 0.0
    %1569 = vmatprep.subr.mxu0 0.0
    %1570 = vmatpush1.msra.mxu0 0.0
    %1571 = vmatprep.subr.mxu0 0.0
    %1572 = vmatpush1.msra.mxu0 0.0
    %1573 = vmatprep.subr.mxu0 0.0
    %1574 = vmatpush1.msra.mxu0 0.0
    %1575 = vmatprep.subr.mxu0 0.0
    %1576 = vmatpush1.msra.mxu0 0.0
    %1577 = vmatprep.subr.mxu0 0.0
    %1578 = vmatpush1.msra.mxu0 0.0
    %1579 = vmatprep.subr.mxu0 0.0
    %1580 = vmatpush1.msra.mxu0 0.0
    %1581 = vmatprep.subr.mxu0 0.0
    %1582 = vmatpush1.msra.mxu0 0.0
    %1583 = vmatprep.subr.mxu0 0.0
    %1584 = vmatpush1.msra.mxu0 0.0
    %1585 = vmatprep.subr.mxu0 0.0
    %1586 = vmatpush1.msra.mxu0 %v1547
    %1587 = vmatprep.subr.mxu0 0.0
    %1588 = vmatpush1.msra.mxu0 %v1546
    %1589 = vmatprep.subr.mxu0 0.0
    %1590 = vmatpush1.msra.mxu0 %v1545
    %1591 = vmatprep.subr.mxu0 0.0
    %1592 = vmatpush1.msra.mxu0 %v1544
    %1593 = vmatprep.subr.mxu0 0.0
    %1594 = vmatpush2.msra.mxu0 0.0
    %1595 = vmatprep.subr.mxu0 0.0
    %1596 = vmatpush2.msra.mxu0 0.0
    %1597 = vmatprep.subr.mxu0 0.0
    %1598 = vmatpush2.msra.mxu0 0.0
    %1599 = vmatprep.subr.mxu0 0.0
    %1600 = vmatpush2.msra.mxu0 0.0
    %1601 = vmatprep.subr.mxu0 0.0
    %1602 = vmatpush2.msra.mxu0 0.0
    %1603 = vmatprep.subr.mxu0 0.0
    %1604 = vmatpush2.msra.mxu0 0.0
    %1605 = vmatprep.subr.mxu0 0.0
    %1606 = vmatpush2.msra.mxu0 0.0
    %1607 = vmatprep.subr.mxu0 0.0
    %1608 = vmatpush2.msra.mxu0 0.0
    %1609 = vmatprep.subr.mxu0 0.0
    %1610 = vmatpush2.msra.mxu0 0.0
    %1611 = vmatprep.subr.mxu0 0.0
    %1612 = vmatpush2.msra.mxu0 0.0
    %1613 = vmatprep.subr.mxu0 0.0
    %1614 = vmatpush2.msra.mxu0 0.0
    %1615 = vmatprep.subr.mxu0 0.0
    %1616 = vmatpush2.msra.mxu0 0.0
    %1617 = vmatprep.subr.mxu0 0.0
    %1618 = vmatpush2.msra.mxu0 0.0
    %1619 = vmatprep.subr.mxu0 0.0
    %1620 = vmatpush2.msra.mxu0 0.0
    %1621 = vmatprep.subr.mxu0 0.0
    %1622 = vmatpush2.msra.mxu0 0.0
    %1623 = vmatprep.subr.mxu0 0.0
    %1624 = vmatpush2.msra.mxu0 0.0
    %1625 = vmatprep.mubr.f32.mxu0 0.0
    %1626 = vmatmul.mubr.f32.gmra.mxu0 %v1556
    %v1627 = vpop.f32.mrf.mxu0
    %v1628 = vadd.f32 %v1553, %v1627
    %v1629 = vpop.f32.mrf.mxu0
    %1630 = vmatprep.mubr.f32.mxu0 0.0
    %1631 = vmatmul.mubr.f32.gmra.mxu0 %v1559
    %v1632 = vpop.f32.mrf.mxu0
    %v1633 = vadd.f32 %v1553, %v1632
    %v1634 = vpop.f32.mrf.mxu0
    %1635 = vdwg.mxu0
    %v1636 = vadd.f32 %v66, %v1628
    %v1637 = vadd.f32 %v67, %v1633
    %v1638 = vld [vmem:[%s12] sm:$0x1]
    %v1639 = vld [vmem:[%s13] sm:$0x1]
    %v1640 = vsel %vm97, %v1636, 0.0
    %1641 = vadd.xlane.f32.xlu0 %v1640
    %v1642 = vpop.xlane.xlu0 %1641
    %v1643 = vsel %vm97, %v1637, 0.0
    %1644 = vadd.xlane.f32.xlu0 %v1643
    %v1645 = vpop.xlane.xlu0 %1644
    %v1646 = vrcp.pop 32.0
    %v1647 = vmul.f32 %v1642, %v1646
    %v1648 = vmul.f32 %v1645, %v1646
    %v1649 = vsub.f32 %v1636, %v1647
    %v1650 = vsub.f32 %v1637, %v1648
    %v1651 = vmul.f32 %v1649, %v1649
    %v1652 = vmul.f32 %v1650, %v1650
    %v1653 = vsel %vm97, %v1651, 0.0
    %1654 = vadd.xlane.f32.xlu0 %v1653
    %v1655 = vpop.xlane.xlu0 %1654
    %v1656 = vsel %vm97, %v1652, 0.0
    %1657 = vadd.xlane.f32.xlu0 %v1656
    %v1658 = vpop.xlane.xlu0 %1657
    %v1659 = vmul.f32 %v1655, %v1646
    %v1660 = vmul.f32 %v1658, %v1646
    %v1661 = vadd.f32 %v1659, 1e-05
    %v1662 = vadd.f32 %v1660, 1e-05
    %v1663 = vrsqrt.pop %v1661
    %v1664 = vrsqrt.pop %v1662
    %v1665 = vmul.f32 %v1649, %v1663
    %v1666 = vmul.f32 %v1650, %v1664
    %v1667 = vlaneseq
    %v1668 = vshrl.u32 %v1667, 7
    %v1669 = vsub.s32 0, %v1668
    %v1670 = vrot.slane %v1638, %v1669
    %v1671 = vmul.f32 %v1665, %v1670
    %v1672 = vmul.f32 %v1666, %v1670
    %v1673 = vlaneseq
    %v1674 = vshrl.u32 %v1673, 7
    %v1675 = vsub.s32 0, %v1674
    %v1676 = vrot.slane %v1639, %v1675
    %v1677 = vadd.f32 %v1671, %v1676
    %v1678 = vadd.f32 %v1672, %v1676
    %v1679 = vld [vmem:[%s8] sm:$0xff]
    %v1680 = vld [vmem:[%s8 + $0x8] sm:$0xff]
    %v1681 = vld [vmem:[%s8 + $0x10] sm:$0xff]
    %v1682 = vld [vmem:[%s8 + $0x18] sm:$0xff]
    %v1683 = vld [vmem:[%s9] sm:$0x1]
    %v1685 = vlaneseq
    %v1686 = vshrl.u32 %v1685, 7
    %v1687 = vsub.s32 0, %v1686
    %v1688 = vrot.slane %v1683, %v1687
    %v1691 = vsel %vm97, %v1677, 0
    %v1694 = vsel %vm97, %v1678, 0
    %1696 = vmatprep.subr.mxu0 0.0
    %1697 = vmatpush1.msra.mxu0 0.0
    %1698 = vmatprep.subr.mxu0 0.0
    %1699 = vmatpush1.msra.mxu0 0.0
    %1700 = vmatprep.subr.mxu0 0.0
    %1701 = vmatpush1.msra.mxu0 0.0
    %1702 = vmatprep.subr.mxu0 0.0
    %1703 = vmatpush1.msra.mxu0 0.0
    %1704 = vmatprep.subr.mxu0 0.0
    %1705 = vmatpush1.msra.mxu0 0.0
    %1706 = vmatprep.subr.mxu0 0.0
    %1707 = vmatpush1.msra.mxu0 0.0
    %1708 = vmatprep.subr.mxu0 0.0
    %1709 = vmatpush1.msra.mxu0 0.0
    %1710 = vmatprep.subr.mxu0 0.0
    %1711 = vmatpush1.msra.mxu0 0.0
    %1712 = vmatprep.subr.mxu0 0.0
    %1713 = vmatpush1.msra.mxu0 0.0
    %1714 = vmatprep.subr.mxu0 0.0
    %1715 = vmatpush1.msra.mxu0 0.0
    %1716 = vmatprep.subr.mxu0 0.0
    %1717 = vmatpush1.msra.mxu0 0.0
    %1718 = vmatprep.subr.mxu0 0.0
    %1719 = vmatpush1.msra.mxu0 0.0
    %1720 = vmatprep.subr.mxu0 0.0
    %1721 = vmatpush1.msra.mxu0 %v1682
    %1722 = vmatprep.subr.mxu0 0.0
    %1723 = vmatpush1.msra.mxu0 %v1681
    %1724 = vmatprep.subr.mxu0 0.0
    %1725 = vmatpush1.msra.mxu0 %v1680
    %1726 = vmatprep.subr.mxu0 0.0
    %1727 = vmatpush1.msra.mxu0 %v1679
    %1728 = vmatprep.subr.mxu0 0.0
    %1729 = vmatpush2.msra.mxu0 0.0
    %1730 = vmatprep.subr.mxu0 0.0
    %1731 = vmatpush2.msra.mxu0 0.0
    %1732 = vmatprep.subr.mxu0 0.0
    %1733 = vmatpush2.msra.mxu0 0.0
    %1734 = vmatprep.subr.mxu0 0.0
    %1735 = vmatpush2.msra.mxu0 0.0
    %1736 = vmatprep.subr.mxu0 0.0
    %1737 = vmatpush2.msra.mxu0 0.0
    %1738 = vmatprep.subr.mxu0 0.0
    %1739 = vmatpush2.msra.mxu0 0.0
    %1740 = vmatprep.subr.mxu0 0.0
    %1741 = vmatpush2.msra.mxu0 0.0
    %1742 = vmatprep.subr.mxu0 0.0
    %1743 = vmatpush2.msra.mxu0 0.0
    %1744 = vmatprep.subr.mxu0 0.0
    %1745 = vmatpush2.msra.mxu0 0.0
    %1746 = vmatprep.subr.mxu0 0.0
    %1747 = vmatpush2.msra.mxu0 0.0
    %1748 = vmatprep.subr.mxu0 0.0
    %1749 = vmatpush2.msra.mxu0 0.0
    %1750 = vmatprep.subr.mxu0 0.0
    %1751 = vmatpush2.msra.mxu0 0.0
    %1752 = vmatprep.subr.mxu0 0.0
    %1753 = vmatpush2.msra.mxu0 0.0
    %1754 = vmatprep.subr.mxu0 0.0
    %1755 = vmatpush2.msra.mxu0 0.0
    %1756 = vmatprep.subr.mxu0 0.0
    %1757 = vmatpush2.msra.mxu0 0.0
    %1758 = vmatprep.subr.mxu0 0.0
    %1759 = vmatpush2.msra.mxu0 0.0
    %1760 = vmatprep.mubr.f32.mxu0 0.0
    %1761 = vmatmul.mubr.f32.gmra.mxu0 %v1691
    %v1762 = vpop.f32.mrf.mxu0
    %v1763 = vadd.f32 %v1688, %v1762
    %v1764 = vpop.f32.mrf.mxu0
    %1765 = vmatprep.mubr.f32.mxu0 0.0
    %1766 = vmatmul.mubr.f32.gmra.mxu0 %v1694
    %v1767 = vpop.f32.mrf.mxu0
    %v1768 = vadd.f32 %v1688, %v1767
    %v1769 = vpop.f32.mrf.mxu0
    %1770 = vdwg.mxu0
    %v1771 = vmul.f32 %v1763, 0.35355338
    %v1772 = vmul.f32 %v1768, 0.35355338
    %1777 = vrot.lane.b32.xlu0 %v1679, 96
    %v1778 = vpop.permute.xlu0 %1777
    %1779 = vrot.lane.b32.xlu0 %v1680, 96
    %v1780 = vpop.permute.xlu0 %1779
    %1781 = vrot.lane.b32.xlu0 %v1681, 96
    %v1782 = vpop.permute.xlu0 %1781
    %1783 = vrot.lane.b32.xlu0 %v1682, 96
    %v1784 = vpop.permute.xlu0 %1783
    %1789 = vrot.lane.b32.xlu0 %v1688, 96
    %v1790 = vpop.permute.xlu0 %1789
    %v1793 = vsel %vm97, %v68, 0
    %v1796 = vsel %vm97, %v69, 0
    %v1799 = vsel %vm97, %v70, 0
    %v1802 = vsel %vm97, %v71, 0
    %v1805 = vsel %vm97, %v72, 0
    %v1808 = vsel %vm97, %v73, 0
    %v1811 = vsel %vm97, %v74, 0
    %v1814 = vsel %vm97, %v75, 0
    %v1817 = vsel %vm97, %v76, 0
    %v1820 = vsel %vm97, %v77, 0
    %v1823 = vsel %vm97, %v78, 0
    %v1826 = vsel %vm97, %v79, 0
    %v1829 = vsel %vm97, %v80, 0
    %v1832 = vsel %vm97, %v81, 0
    %v1835 = vsel %vm97, %v82, 0
    %v1838 = vsel %vm97, %v83, 0
    %1840 = vmatprep.subr.mxu0 0.0
    %1841 = vmatpush1.msra.mxu0 0.0
    %1842 = vmatprep.subr.mxu0 0.0
    %1843 = vmatpush1.msra.mxu0 0.0
    %1844 = vmatprep.subr.mxu0 0.0
    %1845 = vmatpush1.msra.mxu0 0.0
    %1846 = vmatprep.subr.mxu0 0.0
    %1847 = vmatpush1.msra.mxu0 0.0
    %1848 = vmatprep.subr.mxu0 0.0
    %1849 = vmatpush1.msra.mxu0 0.0
    %1850 = vmatprep.subr.mxu0 0.0
    %1851 = vmatpush1.msra.mxu0 0.0
    %1852 = vmatprep.subr.mxu0 0.0
    %1853 = vmatpush1.msra.mxu0 0.0
    %1854 = vmatprep.subr.mxu0 0.0
    %1855 = vmatpush1.msra.mxu0 0.0
    %1856 = vmatprep.subr.mxu0 0.0
    %1857 = vmatpush1.msra.mxu0 0.0
    %1858 = vmatprep.subr.mxu0 0.0
    %1859 = vmatpush1.msra.mxu0 0.0
    %1860 = vmatprep.subr.mxu0 0.0
    %1861 = vmatpush1.msra.mxu0 0.0
    %1862 = vmatprep.subr.mxu0 0.0
    %1863 = vmatpush1.msra.mxu0 0.0
    %1864 = vmatprep.subr.mxu0 0.0
    %1865 = vmatpush1.msra.mxu0 %v1784
    %1866 = vmatprep.subr.mxu0 0.0
    %1867 = vmatpush1.msra.mxu0 %v1782
    %1868 = vmatprep.subr.mxu0 0.0
    %1869 = vmatpush1.msra.mxu0 %v1780
    %1870 = vmatprep.subr.mxu0 0.0
    %1871 = vmatpush1.msra.mxu0 %v1778
    %1872 = vmatprep.subr.mxu0 0.0
    %1873 = vmatpush2.msra.mxu0 0.0
    %1874 = vmatprep.subr.mxu0 0.0
    %1875 = vmatpush2.msra.mxu0 0.0
    %1876 = vmatprep.subr.mxu0 0.0
    %1877 = vmatpush2.msra.mxu0 0.0
    %1878 = vmatprep.subr.mxu0 0.0
    %1879 = vmatpush2.msra.mxu0 0.0
    %1880 = vmatprep.subr.mxu0 0.0
    %1881 = vmatpush2.msra.mxu0 0.0
    %1882 = vmatprep.subr.mxu0 0.0
    %1883 = vmatpush2.msra.mxu0 0.0
    %1884 = vmatprep.subr.mxu0 0.0
    %1885 = vmatpush2.msra.mxu0 0.0
    %1886 = vmatprep.subr.mxu0 0.0
    %1887 = vmatpush2.msra.mxu0 0.0
    %1888 = vmatprep.subr.mxu0 0.0
    %1889 = vmatpush2.msra.mxu0 0.0
    %1890 = vmatprep.subr.mxu0 0.0
    %1891 = vmatpush2.msra.mxu0 0.0
    %1892 = vmatprep.subr.mxu0 0.0
    %1893 = vmatpush2.msra.mxu0 0.0
    %1894 = vmatprep.subr.mxu0 0.0
    %1895 = vmatpush2.msra.mxu0 0.0
    %1896 = vmatprep.subr.mxu0 0.0
    %1897 = vmatpush2.msra.mxu0 0.0
    %1898 = vmatprep.subr.mxu0 0.0
    %1899 = vmatpush2.msra.mxu0 0.0
    %1900 = vmatprep.subr.mxu0 0.0
    %1901 = vmatpush2.msra.mxu0 0.0
    %1902 = vmatprep.subr.mxu0 0.0
    %1903 = vmatpush2.msra.mxu0 0.0
    %1904 = vmatprep.mubr.f32.mxu0 0.0
    %1905 = vmatmul.mubr.f32.gmra.mxu0 %v1793
    %v1906 = vpop.f32.mrf.mxu0
    %v1907 = vadd.f32 %v1790, %v1906
    %v1908 = vpop.f32.mrf.mxu0
    %1909 = vmatprep.mubr.f32.mxu0 0.0
    %1910 = vmatmul.mubr.f32.gmra.mxu0 %v1796
    %v1911 = vpop.f32.mrf.mxu0
    %v1912 = vadd.f32 %v1790, %v1911
    %v1913 = vpop.f32.mrf.mxu0
    %1914 = vmatprep.mubr.f32.mxu0 0.0
    %1915 = vmatmul.mubr.f32.gmra.mxu0 %v1799
    %v1916 = vpop.f32.mrf.mxu0
    %v1917 = vadd.f32 %v1790, %v1916
    %v1918 = vpop.f32.mrf.mxu0
    %1919 = vmatprep.mubr.f32.mxu0 0.0
    %1920 = vmatmul.mubr.f32.gmra.mxu0 %v1802
    %v1921 = vpop.f32.mrf.mxu0
    %v1922 = vadd.f32 %v1790, %v1921
    %v1923 = vpop.f32.mrf.mxu0
    %1924 = vmatprep.mubr.f32.mxu0 0.0
    %1925 = vmatmul.mubr.f32.gmra.mxu0 %v1805
    %v1926 = vpop.f32.mrf.mxu0
    %v1927 = vadd.f32 %v1790, %v1926
    %v1928 = vpop.f32.mrf.mxu0
    %1929 = vmatprep.mubr.f32.mxu0 0.0
    %1930 = vmatmul.mubr.f32.gmra.mxu0 %v1808
    %v1931 = vpop.f32.mrf.mxu0
    %v1932 = vadd.f32 %v1790, %v1931
    %v1933 = vpop.f32.mrf.mxu0
    %1934 = vmatprep.mubr.f32.mxu0 0.0
    %1935 = vmatmul.mubr.f32.gmra.mxu0 %v1811
    %v1936 = vpop.f32.mrf.mxu0
    %v1937 = vadd.f32 %v1790, %v1936
    %v1938 = vpop.f32.mrf.mxu0
    %1939 = vmatprep.mubr.f32.mxu0 0.0
    %1940 = vmatmul.mubr.f32.gmra.mxu0 %v1814
    %v1941 = vpop.f32.mrf.mxu0
    %v1942 = vadd.f32 %v1790, %v1941
    %v1943 = vpop.f32.mrf.mxu0
    %1944 = vmatprep.mubr.f32.mxu0 0.0
    %1945 = vmatmul.mubr.f32.gmra.mxu0 %v1817
    %v1946 = vpop.f32.mrf.mxu0
    %v1947 = vadd.f32 %v1790, %v1946
    %v1948 = vpop.f32.mrf.mxu0
    %1949 = vmatprep.mubr.f32.mxu0 0.0
    %1950 = vmatmul.mubr.f32.gmra.mxu0 %v1820
    %v1951 = vpop.f32.mrf.mxu0
    %v1952 = vadd.f32 %v1790, %v1951
    %v1953 = vpop.f32.mrf.mxu0
    %1954 = vmatprep.mubr.f32.mxu0 0.0
    %1955 = vmatmul.mubr.f32.gmra.mxu0 %v1823
    %v1956 = vpop.f32.mrf.mxu0
    %v1957 = vadd.f32 %v1790, %v1956
    %v1958 = vpop.f32.mrf.mxu0
    %1959 = vmatprep.mubr.f32.mxu0 0.0
    %1960 = vmatmul.mubr.f32.gmra.mxu0 %v1826
    %v1961 = vpop.f32.mrf.mxu0
    %v1962 = vadd.f32 %v1790, %v1961
    %v1963 = vpop.f32.mrf.mxu0
    %1964 = vmatprep.mubr.f32.mxu0 0.0
    %1965 = vmatmul.mubr.f32.gmra.mxu0 %v1829
    %v1966 = vpop.f32.mrf.mxu0
    %v1967 = vadd.f32 %v1790, %v1966
    %v1968 = vpop.f32.mrf.mxu0
    %1969 = vmatprep.mubr.f32.mxu0 0.0
    %1970 = vmatmul.mubr.f32.gmra.mxu0 %v1832
    %v1971 = vpop.f32.mrf.mxu0
    %v1972 = vadd.f32 %v1790, %v1971
    %v1973 = vpop.f32.mrf.mxu0
    %1974 = vmatprep.mubr.f32.mxu0 0.0
    %1975 = vmatmul.mubr.f32.gmra.mxu0 %v1835
    %v1976 = vpop.f32.mrf.mxu0
    %v1977 = vadd.f32 %v1790, %v1976
    %v1978 = vpop.f32.mrf.mxu0
    %1979 = vmatprep.mubr.f32.mxu0 0.0
    %1980 = vmatmul.mubr.f32.gmra.mxu0 %v1838
    %v1981 = vpop.f32.mrf.mxu0
    %v1982 = vadd.f32 %v1790, %v1981
    %v1983 = vpop.f32.mrf.mxu0
    %1984 = vdwg.mxu0
    %v1986 = vsel %vm194, %v1771, 0
    %v1989 = vsel %vm194, %v1907, 0
    %v1992 = vsel %vm194, %v1912, 0
    %v1995 = vsel %vm194, %v1917, 0
    %v1998 = vsel %vm194, %v1922, 0
    %v2001 = vsel %vm194, %v1927, 0
    %v2004 = vsel %vm194, %v1932, 0
    %v2007 = vsel %vm194, %v1937, 0
    %v2010 = vsel %vm194, %v1942, 0
    %2012 = vmatprep.subr.mxu0 0.0
    %2013 = vmatpush1.xpose.msra.mxu0 0.0
    %2014 = vmatprep.subr.mxu0 0.0
    %2015 = vmatpush1.xpose.msra.mxu0 0.0
    %2016 = vmatprep.subr.mxu0 0.0
    %2017 = vmatpush1.xpose.msra.mxu0 0.0
    %2018 = vmatprep.subr.mxu0 0.0
    %2019 = vmatpush1.xpose.msra.mxu0 0.0
    %2020 = vmatprep.subr.mxu0 0.0
    %2021 = vmatpush1.xpose.msra.mxu0 0.0
    %2022 = vmatprep.subr.mxu0 0.0
    %2023 = vmatpush1.xpose.msra.mxu0 0.0
    %2024 = vmatprep.subr.mxu0 0.0
    %2025 = vmatpush1.xpose.msra.mxu0 0.0
    %2026 = vmatprep.subr.mxu0 0.0
    %2027 = vmatpush1.xpose.msra.mxu0 0.0
    %2028 = vmatprep.subr.mxu0 0.0
    %2029 = vmatpush1.xpose.msra.mxu0 %v2010
    %2030 = vmatprep.subr.mxu0 0.0
    %2031 = vmatpush1.xpose.msra.mxu0 %v2007
    %2032 = vmatprep.subr.mxu0 0.0
    %2033 = vmatpush1.xpose.msra.mxu0 %v2004
    %2034 = vmatprep.subr.mxu0 0.0
    %2035 = vmatpush1.xpose.msra.mxu0 %v2001
    %2036 = vmatprep.subr.mxu0 0.0
    %2037 = vmatpush1.xpose.msra.mxu0 %v1998
    %2038 = vmatprep.subr.mxu0 0.0
    %2039 = vmatpush1.xpose.msra.mxu0 %v1995
    %2040 = vmatprep.subr.mxu0 0.0
    %2041 = vmatpush1.xpose.msra.mxu0 %v1992
    %2042 = vmatprep.subr.mxu0 0.0
    %2043 = vmatpush1.xpose.msra.mxu0 %v1989
    %2044 = vmatprep.subr.mxu0 0.0
    %2045 = vmatpush2.xpose.msra.mxu0 0.0
    %2046 = vmatprep.subr.mxu0 0.0
    %2047 = vmatpush2.xpose.msra.mxu0 0.0
    %2048 = vmatprep.subr.mxu0 0.0
    %2049 = vmatpush2.xpose.msra.mxu0 0.0
    %2050 = vmatprep.subr.mxu0 0.0
    %2051 = vmatpush2.xpose.msra.mxu0 0.0
    %2052 = vmatprep.subr.mxu0 0.0
    %2053 = vmatpush2.xpose.msra.mxu0 0.0
    %2054 = vmatprep.subr.mxu0 0.0
    %2055 = vmatpush2.xpose.msra.mxu0 0.0
    %2056 = vmatprep.subr.mxu0 0.0
    %2057 = vmatpush2.xpose.msra.mxu0 0.0
    %2058 = vmatprep.subr.mxu0 0.0
    %2059 = vmatpush2.xpose.msra.mxu0 0.0
    %2060 = vmatprep.subr.mxu0 0.0
    %2061 = vmatpush2.xpose.msra.mxu0 0.0
    %2062 = vmatprep.subr.mxu0 0.0
    %2063 = vmatpush2.xpose.msra.mxu0 0.0
    %2064 = vmatprep.subr.mxu0 0.0
    %2065 = vmatpush2.xpose.msra.mxu0 0.0
    %2066 = vmatprep.subr.mxu0 0.0
    %2067 = vmatpush2.xpose.msra.mxu0 0.0
    %2068 = vmatprep.subr.mxu0 0.0
    %2069 = vmatpush2.xpose.msra.mxu0 0.0
    %2070 = vmatprep.subr.mxu0 0.0
    %2071 = vmatpush2.xpose.msra.mxu0 0.0
    %2072 = vmatprep.subr.mxu0 0.0
    %2073 = vmatpush2.xpose.msra.mxu0 0.0
    %2074 = vmatprep.subr.mxu0 0.0
    %2075 = vmatpush2.xpose.msra.mxu0 0.0
    %2076 = vmatprep.mubr.f32.mxu0 0.0
    %2077 = vmatmul.mubr.f32.gmra.mxu0 %v1986
    %v2078 = vpop.f32.mrf.mxu0
    %v2079 = vadd.f32 0.0, %v2078
    %v2080 = vpop.f32.mrf.mxu0
    %2081 = vdwg.mxu0
    %vm2082 = vcmask 523264
    %v2083 = vsel %vm2082, %v2079, -inf
    %2084 = vmax.xlane.f32.xlu0 %v2083
    %v2085 = vpop.xlane.xlu0 %2084
    %v2086 = vsub.f32 %v2079, %v2085
    %v2087 = vmul.f32 %v2086, 1.442695
    %v2088 = vpow.pop %v2087
    %v2089 = vsel %vm2082, %v2088, 0.0
    %2090 = vadd.xlane.f32.xlu0 %v2089
    %v2091 = vpop.xlane.xlu0 %2090
    %v2092 = vrcp.pop %v2091
    %v2093 = vmul.f32 %v2088, %v2092
    %2094 = vrot.lane.b32.xlu0 %v1907, 96
    %v2095 = vpop.permute.xlu0 %2094
    %2096 = vrot.lane.b32.xlu0 %v1912, 96
    %v2097 = vpop.permute.xlu0 %2096
    %2098 = vrot.lane.b32.xlu0 %v1917, 96
    %v2099 = vpop.permute.xlu0 %2098
    %2100 = vrot.lane.b32.xlu0 %v1922, 96
    %v2101 = vpop.permute.xlu0 %2100
    %2102 = vrot.lane.b32.xlu0 %v1927, 96
    %v2103 = vpop.permute.xlu0 %2102
    %2104 = vrot.lane.b32.xlu0 %v1932, 96
    %v2105 = vpop.permute.xlu0 %2104
    %2106 = vrot.lane.b32.xlu0 %v1937, 96
    %v2107 = vpop.permute.xlu0 %2106
    %2108 = vrot.lane.b32.xlu0 %v1942, 96
    %v2109 = vpop.permute.xlu0 %2108
    %v2119 = vsel %vm2082, %v2093, 0
    %2121 = vmatprep.subr.mxu0 0.0
    %2122 = vmatpush1.msra.mxu0 0.0
    %2123 = vmatprep.subr.mxu0 0.0
    %2124 = vmatpush1.msra.mxu0 0.0
    %2125 = vmatprep.subr.mxu0 0.0
    %2126 = vmatpush1.msra.mxu0 0.0
    %2127 = vmatprep.subr.mxu0 0.0
    %2128 = vmatpush1.msra.mxu0 0.0
    %2129 = vmatprep.subr.mxu0 0.0
    %2130 = vmatpush1.msra.mxu0 0.0
    %2131 = vmatprep.subr.mxu0 0.0
    %2132 = vmatpush1.msra.mxu0 0.0
    %2133 = vmatprep.subr.mxu0 0.0
    %2134 = vmatpush1.msra.mxu0 0.0
    %2135 = vmatprep.subr.mxu0 0.0
    %2136 = vmatpush1.msra.mxu0 0.0
    %2137 = vmatprep.subr.mxu0 0.0
    %2138 = vmatpush1.msra.mxu0 %v2109
    %2139 = vmatprep.subr.mxu0 0.0
    %2140 = vmatpush1.msra.mxu0 %v2107
    %2141 = vmatprep.subr.mxu0 0.0
    %2142 = vmatpush1.msra.mxu0 %v2105
    %2143 = vmatprep.subr.mxu0 0.0
    %2144 = vmatpush1.msra.mxu0 %v2103
    %2145 = vmatprep.subr.mxu0 0.0
    %2146 = vmatpush1.msra.mxu0 %v2101
    %2147 = vmatprep.subr.mxu0 0.0
    %2148 = vmatpush1.msra.mxu0 %v2099
    %2149 = vmatprep.subr.mxu0 0.0
    %2150 = vmatpush1.msra.mxu0 %v2097
    %2151 = vmatprep.subr.mxu0 0.0
    %2152 = vmatpush1.msra.mxu0 %v2095
    %2153 = vmatprep.subr.mxu0 0.0
    %2154 = vmatpush2.msra.mxu0 0.0
    %2155 = vmatprep.subr.mxu0 0.0
    %2156 = vmatpush2.msra.mxu0 0.0
    %2157 = vmatprep.subr.mxu0 0.0
    %2158 = vmatpush2.msra.mxu0 0.0
    %2159 = vmatprep.subr.mxu0 0.0
    %2160 = vmatpush2.msra.mxu0 0.0
    %2161 = vmatprep.subr.mxu0 0.0
    %2162 = vmatpush2.msra.mxu0 0.0
    %2163 = vmatprep.subr.mxu0 0.0
    %2164 = vmatpush2.msra.mxu0 0.0
    %2165 = vmatprep.subr.mxu0 0.0
    %2166 = vmatpush2.msra.mxu0 0.0
    %2167 = vmatprep.subr.mxu0 0.0
    %2168 = vmatpush2.msra.mxu0 0.0
    %2169 = vmatprep.subr.mxu0 0.0
    %2170 = vmatpush2.msra.mxu0 0.0
    %2171 = vmatprep.subr.mxu0 0.0
    %2172 = vmatpush2.msra.mxu0 0.0
    %2173 = vmatprep.subr.mxu0 0.0
    %2174 = vmatpush2.msra.mxu0 0.0
    %2175 = vmatprep.subr.mxu0 0.0
    %2176 = vmatpush2.msra.mxu0 0.0
    %2177 = vmatprep.subr.mxu0 0.0
    %2178 = vmatpush2.msra.mxu0 0.0
    %2179 = vmatprep.subr.mxu0 0.0
    %2180 = vmatpush2.msra.mxu0 0.0
    %2181 = vmatprep.subr.mxu0 0.0
    %2182 = vmatpush2.msra.mxu0 0.0
    %2183 = vmatprep.subr.mxu0 0.0
    %2184 = vmatpush2.msra.mxu0 0.0
    %2185 = vmatprep.mubr.f32.mxu0 0.0
    %2186 = vmatmul.mubr.f32.gmra.mxu0 %v2119
    %v2187 = vpop.f32.mrf.mxu0
    %v2188 = vadd.f32 0.0, %v2187
    %v2189 = vpop.f32.mrf.mxu0
    %2190 = vdwg.mxu0
    %2191 = vrot.lane.b32.xlu0 %v1771, 120
    %v2192 = vpop.permute.xlu0 %2191
    %2193 = vrot.lane.b32.xlu0 %v1907, 120
    %v2194 = vpop.permute.xlu0 %2193
    %2195 = vrot.lane.b32.xlu0 %v1912, 120
    %v2196 = vpop.permute.xlu0 %2195
    %2197 = vrot.lane.b32.xlu0 %v1917, 120
    %v2198 = vpop.permute.xlu0 %2197
    %2199 = vrot.lane.b32.xlu0 %v1922, 120
    %v2200 = vpop.permute.xlu0 %2199
    %2201 = vrot.lane.b32.xlu0 %v1927, 120
    %v2202 = vpop.permute.xlu0 %2201
    %2203 = vrot.lane.b32.xlu0 %v1932, 120
    %v2204 = vpop.permute.xlu0 %2203
    %2205 = vrot.lane.b32.xlu0 %v1937, 120
    %v2206 = vpop.permute.xlu0 %2205
    %2207 = vrot.lane.b32.xlu0 %v1942, 120
    %v2208 = vpop.permute.xlu0 %2207
    %v2209 = vsel %vm194, %v2192, 0
    %v2211 = vsel %vm194, %v2194, 0
    %v2213 = vsel %vm194, %v2196, 0
    %v2215 = vsel %vm194, %v2198, 0
    %v2217 = vsel %vm194, %v2200, 0
    %v2219 = vsel %vm194, %v2202, 0
    %v2221 = vsel %vm194, %v2204, 0
    %v2223 = vsel %vm194, %v2206, 0
    %v2225 = vsel %vm194, %v2208, 0
    %2227 = vmatprep.subr.mxu0 0.0
    %2228 = vmatpush1.xpose.msra.mxu0 0.0
    %2229 = vmatprep.subr.mxu0 0.0
    %2230 = vmatpush1.xpose.msra.mxu0 0.0
    %2231 = vmatprep.subr.mxu0 0.0
    %2232 = vmatpush1.xpose.msra.mxu0 0.0
    %2233 = vmatprep.subr.mxu0 0.0
    %2234 = vmatpush1.xpose.msra.mxu0 0.0
    %2235 = vmatprep.subr.mxu0 0.0
    %2236 = vmatpush1.xpose.msra.mxu0 0.0
    %2237 = vmatprep.subr.mxu0 0.0
    %2238 = vmatpush1.xpose.msra.mxu0 0.0
    %2239 = vmatprep.subr.mxu0 0.0
    %2240 = vmatpush1.xpose.msra.mxu0 0.0
    %2241 = vmatprep.subr.mxu0 0.0
    %2242 = vmatpush1.xpose.msra.mxu0 0.0
    %2243 = vmatprep.subr.mxu0 0.0
    %2244 = vmatpush1.xpose.msra.mxu0 %v2225
    %2245 = vmatprep.subr.mxu0 0.0
    %2246 = vmatpush1.xpose.msra.mxu0 %v2223
    %2247 = vmatprep.subr.mxu0 0.0
    %2248 = vmatpush1.xpose.msra.mxu0 %v2221
    %2249 = vmatprep.subr.mxu0 0.0
    %2250 = vmatpush1.xpose.msra.mxu0 %v2219
    %2251 = vmatprep.subr.mxu0 0.0
    %2252 = vmatpush1.xpose.msra.mxu0 %v2217
    %2253 = vmatprep.subr.mxu0 0.0
    %2254 = vmatpush1.xpose.msra.mxu0 %v2215
    %2255 = vmatprep.subr.mxu0 0.0
    %2256 = vmatpush1.xpose.msra.mxu0 %v2213
    %2257 = vmatprep.subr.mxu0 0.0
    %2258 = vmatpush1.xpose.msra.mxu0 %v2211
    %2259 = vmatprep.subr.mxu0 0.0
    %2260 = vmatpush2.xpose.msra.mxu0 0.0
    %2261 = vmatprep.subr.mxu0 0.0
    %2262 = vmatpush2.xpose.msra.mxu0 0.0
    %2263 = vmatprep.subr.mxu0 0.0
    %2264 = vmatpush2.xpose.msra.mxu0 0.0
    %2265 = vmatprep.subr.mxu0 0.0
    %2266 = vmatpush2.xpose.msra.mxu0 0.0
    %2267 = vmatprep.subr.mxu0 0.0
    %2268 = vmatpush2.xpose.msra.mxu0 0.0
    %2269 = vmatprep.subr.mxu0 0.0
    %2270 = vmatpush2.xpose.msra.mxu0 0.0
    %2271 = vmatprep.subr.mxu0 0.0
    %2272 = vmatpush2.xpose.msra.mxu0 0.0
    %2273 = vmatprep.subr.mxu0 0.0
    %2274 = vmatpush2.xpose.msra.mxu0 0.0
    %2275 = vmatprep.subr.mxu0 0.0
    %2276 = vmatpush2.xpose.msra.mxu0 0.0
    %2277 = vmatprep.subr.mxu0 0.0
    %2278 = vmatpush2.xpose.msra.mxu0 0.0
    %2279 = vmatprep.subr.mxu0 0.0
    %2280 = vmatpush2.xpose.msra.mxu0 0.0
    %2281 = vmatprep.subr.mxu0 0.0
    %2282 = vmatpush2.xpose.msra.mxu0 0.0
    %2283 = vmatprep.subr.mxu0 0.0
    %2284 = vmatpush2.xpose.msra.mxu0 0.0
    %2285 = vmatprep.subr.mxu0 0.0
    %2286 = vmatpush2.xpose.msra.mxu0 0.0
    %2287 = vmatprep.subr.mxu0 0.0
    %2288 = vmatpush2.xpose.msra.mxu0 0.0
    %2289 = vmatprep.subr.mxu0 0.0
    %2290 = vmatpush2.xpose.msra.mxu0 0.0
    %2291 = vmatprep.mubr.f32.mxu0 0.0
    %2292 = vmatmul.mubr.f32.gmra.mxu0 %v2209
    %v2293 = vpop.f32.mrf.mxu0
    %v2294 = vadd.f32 0.0, %v2293
    %v2295 = vpop.f32.mrf.mxu0
    %2296 = vdwg.mxu0
    %v2297 = vsel %vm2082, %v2294, -inf
    %2298 = vmax.xlane.f32.xlu0 %v2297
    %v2299 = vpop.xlane.xlu0 %2298
    %v2300 = vsub.f32 %v2294, %v2299
    %v2301 = vmul.f32 %v2300, 1.442695
    %v2302 = vpow.pop %v2301
    %v2303 = vsel %vm2082, %v2302, 0.0
    %2304 = vadd.xlane.f32.xlu0 %v2303
    %v2305 = vpop.xlane.xlu0 %2304
    %v2306 = vrcp.pop %v2305
    %v2307 = vmul.f32 %v2302, %v2306
    %2308 = vrot.lane.b32.xlu0 %v1907, 88
    %v2309 = vpop.permute.xlu0 %2308
    %2310 = vrot.lane.b32.xlu0 %v1912, 88
    %v2311 = vpop.permute.xlu0 %2310
    %2312 = vrot.lane.b32.xlu0 %v1917, 88
    %v2313 = vpop.permute.xlu0 %2312
    %2314 = vrot.lane.b32.xlu0 %v1922, 88
    %v2315 = vpop.permute.xlu0 %2314
    %2316 = vrot.lane.b32.xlu0 %v1927, 88
    %v2317 = vpop.permute.xlu0 %2316
    %2318 = vrot.lane.b32.xlu0 %v1932, 88
    %v2319 = vpop.permute.xlu0 %2318
    %2320 = vrot.lane.b32.xlu0 %v1937, 88
    %v2321 = vpop.permute.xlu0 %2320
    %2322 = vrot.lane.b32.xlu0 %v1942, 88
    %v2323 = vpop.permute.xlu0 %2322
    %v2333 = vsel %vm2082, %v2307, 0
    %2335 = vmatprep.subr.mxu0 0.0
    %2336 = vmatpush1.msra.mxu0 0.0
    %2337 = vmatprep.subr.mxu0 0.0
    %2338 = vmatpush1.msra.mxu0 0.0
    %2339 = vmatprep.subr.mxu0 0.0
    %2340 = vmatpush1.msra.mxu0 0.0
    %2341 = vmatprep.subr.mxu0 0.0
    %2342 = vmatpush1.msra.mxu0 0.0
    %2343 = vmatprep.subr.mxu0 0.0
    %2344 = vmatpush1.msra.mxu0 0.0
    %2345 = vmatprep.subr.mxu0 0.0
    %2346 = vmatpush1.msra.mxu0 0.0
    %2347 = vmatprep.subr.mxu0 0.0
    %2348 = vmatpush1.msra.mxu0 0.0
    %2349 = vmatprep.subr.mxu0 0.0
    %2350 = vmatpush1.msra.mxu0 0.0
    %2351 = vmatprep.subr.mxu0 0.0
    %2352 = vmatpush1.msra.mxu0 %v2323
    %2353 = vmatprep.subr.mxu0 0.0
    %2354 = vmatpush1.msra.mxu0 %v2321
    %2355 = vmatprep.subr.mxu0 0.0
    %2356 = vmatpush1.msra.mxu0 %v2319
    %2357 = vmatprep.subr.mxu0 0.0
    %2358 = vmatpush1.msra.mxu0 %v2317
    %2359 = vmatprep.subr.mxu0 0.0
    %2360 = vmatpush1.msra.mxu0 %v2315
    %2361 = vmatprep.subr.mxu0 0.0
    %2362 = vmatpush1.msra.mxu0 %v2313
    %2363 = vmatprep.subr.mxu0 0.0
    %2364 = vmatpush1.msra.mxu0 %v2311
    %2365 = vmatprep.subr.mxu0 0.0
    %2366 = vmatpush1.msra.mxu0 %v2309
    %2367 = vmatprep.subr.mxu0 0.0
    %2368 = vmatpush2.msra.mxu0 0.0
    %2369 = vmatprep.subr.mxu0 0.0
    %2370 = vmatpush2.msra.mxu0 0.0
    %2371 = vmatprep.subr.mxu0 0.0
    %2372 = vmatpush2.msra.mxu0 0.0
    %2373 = vmatprep.subr.mxu0 0.0
    %2374 = vmatpush2.msra.mxu0 0.0
    %2375 = vmatprep.subr.mxu0 0.0
    %2376 = vmatpush2.msra.mxu0 0.0
    %2377 = vmatprep.subr.mxu0 0.0
    %2378 = vmatpush2.msra.mxu0 0.0
    %2379 = vmatprep.subr.mxu0 0.0
    %2380 = vmatpush2.msra.mxu0 0.0
    %2381 = vmatprep.subr.mxu0 0.0
    %2382 = vmatpush2.msra.mxu0 0.0
    %2383 = vmatprep.subr.mxu0 0.0
    %2384 = vmatpush2.msra.mxu0 0.0
    %2385 = vmatprep.subr.mxu0 0.0
    %2386 = vmatpush2.msra.mxu0 0.0
    %2387 = vmatprep.subr.mxu0 0.0
    %2388 = vmatpush2.msra.mxu0 0.0
    %2389 = vmatprep.subr.mxu0 0.0
    %2390 = vmatpush2.msra.mxu0 0.0
    %2391 = vmatprep.subr.mxu0 0.0
    %2392 = vmatpush2.msra.mxu0 0.0
    %2393 = vmatprep.subr.mxu0 0.0
    %2394 = vmatpush2.msra.mxu0 0.0
    %2395 = vmatprep.subr.mxu0 0.0
    %2396 = vmatpush2.msra.mxu0 0.0
    %2397 = vmatprep.subr.mxu0 0.0
    %2398 = vmatpush2.msra.mxu0 0.0
    %2399 = vmatprep.mubr.f32.mxu0 0.0
    %2400 = vmatmul.mubr.f32.gmra.mxu0 %v2333
    %v2401 = vpop.f32.mrf.mxu0
    %v2402 = vadd.f32 0.0, %v2401
    %v2403 = vpop.f32.mrf.mxu0
    %2404 = vdwg.mxu0
    %2405 = vrot.lane.b32.xlu0 %v1771, 112
    %v2406 = vpop.permute.xlu0 %2405
    %2407 = vrot.lane.b32.xlu0 %v1907, 112
    %v2408 = vpop.permute.xlu0 %2407
    %2409 = vrot.lane.b32.xlu0 %v1912, 112
    %v2410 = vpop.permute.xlu0 %2409
    %2411 = vrot.lane.b32.xlu0 %v1917, 112
    %v2412 = vpop.permute.xlu0 %2411
    %2413 = vrot.lane.b32.xlu0 %v1922, 112
    %v2414 = vpop.permute.xlu0 %2413
    %2415 = vrot.lane.b32.xlu0 %v1927, 112
    %v2416 = vpop.permute.xlu0 %2415
    %2417 = vrot.lane.b32.xlu0 %v1932, 112
    %v2418 = vpop.permute.xlu0 %2417
    %2419 = vrot.lane.b32.xlu0 %v1937, 112
    %v2420 = vpop.permute.xlu0 %2419
    %2421 = vrot.lane.b32.xlu0 %v1942, 112
    %v2422 = vpop.permute.xlu0 %2421
    %v2423 = vsel %vm194, %v2406, 0
    %v2425 = vsel %vm194, %v2408, 0
    %v2427 = vsel %vm194, %v2410, 0
    %v2429 = vsel %vm194, %v2412, 0
    %v2431 = vsel %vm194, %v2414, 0
    %v2433 = vsel %vm194, %v2416, 0
    %v2435 = vsel %vm194, %v2418, 0
    %v2437 = vsel %vm194, %v2420, 0
    %v2439 = vsel %vm194, %v2422, 0
    %2441 = vmatprep.subr.mxu0 0.0
    %2442 = vmatpush1.xpose.msra.mxu0 0.0
    %2443 = vmatprep.subr.mxu0 0.0
    %2444 = vmatpush1.xpose.msra.mxu0 0.0
    %2445 = vmatprep.subr.mxu0 0.0
    %2446 = vmatpush1.xpose.msra.mxu0 0.0
    %2447 = vmatprep.subr.mxu0 0.0
    %2448 = vmatpush1.xpose.msra.mxu0 0.0
    %2449 = vmatprep.subr.mxu0 0.0
    %2450 = vmatpush1.xpose.msra.mxu0 0.0
    %2451 = vmatprep.subr.mxu0 0.0
    %2452 = vmatpush1.xpose.msra.mxu0 0.0
    %2453 = vmatprep.subr.mxu0 0.0
    %2454 = vmatpush1.xpose.msra.mxu0 0.0
    %2455 = vmatprep.subr.mxu0 0.0
    %2456 = vmatpush1.xpose.msra.mxu0 0.0
    %2457 = vmatprep.subr.mxu0 0.0
    %2458 = vmatpush1.xpose.msra.mxu0 %v2439
    %2459 = vmatprep.subr.mxu0 0.0
    %2460 = vmatpush1.xpose.msra.mxu0 %v2437
    %2461 = vmatprep.subr.mxu0 0.0
    %2462 = vmatpush1.xpose.msra.mxu0 %v2435
    %2463 = vmatprep.subr.mxu0 0.0
    %2464 = vmatpush1.xpose.msra.mxu0 %v2433
    %2465 = vmatprep.subr.mxu0 0.0
    %2466 = vmatpush1.xpose.msra.mxu0 %v2431
    %2467 = vmatprep.subr.mxu0 0.0
    %2468 = vmatpush1.xpose.msra.mxu0 %v2429
    %2469 = vmatprep.subr.mxu0 0.0
    %2470 = vmatpush1.xpose.msra.mxu0 %v2427
    %2471 = vmatprep.subr.mxu0 0.0
    %2472 = vmatpush1.xpose.msra.mxu0 %v2425
    %2473 = vmatprep.subr.mxu0 0.0
    %2474 = vmatpush2.xpose.msra.mxu0 0.0
    %2475 = vmatprep.subr.mxu0 0.0
    %2476 = vmatpush2.xpose.msra.mxu0 0.0
    %2477 = vmatprep.subr.mxu0 0.0
    %2478 = vmatpush2.xpose.msra.mxu0 0.0
    %2479 = vmatprep.subr.mxu0 0.0
    %2480 = vmatpush2.xpose.msra.mxu0 0.0
    %2481 = vmatprep.subr.mxu0 0.0
    %2482 = vmatpush2.xpose.msra.mxu0 0.0
    %2483 = vmatprep.subr.mxu0 0.0
    %2484 = vmatpush2.xpose.msra.mxu0 0.0
    %2485 = vmatprep.subr.mxu0 0.0
    %2486 = vmatpush2.xpose.msra.mxu0 0.0
    %2487 = vmatprep.subr.mxu0 0.0
    %2488 = vmatpush2.xpose.msra.mxu0 0.0
    %2489 = vmatprep.subr.mxu0 0.0
    %2490 = vmatpush2.xpose.msra.mxu0 0.0
    %2491 = vmatprep.subr.mxu0 0.0
    %2492 = vmatpush2.xpose.msra.mxu0 0.0
    %2493 = vmatprep.subr.mxu0 0.0
    %2494 = vmatpush2.xpose.msra.mxu0 0.0
    %2495 = vmatprep.subr.mxu0 0.0
    %2496 = vmatpush2.xpose.msra.mxu0 0.0
    %2497 = vmatprep.subr.mxu0 0.0
    %2498 = vmatpush2.xpose.msra.mxu0 0.0
    %2499 = vmatprep.subr.mxu0 0.0
    %2500 = vmatpush2.xpose.msra.mxu0 0.0
    %2501 = vmatprep.subr.mxu0 0.0
    %2502 = vmatpush2.xpose.msra.mxu0 0.0
    %2503 = vmatprep.subr.mxu0 0.0
    %2504 = vmatpush2.xpose.msra.mxu0 0.0
    %2505 = vmatprep.mubr.f32.mxu0 0.0
    %2506 = vmatmul.mubr.f32.gmra.mxu0 %v2423
    %v2507 = vpop.f32.mrf.mxu0
    %v2508 = vadd.f32 0.0, %v2507
    %v2509 = vpop.f32.mrf.mxu0
    %2510 = vdwg.mxu0
    %v2511 = vsel %vm2082, %v2508, -inf
    %2512 = vmax.xlane.f32.xlu0 %v2511
    %v2513 = vpop.xlane.xlu0 %2512
    %v2514 = vsub.f32 %v2508, %v2513
    %v2515 = vmul.f32 %v2514, 1.442695
    %v2516 = vpow.pop %v2515
    %v2517 = vsel %vm2082, %v2516, 0.0
    %2518 = vadd.xlane.f32.xlu0 %v2517
    %v2519 = vpop.xlane.xlu0 %2518
    %v2520 = vrcp.pop %v2519
    %v2521 = vmul.f32 %v2516, %v2520
    %2522 = vrot.lane.b32.xlu0 %v1907, 80
    %v2523 = vpop.permute.xlu0 %2522
    %2524 = vrot.lane.b32.xlu0 %v1912, 80
    %v2525 = vpop.permute.xlu0 %2524
    %2526 = vrot.lane.b32.xlu0 %v1917, 80
    %v2527 = vpop.permute.xlu0 %2526
    %2528 = vrot.lane.b32.xlu0 %v1922, 80
    %v2529 = vpop.permute.xlu0 %2528
    %2530 = vrot.lane.b32.xlu0 %v1927, 80
    %v2531 = vpop.permute.xlu0 %2530
    %2532 = vrot.lane.b32.xlu0 %v1932, 80
    %v2533 = vpop.permute.xlu0 %2532
    %2534 = vrot.lane.b32.xlu0 %v1937, 80
    %v2535 = vpop.permute.xlu0 %2534
    %2536 = vrot.lane.b32.xlu0 %v1942, 80
    %v2537 = vpop.permute.xlu0 %2536
    %v2547 = vsel %vm2082, %v2521, 0
    %2549 = vmatprep.subr.mxu0 0.0
    %2550 = vmatpush1.msra.mxu0 0.0
    %2551 = vmatprep.subr.mxu0 0.0
    %2552 = vmatpush1.msra.mxu0 0.0
    %2553 = vmatprep.subr.mxu0 0.0
    %2554 = vmatpush1.msra.mxu0 0.0
    %2555 = vmatprep.subr.mxu0 0.0
    %2556 = vmatpush1.msra.mxu0 0.0
    %2557 = vmatprep.subr.mxu0 0.0
    %2558 = vmatpush1.msra.mxu0 0.0
    %2559 = vmatprep.subr.mxu0 0.0
    %2560 = vmatpush1.msra.mxu0 0.0
    %2561 = vmatprep.subr.mxu0 0.0
    %2562 = vmatpush1.msra.mxu0 0.0
    %2563 = vmatprep.subr.mxu0 0.0
    %2564 = vmatpush1.msra.mxu0 0.0
    %2565 = vmatprep.subr.mxu0 0.0
    %2566 = vmatpush1.msra.mxu0 %v2537
    %2567 = vmatprep.subr.mxu0 0.0
    %2568 = vmatpush1.msra.mxu0 %v2535
    %2569 = vmatprep.subr.mxu0 0.0
    %2570 = vmatpush1.msra.mxu0 %v2533
    %2571 = vmatprep.subr.mxu0 0.0
    %2572 = vmatpush1.msra.mxu0 %v2531
    %2573 = vmatprep.subr.mxu0 0.0
    %2574 = vmatpush1.msra.mxu0 %v2529
    %2575 = vmatprep.subr.mxu0 0.0
    %2576 = vmatpush1.msra.mxu0 %v2527
    %2577 = vmatprep.subr.mxu0 0.0
    %2578 = vmatpush1.msra.mxu0 %v2525
    %2579 = vmatprep.subr.mxu0 0.0
    %2580 = vmatpush1.msra.mxu0 %v2523
    %2581 = vmatprep.subr.mxu0 0.0
    %2582 = vmatpush2.msra.mxu0 0.0
    %2583 = vmatprep.subr.mxu0 0.0
    %2584 = vmatpush2.msra.mxu0 0.0
    %2585 = vmatprep.subr.mxu0 0.0
    %2586 = vmatpush2.msra.mxu0 0.0
    %2587 = vmatprep.subr.mxu0 0.0
    %2588 = vmatpush2.msra.mxu0 0.0
    %2589 = vmatprep.subr.mxu0 0.0
    %2590 = vmatpush2.msra.mxu0 0.0
    %2591 = vmatprep.subr.mxu0 0.0
    %2592 = vmatpush2.msra.mxu0 0.0
    %2593 = vmatprep.subr.mxu0 0.0
    %2594 = vmatpush2.msra.mxu0 0.0
    %2595 = vmatprep.subr.mxu0 0.0
    %2596 = vmatpush2.msra.mxu0 0.0
    %2597 = vmatprep.subr.mxu0 0.0
    %2598 = vmatpush2.msra.mxu0 0.0
    %2599 = vmatprep.subr.mxu0 0.0
    %2600 = vmatpush2.msra.mxu0 0.0
    %2601 = vmatprep.subr.mxu0 0.0
    %2602 = vmatpush2.msra.mxu0 0.0
    %2603 = vmatprep.subr.mxu0 0.0
    %2604 = vmatpush2.msra.mxu0 0.0
    %2605 = vmatprep.subr.mxu0 0.0
    %2606 = vmatpush2.msra.mxu0 0.0
    %2607 = vmatprep.subr.mxu0 0.0
    %2608 = vmatpush2.msra.mxu0 0.0
    %2609 = vmatprep.subr.mxu0 0.0
    %2610 = vmatpush2.msra.mxu0 0.0
    %2611 = vmatprep.subr.mxu0 0.0
    %2612 = vmatpush2.msra.mxu0 0.0
    %2613 = vmatprep.mubr.f32.mxu0 0.0
    %2614 = vmatmul.mubr.f32.gmra.mxu0 %v2547
    %v2615 = vpop.f32.mrf.mxu0
    %v2616 = vadd.f32 0.0, %v2615
    %v2617 = vpop.f32.mrf.mxu0
    %2618 = vdwg.mxu0
    %2619 = vrot.lane.b32.xlu0 %v1771, 104
    %v2620 = vpop.permute.xlu0 %2619
    %2621 = vrot.lane.b32.xlu0 %v1907, 104
    %v2622 = vpop.permute.xlu0 %2621
    %2623 = vrot.lane.b32.xlu0 %v1912, 104
    %v2624 = vpop.permute.xlu0 %2623
    %2625 = vrot.lane.b32.xlu0 %v1917, 104
    %v2626 = vpop.permute.xlu0 %2625
    %2627 = vrot.lane.b32.xlu0 %v1922, 104
    %v2628 = vpop.permute.xlu0 %2627
    %2629 = vrot.lane.b32.xlu0 %v1927, 104
    %v2630 = vpop.permute.xlu0 %2629
    %2631 = vrot.lane.b32.xlu0 %v1932, 104
    %v2632 = vpop.permute.xlu0 %2631
    %2633 = vrot.lane.b32.xlu0 %v1937, 104
    %v2634 = vpop.permute.xlu0 %2633
    %2635 = vrot.lane.b32.xlu0 %v1942, 104
    %v2636 = vpop.permute.xlu0 %2635
    %v2637 = vsel %vm194, %v2620, 0
    %v2639 = vsel %vm194, %v2622, 0
    %v2641 = vsel %vm194, %v2624, 0
    %v2643 = vsel %vm194, %v2626, 0
    %v2645 = vsel %vm194, %v2628, 0
    %v2647 = vsel %vm194, %v2630, 0
    %v2649 = vsel %vm194, %v2632, 0
    %v2651 = vsel %vm194, %v2634, 0
    %v2653 = vsel %vm194, %v2636, 0
    %2655 = vmatprep.subr.mxu0 0.0
    %2656 = vmatpush1.xpose.msra.mxu0 0.0
    %2657 = vmatprep.subr.mxu0 0.0
    %2658 = vmatpush1.xpose.msra.mxu0 0.0
    %2659 = vmatprep.subr.mxu0 0.0
    %2660 = vmatpush1.xpose.msra.mxu0 0.0
    %2661 = vmatprep.subr.mxu0 0.0
    %2662 = vmatpush1.xpose.msra.mxu0 0.0
    %2663 = vmatprep.subr.mxu0 0.0
    %2664 = vmatpush1.xpose.msra.mxu0 0.0
    %2665 = vmatprep.subr.mxu0 0.0
    %2666 = vmatpush1.xpose.msra.mxu0 0.0
    %2667 = vmatprep.subr.mxu0 0.0
    %2668 = vmatpush1.xpose.msra.mxu0 0.0
    %2669 = vmatprep.subr.mxu0 0.0
    %2670 = vmatpush1.xpose.msra.mxu0 0.0
    %2671 = vmatprep.subr.mxu0 0.0
    %2672 = vmatpush1.xpose.msra.mxu0 %v2653
    %2673 = vmatprep.subr.mxu0 0.0
    %2674 = vmatpush1.xpose.msra.mxu0 %v2651
    %2675 = vmatprep.subr.mxu0 0.0
    %2676 = vmatpush1.xpose.msra.mxu0 %v2649
    %2677 = vmatprep.subr.mxu0 0.0
    %2678 = vmatpush1.xpose.msra.mxu0 %v2647
    %2679 = vmatprep.subr.mxu0 0.0
    %2680 = vmatpush1.xpose.msra.mxu0 %v2645
    %2681 = vmatprep.subr.mxu0 0.0
    %2682 = vmatpush1.xpose.msra.mxu0 %v2643
    %2683 = vmatprep.subr.mxu0 0.0
    %2684 = vmatpush1.xpose.msra.mxu0 %v2641
    %2685 = vmatprep.subr.mxu0 0.0
    %2686 = vmatpush1.xpose.msra.mxu0 %v2639
    %2687 = vmatprep.subr.mxu0 0.0
    %2688 = vmatpush2.xpose.msra.mxu0 0.0
    %2689 = vmatprep.subr.mxu0 0.0
    %2690 = vmatpush2.xpose.msra.mxu0 0.0
    %2691 = vmatprep.subr.mxu0 0.0
    %2692 = vmatpush2.xpose.msra.mxu0 0.0
    %2693 = vmatprep.subr.mxu0 0.0
    %2694 = vmatpush2.xpose.msra.mxu0 0.0
    %2695 = vmatprep.subr.mxu0 0.0
    %2696 = vmatpush2.xpose.msra.mxu0 0.0
    %2697 = vmatprep.subr.mxu0 0.0
    %2698 = vmatpush2.xpose.msra.mxu0 0.0
    %2699 = vmatprep.subr.mxu0 0.0
    %2700 = vmatpush2.xpose.msra.mxu0 0.0
    %2701 = vmatprep.subr.mxu0 0.0
    %2702 = vmatpush2.xpose.msra.mxu0 0.0
    %2703 = vmatprep.subr.mxu0 0.0
    %2704 = vmatpush2.xpose.msra.mxu0 0.0
    %2705 = vmatprep.subr.mxu0 0.0
    %2706 = vmatpush2.xpose.msra.mxu0 0.0
    %2707 = vmatprep.subr.mxu0 0.0
    %2708 = vmatpush2.xpose.msra.mxu0 0.0
    %2709 = vmatprep.subr.mxu0 0.0
    %2710 = vmatpush2.xpose.msra.mxu0 0.0
    %2711 = vmatprep.subr.mxu0 0.0
    %2712 = vmatpush2.xpose.msra.mxu0 0.0
    %2713 = vmatprep.subr.mxu0 0.0
    %2714 = vmatpush2.xpose.msra.mxu0 0.0
    %2715 = vmatprep.subr.mxu0 0.0
    %2716 = vmatpush2.xpose.msra.mxu0 0.0
    %2717 = vmatprep.subr.mxu0 0.0
    %2718 = vmatpush2.xpose.msra.mxu0 0.0
    %2719 = vmatprep.mubr.f32.mxu0 0.0
    %2720 = vmatmul.mubr.f32.gmra.mxu0 %v2637
    %v2721 = vpop.f32.mrf.mxu0
    %v2722 = vadd.f32 0.0, %v2721
    %v2723 = vpop.f32.mrf.mxu0
    %2724 = vdwg.mxu0
    %v2725 = vsel %vm2082, %v2722, -inf
    %2726 = vmax.xlane.f32.xlu0 %v2725
    %v2727 = vpop.xlane.xlu0 %2726
    %v2728 = vsub.f32 %v2722, %v2727
    %v2729 = vmul.f32 %v2728, 1.442695
    %v2730 = vpow.pop %v2729
    %v2731 = vsel %vm2082, %v2730, 0.0
    %2732 = vadd.xlane.f32.xlu0 %v2731
    %v2733 = vpop.xlane.xlu0 %2732
    %v2734 = vrcp.pop %v2733
    %v2735 = vmul.f32 %v2730, %v2734
    %2736 = vrot.lane.b32.xlu0 %v1907, 72
    %v2737 = vpop.permute.xlu0 %2736
    %2738 = vrot.lane.b32.xlu0 %v1912, 72
    %v2739 = vpop.permute.xlu0 %2738
    %2740 = vrot.lane.b32.xlu0 %v1917, 72
    %v2741 = vpop.permute.xlu0 %2740
    %2742 = vrot.lane.b32.xlu0 %v1922, 72
    %v2743 = vpop.permute.xlu0 %2742
    %2744 = vrot.lane.b32.xlu0 %v1927, 72
    %v2745 = vpop.permute.xlu0 %2744
    %2746 = vrot.lane.b32.xlu0 %v1932, 72
    %v2747 = vpop.permute.xlu0 %2746
    %2748 = vrot.lane.b32.xlu0 %v1937, 72
    %v2749 = vpop.permute.xlu0 %2748
    %2750 = vrot.lane.b32.xlu0 %v1942, 72
    %v2751 = vpop.permute.xlu0 %2750
    %v2761 = vsel %vm2082, %v2735, 0
    %2763 = vmatprep.subr.mxu0 0.0
    %2764 = vmatpush1.msra.mxu0 0.0
    %2765 = vmatprep.subr.mxu0 0.0
    %2766 = vmatpush1.msra.mxu0 0.0
    %2767 = vmatprep.subr.mxu0 0.0
    %2768 = vmatpush1.msra.mxu0 0.0
    %2769 = vmatprep.subr.mxu0 0.0
    %2770 = vmatpush1.msra.mxu0 0.0
    %2771 = vmatprep.subr.mxu0 0.0
    %2772 = vmatpush1.msra.mxu0 0.0
    %2773 = vmatprep.subr.mxu0 0.0
    %2774 = vmatpush1.msra.mxu0 0.0
    %2775 = vmatprep.subr.mxu0 0.0
    %2776 = vmatpush1.msra.mxu0 0.0
    %2777 = vmatprep.subr.mxu0 0.0
    %2778 = vmatpush1.msra.mxu0 0.0
    %2779 = vmatprep.subr.mxu0 0.0
    %2780 = vmatpush1.msra.mxu0 %v2751
    %2781 = vmatprep.subr.mxu0 0.0
    %2782 = vmatpush1.msra.mxu0 %v2749
    %2783 = vmatprep.subr.mxu0 0.0
    %2784 = vmatpush1.msra.mxu0 %v2747
    %2785 = vmatprep.subr.mxu0 0.0
    %2786 = vmatpush1.msra.mxu0 %v2745
    %2787 = vmatprep.subr.mxu0 0.0
    %2788 = vmatpush1.msra.mxu0 %v2743
    %2789 = vmatprep.subr.mxu0 0.0
    %2790 = vmatpush1.msra.mxu0 %v2741
    %2791 = vmatprep.subr.mxu0 0.0
    %2792 = vmatpush1.msra.mxu0 %v2739
    %2793 = vmatprep.subr.mxu0 0.0
    %2794 = vmatpush1.msra.mxu0 %v2737
    %2795 = vmatprep.subr.mxu0 0.0
    %2796 = vmatpush2.msra.mxu0 0.0
    %2797 = vmatprep.subr.mxu0 0.0
    %2798 = vmatpush2.msra.mxu0 0.0
    %2799 = vmatprep.subr.mxu0 0.0
    %2800 = vmatpush2.msra.mxu0 0.0
    %2801 = vmatprep.subr.mxu0 0.0
    %2802 = vmatpush2.msra.mxu0 0.0
    %2803 = vmatprep.subr.mxu0 0.0
    %2804 = vmatpush2.msra.mxu0 0.0
    %2805 = vmatprep.subr.mxu0 0.0
    %2806 = vmatpush2.msra.mxu0 0.0
    %2807 = vmatprep.subr.mxu0 0.0
    %2808 = vmatpush2.msra.mxu0 0.0
    %2809 = vmatprep.subr.mxu0 0.0
    %2810 = vmatpush2.msra.mxu0 0.0
    %2811 = vmatprep.subr.mxu0 0.0
    %2812 = vmatpush2.msra.mxu0 0.0
    %2813 = vmatprep.subr.mxu0 0.0
    %2814 = vmatpush2.msra.mxu0 0.0
    %2815 = vmatprep.subr.mxu0 0.0
    %2816 = vmatpush2.msra.mxu0 0.0
    %2817 = vmatprep.subr.mxu0 0.0
    %2818 = vmatpush2.msra.mxu0 0.0
    %2819 = vmatprep.subr.mxu0 0.0
    %2820 = vmatpush2.msra.mxu0 0.0
    %2821 = vmatprep.subr.mxu0 0.0
    %2822 = vmatpush2.msra.mxu0 0.0
    %2823 = vmatprep.subr.mxu0 0.0
    %2824 = vmatpush2.msra.mxu0 0.0
    %2825 = vmatprep.subr.mxu0 0.0
    %2826 = vmatpush2.msra.mxu0 0.0
    %2827 = vmatprep.mubr.f32.mxu0 0.0
    %2828 = vmatmul.mubr.f32.gmra.mxu0 %v2761
    %v2829 = vpop.f32.mrf.mxu0
    %v2830 = vadd.f32 0.0, %v2829
    %v2831 = vpop.f32.mrf.mxu0
    %2832 = vdwg.mxu0
    %2834 = vrot.lane.b32.xlu0 %v2402, 8
    %v2835 = vpop.permute.xlu0 %2834
    %2838 = vrot.lane.b32.xlu0 %v2616, 16
    %v2839 = vpop.permute.xlu0 %2838
    %2842 = vrot.lane.b32.xlu0 %v2830, 24
    %v2843 = vpop.permute.xlu0 %2842
    %v2845 = vsel %vm194, %v2188, %v2835
    %v2846 = vsel %vm865, %v2845, %v2839
    %v2847 = vsel %vm867, %v2846, %v2843
    %v2849 = vsel %vm194, %v1772, 0
    %v2852 = vsel %vm194, %v1947, 0
    %v2855 = vsel %vm194, %v1952, 0
    %v2858 = vsel %vm194, %v1957, 0
    %v2861 = vsel %vm194, %v1962, 0
    %v2864 = vsel %vm194, %v1967, 0
    %v2867 = vsel %vm194, %v1972, 0
    %v2870 = vsel %vm194, %v1977, 0
    %v2873 = vsel %vm194, %v1982, 0
    %2875 = vmatprep.subr.mxu0 0.0
    %2876 = vmatpush1.xpose.msra.mxu0 0.0
    %2877 = vmatprep.subr.mxu0 0.0
    %2878 = vmatpush1.xpose.msra.mxu0 0.0
    %2879 = vmatprep.subr.mxu0 0.0
    %2880 = vmatpush1.xpose.msra.mxu0 0.0
    %2881 = vmatprep.subr.mxu0 0.0
    %2882 = vmatpush1.xpose.msra.mxu0 0.0
    %2883 = vmatprep.subr.mxu0 0.0
    %2884 = vmatpush1.xpose.msra.mxu0 0.0
    %2885 = vmatprep.subr.mxu0 0.0
    %2886 = vmatpush1.xpose.msra.mxu0 0.0
    %2887 = vmatprep.subr.mxu0 0.0
    %2888 = vmatpush1.xpose.msra.mxu0 0.0
    %2889 = vmatprep.subr.mxu0 0.0
    %2890 = vmatpush1.xpose.msra.mxu0 0.0
    %2891 = vmatprep.subr.mxu0 0.0
    %2892 = vmatpush1.xpose.msra.mxu0 %v2873
    %2893 = vmatprep.subr.mxu0 0.0
    %2894 = vmatpush1.xpose.msra.mxu0 %v2870
    %2895 = vmatprep.subr.mxu0 0.0
    %2896 = vmatpush1.xpose.msra.mxu0 %v2867
    %2897 = vmatprep.subr.mxu0 0.0
    %2898 = vmatpush1.xpose.msra.mxu0 %v2864
    %2899 = vmatprep.subr.mxu0 0.0
    %2900 = vmatpush1.xpose.msra.mxu0 %v2861
    %2901 = vmatprep.subr.mxu0 0.0
    %2902 = vmatpush1.xpose.msra.mxu0 %v2858
    %2903 = vmatprep.subr.mxu0 0.0
    %2904 = vmatpush1.xpose.msra.mxu0 %v2855
    %2905 = vmatprep.subr.mxu0 0.0
    %2906 = vmatpush1.xpose.msra.mxu0 %v2852
    %2907 = vmatprep.subr.mxu0 0.0
    %2908 = vmatpush2.xpose.msra.mxu0 0.0
    %2909 = vmatprep.subr.mxu0 0.0
    %2910 = vmatpush2.xpose.msra.mxu0 0.0
    %2911 = vmatprep.subr.mxu0 0.0
    %2912 = vmatpush2.xpose.msra.mxu0 0.0
    %2913 = vmatprep.subr.mxu0 0.0
    %2914 = vmatpush2.xpose.msra.mxu0 0.0
    %2915 = vmatprep.subr.mxu0 0.0
    %2916 = vmatpush2.xpose.msra.mxu0 0.0
    %2917 = vmatprep.subr.mxu0 0.0
    %2918 = vmatpush2.xpose.msra.mxu0 0.0
    %2919 = vmatprep.subr.mxu0 0.0
    %2920 = vmatpush2.xpose.msra.mxu0 0.0
    %2921 = vmatprep.subr.mxu0 0.0
    %2922 = vmatpush2.xpose.msra.mxu0 0.0
    %2923 = vmatprep.subr.mxu0 0.0
    %2924 = vmatpush2.xpose.msra.mxu0 0.0
    %2925 = vmatprep.subr.mxu0 0.0
    %2926 = vmatpush2.xpose.msra.mxu0 0.0
    %2927 = vmatprep.subr.mxu0 0.0
    %2928 = vmatpush2.xpose.msra.mxu0 0.0
    %2929 = vmatprep.subr.mxu0 0.0
    %2930 = vmatpush2.xpose.msra.mxu0 0.0
    %2931 = vmatprep.subr.mxu0 0.0
    %2932 = vmatpush2.xpose.msra.mxu0 0.0
    %2933 = vmatprep.subr.mxu0 0.0
    %2934 = vmatpush2.xpose.msra.mxu0 0.0
    %2935 = vmatprep.subr.mxu0 0.0
    %2936 = vmatpush2.xpose.msra.mxu0 0.0
    %2937 = vmatprep.subr.mxu0 0.0
    %2938 = vmatpush2.xpose.msra.mxu0 0.0
    %2939 = vmatprep.mubr.f32.mxu0 0.0
    %2940 = vmatmul.mubr.f32.gmra.mxu0 %v2849
    %v2941 = vpop.f32.mrf.mxu0
    %v2942 = vadd.f32 0.0, %v2941
    %v2943 = vpop.f32.mrf.mxu0
    %2944 = vdwg.mxu0
    %v2945 = vsel %vm2082, %v2942, -inf
    %2946 = vmax.xlane.f32.xlu0 %v2945
    %v2947 = vpop.xlane.xlu0 %2946
    %v2948 = vsub.f32 %v2942, %v2947
    %v2949 = vmul.f32 %v2948, 1.442695
    %v2950 = vpow.pop %v2949
    %v2951 = vsel %vm2082, %v2950, 0.0
    %2952 = vadd.xlane.f32.xlu0 %v2951
    %v2953 = vpop.xlane.xlu0 %2952
    %v2954 = vrcp.pop %v2953
    %v2955 = vmul.f32 %v2950, %v2954
    %2956 = vrot.lane.b32.xlu0 %v1947, 96
    %v2957 = vpop.permute.xlu0 %2956
    %2958 = vrot.lane.b32.xlu0 %v1952, 96
    %v2959 = vpop.permute.xlu0 %2958
    %2960 = vrot.lane.b32.xlu0 %v1957, 96
    %v2961 = vpop.permute.xlu0 %2960
    %2962 = vrot.lane.b32.xlu0 %v1962, 96
    %v2963 = vpop.permute.xlu0 %2962
    %2964 = vrot.lane.b32.xlu0 %v1967, 96
    %v2965 = vpop.permute.xlu0 %2964
    %2966 = vrot.lane.b32.xlu0 %v1972, 96
    %v2967 = vpop.permute.xlu0 %2966
    %2968 = vrot.lane.b32.xlu0 %v1977, 96
    %v2969 = vpop.permute.xlu0 %2968
    %2970 = vrot.lane.b32.xlu0 %v1982, 96
    %v2971 = vpop.permute.xlu0 %2970
    %v2981 = vsel %vm2082, %v2955, 0
    %2983 = vmatprep.subr.mxu0 0.0
    %2984 = vmatpush1.msra.mxu0 0.0
    %2985 = vmatprep.subr.mxu0 0.0
    %2986 = vmatpush1.msra.mxu0 0.0
    %2987 = vmatprep.subr.mxu0 0.0
    %2988 = vmatpush1.msra.mxu0 0.0
    %2989 = vmatprep.subr.mxu0 0.0
    %2990 = vmatpush1.msra.mxu0 0.0
    %2991 = vmatprep.subr.mxu0 0.0
    %2992 = vmatpush1.msra.mxu0 0.0
    %2993 = vmatprep.subr.mxu0 0.0
    %2994 = vmatpush1.msra.mxu0 0.0
    %2995 = vmatprep.subr.mxu0 0.0
    %2996 = vmatpush1.msra.mxu0 0.0
    %2997 = vmatprep.subr.mxu0 0.0
    %2998 = vmatpush1.msra.mxu0 0.0
    %2999 = vmatprep.subr.mxu0 0.0
    %3000 = vmatpush1.msra.mxu0 %v2971
    %3001 = vmatprep.subr.mxu0 0.0
    %3002 = vmatpush1.msra.mxu0 %v2969
    %3003 = vmatprep.subr.mxu0 0.0
    %3004 = vmatpush1.msra.mxu0 %v2967
    %3005 = vmatprep.subr.mxu0 0.0
    %3006 = vmatpush1.msra.mxu0 %v2965
    %3007 = vmatprep.subr.mxu0 0.0
    %3008 = vmatpush1.msra.mxu0 %v2963
    %3009 = vmatprep.subr.mxu0 0.0
    %3010 = vmatpush1.msra.mxu0 %v2961
    %3011 = vmatprep.subr.mxu0 0.0
    %3012 = vmatpush1.msra.mxu0 %v2959
    %3013 = vmatprep.subr.mxu0 0.0
    %3014 = vmatpush1.msra.mxu0 %v2957
    %3015 = vmatprep.subr.mxu0 0.0
    %3016 = vmatpush2.msra.mxu0 0.0
    %3017 = vmatprep.subr.mxu0 0.0
    %3018 = vmatpush2.msra.mxu0 0.0
    %3019 = vmatprep.subr.mxu0 0.0
    %3020 = vmatpush2.msra.mxu0 0.0
    %3021 = vmatprep.subr.mxu0 0.0
    %3022 = vmatpush2.msra.mxu0 0.0
    %3023 = vmatprep.subr.mxu0 0.0
    %3024 = vmatpush2.msra.mxu0 0.0
    %3025 = vmatprep.subr.mxu0 0.0
    %3026 = vmatpush2.msra.mxu0 0.0
    %3027 = vmatprep.subr.mxu0 0.0
    %3028 = vmatpush2.msra.mxu0 0.0
    %3029 = vmatprep.subr.mxu0 0.0
    %3030 = vmatpush2.msra.mxu0 0.0
    %3031 = vmatprep.subr.mxu0 0.0
    %3032 = vmatpush2.msra.mxu0 0.0
    %3033 = vmatprep.subr.mxu0 0.0
    %3034 = vmatpush2.msra.mxu0 0.0
    %3035 = vmatprep.subr.mxu0 0.0
    %3036 = vmatpush2.msra.mxu0 0.0
    %3037 = vmatprep.subr.mxu0 0.0
    %3038 = vmatpush2.msra.mxu0 0.0
    %3039 = vmatprep.subr.mxu0 0.0
    %3040 = vmatpush2.msra.mxu0 0.0
    %3041 = vmatprep.subr.mxu0 0.0
    %3042 = vmatpush2.msra.mxu0 0.0
    %3043 = vmatprep.subr.mxu0 0.0
    %3044 = vmatpush2.msra.mxu0 0.0
    %3045 = vmatprep.subr.mxu0 0.0
    %3046 = vmatpush2.msra.mxu0 0.0
    %3047 = vmatprep.mubr.f32.mxu0 0.0
    %3048 = vmatmul.mubr.f32.gmra.mxu0 %v2981
    %v3049 = vpop.f32.mrf.mxu0
    %v3050 = vadd.f32 0.0, %v3049
    %v3051 = vpop.f32.mrf.mxu0
    %3052 = vdwg.mxu0
    %3053 = vrot.lane.b32.xlu0 %v1772, 120
    %v3054 = vpop.permute.xlu0 %3053
    %3055 = vrot.lane.b32.xlu0 %v1947, 120
    %v3056 = vpop.permute.xlu0 %3055
    %3057 = vrot.lane.b32.xlu0 %v1952, 120
    %v3058 = vpop.permute.xlu0 %3057
    %3059 = vrot.lane.b32.xlu0 %v1957, 120
    %v3060 = vpop.permute.xlu0 %3059
    %3061 = vrot.lane.b32.xlu0 %v1962, 120
    %v3062 = vpop.permute.xlu0 %3061
    %3063 = vrot.lane.b32.xlu0 %v1967, 120
    %v3064 = vpop.permute.xlu0 %3063
    %3065 = vrot.lane.b32.xlu0 %v1972, 120
    %v3066 = vpop.permute.xlu0 %3065
    %3067 = vrot.lane.b32.xlu0 %v1977, 120
    %v3068 = vpop.permute.xlu0 %3067
    %3069 = vrot.lane.b32.xlu0 %v1982, 120
    %v3070 = vpop.permute.xlu0 %3069
    %v3071 = vsel %vm194, %v3054, 0
    %v3073 = vsel %vm194, %v3056, 0
    %v3075 = vsel %vm194, %v3058, 0
    %v3077 = vsel %vm194, %v3060, 0
    %v3079 = vsel %vm194, %v3062, 0
    %v3081 = vsel %vm194, %v3064, 0
    %v3083 = vsel %vm194, %v3066, 0
    %v3085 = vsel %vm194, %v3068, 0
    %v3087 = vsel %vm194, %v3070, 0
    %3089 = vmatprep.subr.mxu0 0.0
    %3090 = vmatpush1.xpose.msra.mxu0 0.0
    %3091 = vmatprep.subr.mxu0 0.0
    %3092 = vmatpush1.xpose.msra.mxu0 0.0
    %3093 = vmatprep.subr.mxu0 0.0
    %3094 = vmatpush1.xpose.msra.mxu0 0.0
    %3095 = vmatprep.subr.mxu0 0.0
    %3096 = vmatpush1.xpose.msra.mxu0 0.0
    %3097 = vmatprep.subr.mxu0 0.0
    %3098 = vmatpush1.xpose.msra.mxu0 0.0
    %3099 = vmatprep.subr.mxu0 0.0
    %3100 = vmatpush1.xpose.msra.mxu0 0.0
    %3101 = vmatprep.subr.mxu0 0.0
    %3102 = vmatpush1.xpose.msra.mxu0 0.0
    %3103 = vmatprep.subr.mxu0 0.0
    %3104 = vmatpush1.xpose.msra.mxu0 0.0
    %3105 = vmatprep.subr.mxu0 0.0
    %3106 = vmatpush1.xpose.msra.mxu0 %v3087
    %3107 = vmatprep.subr.mxu0 0.0
    %3108 = vmatpush1.xpose.msra.mxu0 %v3085
    %3109 = vmatprep.subr.mxu0 0.0
    %3110 = vmatpush1.xpose.msra.mxu0 %v3083
    %3111 = vmatprep.subr.mxu0 0.0
    %3112 = vmatpush1.xpose.msra.mxu0 %v3081
    %3113 = vmatprep.subr.mxu0 0.0
    %3114 = vmatpush1.xpose.msra.mxu0 %v3079
    %3115 = vmatprep.subr.mxu0 0.0
    %3116 = vmatpush1.xpose.msra.mxu0 %v3077
    %3117 = vmatprep.subr.mxu0 0.0
    %3118 = vmatpush1.xpose.msra.mxu0 %v3075
    %3119 = vmatprep.subr.mxu0 0.0
    %3120 = vmatpush1.xpose.msra.mxu0 %v3073
    %3121 = vmatprep.subr.mxu0 0.0
    %3122 = vmatpush2.xpose.msra.mxu0 0.0
    %3123 = vmatprep.subr.mxu0 0.0
    %3124 = vmatpush2.xpose.msra.mxu0 0.0
    %3125 = vmatprep.subr.mxu0 0.0
    %3126 = vmatpush2.xpose.msra.mxu0 0.0
    %3127 = vmatprep.subr.mxu0 0.0
    %3128 = vmatpush2.xpose.msra.mxu0 0.0
    %3129 = vmatprep.subr.mxu0 0.0
    %3130 = vmatpush2.xpose.msra.mxu0 0.0
    %3131 = vmatprep.subr.mxu0 0.0
    %3132 = vmatpush2.xpose.msra.mxu0 0.0
    %3133 = vmatprep.subr.mxu0 0.0
    %3134 = vmatpush2.xpose.msra.mxu0 0.0
    %3135 = vmatprep.subr.mxu0 0.0
    %3136 = vmatpush2.xpose.msra.mxu0 0.0
    %3137 = vmatprep.subr.mxu0 0.0
    %3138 = vmatpush2.xpose.msra.mxu0 0.0
    %3139 = vmatprep.subr.mxu0 0.0
    %3140 = vmatpush2.xpose.msra.mxu0 0.0
    %3141 = vmatprep.subr.mxu0 0.0
    %3142 = vmatpush2.xpose.msra.mxu0 0.0
    %3143 = vmatprep.subr.mxu0 0.0
    %3144 = vmatpush2.xpose.msra.mxu0 0.0
    %3145 = vmatprep.subr.mxu0 0.0
    %3146 = vmatpush2.xpose.msra.mxu0 0.0
    %3147 = vmatprep.subr.mxu0 0.0
    %3148 = vmatpush2.xpose.msra.mxu0 0.0
    %3149 = vmatprep.subr.mxu0 0.0
    %3150 = vmatpush2.xpose.msra.mxu0 0.0
    %3151 = vmatprep.subr.mxu0 0.0
    %3152 = vmatpush2.xpose.msra.mxu0 0.0
    %3153 = vmatprep.mubr.f32.mxu0 0.0
    %3154 = vmatmul.mubr.f32.gmra.mxu0 %v3071
    %v3155 = vpop.f32.mrf.mxu0
    %v3156 = vadd.f32 0.0, %v3155
    %v3157 = vpop.f32.mrf.mxu0
    %3158 = vdwg.mxu0
    %v3159 = vsel %vm2082, %v3156, -inf
    %3160 = vmax.xlane.f32.xlu0 %v3159
    %v3161 = vpop.xlane.xlu0 %3160
    %v3162 = vsub.f32 %v3156, %v3161
    %v3163 = vmul.f32 %v3162, 1.442695
    %v3164 = vpow.pop %v3163
    %v3165 = vsel %vm2082, %v3164, 0.0
    %3166 = vadd.xlane.f32.xlu0 %v3165
    %v3167 = vpop.xlane.xlu0 %3166
    %v3168 = vrcp.pop %v3167
    %v3169 = vmul.f32 %v3164, %v3168
    %3170 = vrot.lane.b32.xlu0 %v1947, 88
    %v3171 = vpop.permute.xlu0 %3170
    %3172 = vrot.lane.b32.xlu0 %v1952, 88
    %v3173 = vpop.permute.xlu0 %3172
    %3174 = vrot.lane.b32.xlu0 %v1957, 88
    %v3175 = vpop.permute.xlu0 %3174
    %3176 = vrot.lane.b32.xlu0 %v1962, 88
    %v3177 = vpop.permute.xlu0 %3176
    %3178 = vrot.lane.b32.xlu0 %v1967, 88
    %v3179 = vpop.permute.xlu0 %3178
    %3180 = vrot.lane.b32.xlu0 %v1972, 88
    %v3181 = vpop.permute.xlu0 %3180
    %3182 = vrot.lane.b32.xlu0 %v1977, 88
    %v3183 = vpop.permute.xlu0 %3182
    %3184 = vrot.lane.b32.xlu0 %v1982, 88
    %v3185 = vpop.permute.xlu0 %3184
    %v3195 = vsel %vm2082, %v3169, 0
    %3197 = vmatprep.subr.mxu0 0.0
    %3198 = vmatpush1.msra.mxu0 0.0
    %3199 = vmatprep.subr.mxu0 0.0
    %3200 = vmatpush1.msra.mxu0 0.0
    %3201 = vmatprep.subr.mxu0 0.0
    %3202 = vmatpush1.msra.mxu0 0.0
    %3203 = vmatprep.subr.mxu0 0.0
    %3204 = vmatpush1.msra.mxu0 0.0
    %3205 = vmatprep.subr.mxu0 0.0
    %3206 = vmatpush1.msra.mxu0 0.0
    %3207 = vmatprep.subr.mxu0 0.0
    %3208 = vmatpush1.msra.mxu0 0.0
    %3209 = vmatprep.subr.mxu0 0.0
    %3210 = vmatpush1.msra.mxu0 0.0
    %3211 = vmatprep.subr.mxu0 0.0
    %3212 = vmatpush1.msra.mxu0 0.0
    %3213 = vmatprep.subr.mxu0 0.0
    %3214 = vmatpush1.msra.mxu0 %v3185
    %3215 = vmatprep.subr.mxu0 0.0
    %3216 = vmatpush1.msra.mxu0 %v3183
    %3217 = vmatprep.subr.mxu0 0.0
    %3218 = vmatpush1.msra.mxu0 %v3181
    %3219 = vmatprep.subr.mxu0 0.0
    %3220 = vmatpush1.msra.mxu0 %v3179
    %3221 = vmatprep.subr.mxu0 0.0
    %3222 = vmatpush1.msra.mxu0 %v3177
    %3223 = vmatprep.subr.mxu0 0.0
    %3224 = vmatpush1.msra.mxu0 %v3175
    %3225 = vmatprep.subr.mxu0 0.0
    %3226 = vmatpush1.msra.mxu0 %v3173
    %3227 = vmatprep.subr.mxu0 0.0
    %3228 = vmatpush1.msra.mxu0 %v3171
    %3229 = vmatprep.subr.mxu0 0.0
    %3230 = vmatpush2.msra.mxu0 0.0
    %3231 = vmatprep.subr.mxu0 0.0
    %3232 = vmatpush2.msra.mxu0 0.0
    %3233 = vmatprep.subr.mxu0 0.0
    %3234 = vmatpush2.msra.mxu0 0.0
    %3235 = vmatprep.subr.mxu0 0.0
    %3236 = vmatpush2.msra.mxu0 0.0
    %3237 = vmatprep.subr.mxu0 0.0
    %3238 = vmatpush2.msra.mxu0 0.0
    %3239 = vmatprep.subr.mxu0 0.0
    %3240 = vmatpush2.msra.mxu0 0.0
    %3241 = vmatprep.subr.mxu0 0.0
    %3242 = vmatpush2.msra.mxu0 0.0
    %3243 = vmatprep.subr.mxu0 0.0
    %3244 = vmatpush2.msra.mxu0 0.0
    %3245 = vmatprep.subr.mxu0 0.0
    %3246 = vmatpush2.msra.mxu0 0.0
    %3247 = vmatprep.subr.mxu0 0.0
    %3248 = vmatpush2.msra.mxu0 0.0
    %3249 = vmatprep.subr.mxu0 0.0
    %3250 = vmatpush2.msra.mxu0 0.0
    %3251 = vmatprep.subr.mxu0 0.0
    %3252 = vmatpush2.msra.mxu0 0.0
    %3253 = vmatprep.subr.mxu0 0.0
    %3254 = vmatpush2.msra.mxu0 0.0
    %3255 = vmatprep.subr.mxu0 0.0
    %3256 = vmatpush2.msra.mxu0 0.0
    %3257 = vmatprep.subr.mxu0 0.0
    %3258 = vmatpush2.msra.mxu0 0.0
    %3259 = vmatprep.subr.mxu0 0.0
    %3260 = vmatpush2.msra.mxu0 0.0
    %3261 = vmatprep.mubr.f32.mxu0 0.0
    %3262 = vmatmul.mubr.f32.gmra.mxu0 %v3195
    %v3263 = vpop.f32.mrf.mxu0
    %v3264 = vadd.f32 0.0, %v3263
    %v3265 = vpop.f32.mrf.mxu0
    %3266 = vdwg.mxu0
    %3267 = vrot.lane.b32.xlu0 %v1772, 112
    %v3268 = vpop.permute.xlu0 %3267
    %3269 = vrot.lane.b32.xlu0 %v1947, 112
    %v3270 = vpop.permute.xlu0 %3269
    %3271 = vrot.lane.b32.xlu0 %v1952, 112
    %v3272 = vpop.permute.xlu0 %3271
    %3273 = vrot.lane.b32.xlu0 %v1957, 112
    %v3274 = vpop.permute.xlu0 %3273
    %3275 = vrot.lane.b32.xlu0 %v1962, 112
    %v3276 = vpop.permute.xlu0 %3275
    %3277 = vrot.lane.b32.xlu0 %v1967, 112
    %v3278 = vpop.permute.xlu0 %3277
    %3279 = vrot.lane.b32.xlu0 %v1972, 112
    %v3280 = vpop.permute.xlu0 %3279
    %3281 = vrot.lane.b32.xlu0 %v1977, 112
    %v3282 = vpop.permute.xlu0 %3281
    %3283 = vrot.lane.b32.xlu0 %v1982, 112
    %v3284 = vpop.permute.xlu0 %3283
    %v3285 = vsel %vm194, %v3268, 0
    %v3287 = vsel %vm194, %v3270, 0
    %v3289 = vsel %vm194, %v3272, 0
    %v3291 = vsel %vm194, %v3274, 0
    %v3293 = vsel %vm194, %v3276, 0
    %v3295 = vsel %vm194, %v3278, 0
    %v3297 = vsel %vm194, %v3280, 0
    %v3299 = vsel %vm194, %v3282, 0
    %v3301 = vsel %vm194, %v3284, 0
    %3303 = vmatprep.subr.mxu0 0.0
    %3304 = vmatpush1.xpose.msra.mxu0 0.0
    %3305 = vmatprep.subr.mxu0 0.0
    %3306 = vmatpush1.xpose.msra.mxu0 0.0
    %3307 = vmatprep.subr.mxu0 0.0
    %3308 = vmatpush1.xpose.msra.mxu0 0.0
    %3309 = vmatprep.subr.mxu0 0.0
    %3310 = vmatpush1.xpose.msra.mxu0 0.0
    %3311 = vmatprep.subr.mxu0 0.0
    %3312 = vmatpush1.xpose.msra.mxu0 0.0
    %3313 = vmatprep.subr.mxu0 0.0
    %3314 = vmatpush1.xpose.msra.mxu0 0.0
    %3315 = vmatprep.subr.mxu0 0.0
    %3316 = vmatpush1.xpose.msra.mxu0 0.0
    %3317 = vmatprep.subr.mxu0 0.0
    %3318 = vmatpush1.xpose.msra.mxu0 0.0
    %3319 = vmatprep.subr.mxu0 0.0
    %3320 = vmatpush1.xpose.msra.mxu0 %v3301
    %3321 = vmatprep.subr.mxu0 0.0
    %3322 = vmatpush1.xpose.msra.mxu0 %v3299
    %3323 = vmatprep.subr.mxu0 0.0
    %3324 = vmatpush1.xpose.msra.mxu0 %v3297
    %3325 = vmatprep.subr.mxu0 0.0
    %3326 = vmatpush1.xpose.msra.mxu0 %v3295
    %3327 = vmatprep.subr.mxu0 0.0
    %3328 = vmatpush1.xpose.msra.mxu0 %v3293
    %3329 = vmatprep.subr.mxu0 0.0
    %3330 = vmatpush1.xpose.msra.mxu0 %v3291
    %3331 = vmatprep.subr.mxu0 0.0
    %3332 = vmatpush1.xpose.msra.mxu0 %v3289
    %3333 = vmatprep.subr.mxu0 0.0
    %3334 = vmatpush1.xpose.msra.mxu0 %v3287
    %3335 = vmatprep.subr.mxu0 0.0
    %3336 = vmatpush2.xpose.msra.mxu0 0.0
    %3337 = vmatprep.subr.mxu0 0.0
    %3338 = vmatpush2.xpose.msra.mxu0 0.0
    %3339 = vmatprep.subr.mxu0 0.0
    %3340 = vmatpush2.xpose.msra.mxu0 0.0
    %3341 = vmatprep.subr.mxu0 0.0
    %3342 = vmatpush2.xpose.msra.mxu0 0.0
    %3343 = vmatprep.subr.mxu0 0.0
    %3344 = vmatpush2.xpose.msra.mxu0 0.0
    %3345 = vmatprep.subr.mxu0 0.0
    %3346 = vmatpush2.xpose.msra.mxu0 0.0
    %3347 = vmatprep.subr.mxu0 0.0
    %3348 = vmatpush2.xpose.msra.mxu0 0.0
    %3349 = vmatprep.subr.mxu0 0.0
    %3350 = vmatpush2.xpose.msra.mxu0 0.0
    %3351 = vmatprep.subr.mxu0 0.0
    %3352 = vmatpush2.xpose.msra.mxu0 0.0
    %3353 = vmatprep.subr.mxu0 0.0
    %3354 = vmatpush2.xpose.msra.mxu0 0.0
    %3355 = vmatprep.subr.mxu0 0.0
    %3356 = vmatpush2.xpose.msra.mxu0 0.0
    %3357 = vmatprep.subr.mxu0 0.0
    %3358 = vmatpush2.xpose.msra.mxu0 0.0
    %3359 = vmatprep.subr.mxu0 0.0
    %3360 = vmatpush2.xpose.msra.mxu0 0.0
    %3361 = vmatprep.subr.mxu0 0.0
    %3362 = vmatpush2.xpose.msra.mxu0 0.0
    %3363 = vmatprep.subr.mxu0 0.0
    %3364 = vmatpush2.xpose.msra.mxu0 0.0
    %3365 = vmatprep.subr.mxu0 0.0
    %3366 = vmatpush2.xpose.msra.mxu0 0.0
    %3367 = vmatprep.mubr.f32.mxu0 0.0
    %3368 = vmatmul.mubr.f32.gmra.mxu0 %v3285
    %v3369 = vpop.f32.mrf.mxu0
    %v3370 = vadd.f32 0.0, %v3369
    %v3371 = vpop.f32.mrf.mxu0
    %3372 = vdwg.mxu0
    %v3373 = vsel %vm2082, %v3370, -inf
    %3374 = vmax.xlane.f32.xlu0 %v3373
    %v3375 = vpop.xlane.xlu0 %3374
    %v3376 = vsub.f32 %v3370, %v3375
    %v3377 = vmul.f32 %v3376, 1.442695
    %v3378 = vpow.pop %v3377
    %v3379 = vsel %vm2082, %v3378, 0.0
    %3380 = vadd.xlane.f32.xlu0 %v3379
    %v3381 = vpop.xlane.xlu0 %3380
    %v3382 = vrcp.pop %v3381
    %v3383 = vmul.f32 %v3378, %v3382
    %3384 = vrot.lane.b32.xlu0 %v1947, 80
    %v3385 = vpop.permute.xlu0 %3384
    %3386 = vrot.lane.b32.xlu0 %v1952, 80
    %v3387 = vpop.permute.xlu0 %3386
    %3388 = vrot.lane.b32.xlu0 %v1957, 80
    %v3389 = vpop.permute.xlu0 %3388
    %3390 = vrot.lane.b32.xlu0 %v1962, 80
    %v3391 = vpop.permute.xlu0 %3390
    %3392 = vrot.lane.b32.xlu0 %v1967, 80
    %v3393 = vpop.permute.xlu0 %3392
    %3394 = vrot.lane.b32.xlu0 %v1972, 80
    %v3395 = vpop.permute.xlu0 %3394
    %3396 = vrot.lane.b32.xlu0 %v1977, 80
    %v3397 = vpop.permute.xlu0 %3396
    %3398 = vrot.lane.b32.xlu0 %v1982, 80
    %v3399 = vpop.permute.xlu0 %3398
    %v3409 = vsel %vm2082, %v3383, 0
    %3411 = vmatprep.subr.mxu0 0.0
    %3412 = vmatpush1.msra.mxu0 0.0
    %3413 = vmatprep.subr.mxu0 0.0
    %3414 = vmatpush1.msra.mxu0 0.0
    %3415 = vmatprep.subr.mxu0 0.0
    %3416 = vmatpush1.msra.mxu0 0.0
    %3417 = vmatprep.subr.mxu0 0.0
    %3418 = vmatpush1.msra.mxu0 0.0
    %3419 = vmatprep.subr.mxu0 0.0
    %3420 = vmatpush1.msra.mxu0 0.0
    %3421 = vmatprep.subr.mxu0 0.0
    %3422 = vmatpush1.msra.mxu0 0.0
    %3423 = vmatprep.subr.mxu0 0.0
    %3424 = vmatpush1.msra.mxu0 0.0
    %3425 = vmatprep.subr.mxu0 0.0
    %3426 = vmatpush1.msra.mxu0 0.0
    %3427 = vmatprep.subr.mxu0 0.0
    %3428 = vmatpush1.msra.mxu0 %v3399
    %3429 = vmatprep.subr.mxu0 0.0
    %3430 = vmatpush1.msra.mxu0 %v3397
    %3431 = vmatprep.subr.mxu0 0.0
    %3432 = vmatpush1.msra.mxu0 %v3395
    %3433 = vmatprep.subr.mxu0 0.0
    %3434 = vmatpush1.msra.mxu0 %v3393
    %3435 = vmatprep.subr.mxu0 0.0
    %3436 = vmatpush1.msra.mxu0 %v3391
    %3437 = vmatprep.subr.mxu0 0.0
    %3438 = vmatpush1.msra.mxu0 %v3389
    %3439 = vmatprep.subr.mxu0 0.0
    %3440 = vmatpush1.msra.mxu0 %v3387
    %3441 = vmatprep.subr.mxu0 0.0
    %3442 = vmatpush1.msra.mxu0 %v3385
    %3443 = vmatprep.subr.mxu0 0.0
    %3444 = vmatpush2.msra.mxu0 0.0
    %3445 = vmatprep.subr.mxu0 0.0
    %3446 = vmatpush2.msra.mxu0 0.0
    %3447 = vmatprep.subr.mxu0 0.0
    %3448 = vmatpush2.msra.mxu0 0.0
    %3449 = vmatprep.subr.mxu0 0.0
    %3450 = vmatpush2.msra.mxu0 0.0
    %3451 = vmatprep.subr.mxu0 0.0
    %3452 = vmatpush2.msra.mxu0 0.0
    %3453 = vmatprep.subr.mxu0 0.0
    %3454 = vmatpush2.msra.mxu0 0.0
    %3455 = vmatprep.subr.mxu0 0.0
    %3456 = vmatpush2.msra.mxu0 0.0
    %3457 = vmatprep.subr.mxu0 0.0
    %3458 = vmatpush2.msra.mxu0 0.0
    %3459 = vmatprep.subr.mxu0 0.0
    %3460 = vmatpush2.msra.mxu0 0.0
    %3461 = vmatprep.subr.mxu0 0.0
    %3462 = vmatpush2.msra.mxu0 0.0
    %3463 = vmatprep.subr.mxu0 0.0
    %3464 = vmatpush2.msra.mxu0 0.0
    %3465 = vmatprep.subr.mxu0 0.0
    %3466 = vmatpush2.msra.mxu0 0.0
    %3467 = vmatprep.subr.mxu0 0.0
    %3468 = vmatpush2.msra.mxu0 0.0
    %3469 = vmatprep.subr.mxu0 0.0
    %3470 = vmatpush2.msra.mxu0 0.0
    %3471 = vmatprep.subr.mxu0 0.0
    %3472 = vmatpush2.msra.mxu0 0.0
    %3473 = vmatprep.subr.mxu0 0.0
    %3474 = vmatpush2.msra.mxu0 0.0
    %3475 = vmatprep.mubr.f32.mxu0 0.0
    %3476 = vmatmul.mubr.f32.gmra.mxu0 %v3409
    %v3477 = vpop.f32.mrf.mxu0
    %v3478 = vadd.f32 0.0, %v3477
    %v3479 = vpop.f32.mrf.mxu0
    %3480 = vdwg.mxu0
    %3481 = vrot.lane.b32.xlu0 %v1772, 104
    %v3482 = vpop.permute.xlu0 %3481
    %3483 = vrot.lane.b32.xlu0 %v1947, 104
    %v3484 = vpop.permute.xlu0 %3483
    %3485 = vrot.lane.b32.xlu0 %v1952, 104
    %v3486 = vpop.permute.xlu0 %3485
    %3487 = vrot.lane.b32.xlu0 %v1957, 104
    %v3488 = vpop.permute.xlu0 %3487
    %3489 = vrot.lane.b32.xlu0 %v1962, 104
    %v3490 = vpop.permute.xlu0 %3489
    %3491 = vrot.lane.b32.xlu0 %v1967, 104
    %v3492 = vpop.permute.xlu0 %3491
    %3493 = vrot.lane.b32.xlu0 %v1972, 104
    %v3494 = vpop.permute.xlu0 %3493
    %3495 = vrot.lane.b32.xlu0 %v1977, 104
    %v3496 = vpop.permute.xlu0 %3495
    %3497 = vrot.lane.b32.xlu0 %v1982, 104
    %v3498 = vpop.permute.xlu0 %3497
    %v3499 = vsel %vm194, %v3482, 0
    %v3501 = vsel %vm194, %v3484, 0
    %v3503 = vsel %vm194, %v3486, 0
    %v3505 = vsel %vm194, %v3488, 0
    %v3507 = vsel %vm194, %v3490, 0
    %v3509 = vsel %vm194, %v3492, 0
    %v3511 = vsel %vm194, %v3494, 0
    %v3513 = vsel %vm194, %v3496, 0
    %v3515 = vsel %vm194, %v3498, 0
    %3517 = vmatprep.subr.mxu0 0.0
    %3518 = vmatpush1.xpose.msra.mxu0 0.0
    %3519 = vmatprep.subr.mxu0 0.0
    %3520 = vmatpush1.xpose.msra.mxu0 0.0
    %3521 = vmatprep.subr.mxu0 0.0
    %3522 = vmatpush1.xpose.msra.mxu0 0.0
    %3523 = vmatprep.subr.mxu0 0.0
    %3524 = vmatpush1.xpose.msra.mxu0 0.0
    %3525 = vmatprep.subr.mxu0 0.0
    %3526 = vmatpush1.xpose.msra.mxu0 0.0
    %3527 = vmatprep.subr.mxu0 0.0
    %3528 = vmatpush1.xpose.msra.mxu0 0.0
    %3529 = vmatprep.subr.mxu0 0.0
    %3530 = vmatpush1.xpose.msra.mxu0 0.0
    %3531 = vmatprep.subr.mxu0 0.0
    %3532 = vmatpush1.xpose.msra.mxu0 0.0
    %3533 = vmatprep.subr.mxu0 0.0
    %3534 = vmatpush1.xpose.msra.mxu0 %v3515
    %3535 = vmatprep.subr.mxu0 0.0
    %3536 = vmatpush1.xpose.msra.mxu0 %v3513
    %3537 = vmatprep.subr.mxu0 0.0
    %3538 = vmatpush1.xpose.msra.mxu0 %v3511
    %3539 = vmatprep.subr.mxu0 0.0
    %3540 = vmatpush1.xpose.msra.mxu0 %v3509
    %3541 = vmatprep.subr.mxu0 0.0
    %3542 = vmatpush1.xpose.msra.mxu0 %v3507
    %3543 = vmatprep.subr.mxu0 0.0
    %3544 = vmatpush1.xpose.msra.mxu0 %v3505
    %3545 = vmatprep.subr.mxu0 0.0
    %3546 = vmatpush1.xpose.msra.mxu0 %v3503
    %3547 = vmatprep.subr.mxu0 0.0
    %3548 = vmatpush1.xpose.msra.mxu0 %v3501
    %3549 = vmatprep.subr.mxu0 0.0
    %3550 = vmatpush2.xpose.msra.mxu0 0.0
    %3551 = vmatprep.subr.mxu0 0.0
    %3552 = vmatpush2.xpose.msra.mxu0 0.0
    %3553 = vmatprep.subr.mxu0 0.0
    %3554 = vmatpush2.xpose.msra.mxu0 0.0
    %3555 = vmatprep.subr.mxu0 0.0
    %3556 = vmatpush2.xpose.msra.mxu0 0.0
    %3557 = vmatprep.subr.mxu0 0.0
    %3558 = vmatpush2.xpose.msra.mxu0 0.0
    %3559 = vmatprep.subr.mxu0 0.0
    %3560 = vmatpush2.xpose.msra.mxu0 0.0
    %3561 = vmatprep.subr.mxu0 0.0
    %3562 = vmatpush2.xpose.msra.mxu0 0.0
    %3563 = vmatprep.subr.mxu0 0.0
    %3564 = vmatpush2.xpose.msra.mxu0 0.0
    %3565 = vmatprep.subr.mxu0 0.0
    %3566 = vmatpush2.xpose.msra.mxu0 0.0
    %3567 = vmatprep.subr.mxu0 0.0
    %3568 = vmatpush2.xpose.msra.mxu0 0.0
    %3569 = vmatprep.subr.mxu0 0.0
    %3570 = vmatpush2.xpose.msra.mxu0 0.0
    %3571 = vmatprep.subr.mxu0 0.0
    %3572 = vmatpush2.xpose.msra.mxu0 0.0
    %3573 = vmatprep.subr.mxu0 0.0
    %3574 = vmatpush2.xpose.msra.mxu0 0.0
    %3575 = vmatprep.subr.mxu0 0.0
    %3576 = vmatpush2.xpose.msra.mxu0 0.0
    %3577 = vmatprep.subr.mxu0 0.0
    %3578 = vmatpush2.xpose.msra.mxu0 0.0
    %3579 = vmatprep.subr.mxu0 0.0
    %3580 = vmatpush2.xpose.msra.mxu0 0.0
    %3581 = vmatprep.mubr.f32.mxu0 0.0
    %3582 = vmatmul.mubr.f32.gmra.mxu0 %v3499
    %v3583 = vpop.f32.mrf.mxu0
    %v3584 = vadd.f32 0.0, %v3583
    %v3585 = vpop.f32.mrf.mxu0
    %3586 = vdwg.mxu0
    %v3587 = vsel %vm2082, %v3584, -inf
    %3588 = vmax.xlane.f32.xlu0 %v3587
    %v3589 = vpop.xlane.xlu0 %3588
    %v3590 = vsub.f32 %v3584, %v3589
    %v3591 = vmul.f32 %v3590, 1.442695
    %v3592 = vpow.pop %v3591
    %v3593 = vsel %vm2082, %v3592, 0.0
    %3594 = vadd.xlane.f32.xlu0 %v3593
    %v3595 = vpop.xlane.xlu0 %3594
    %v3596 = vrcp.pop %v3595
    %v3597 = vmul.f32 %v3592, %v3596
    %3598 = vrot.lane.b32.xlu0 %v1947, 72
    %v3599 = vpop.permute.xlu0 %3598
    %3600 = vrot.lane.b32.xlu0 %v1952, 72
    %v3601 = vpop.permute.xlu0 %3600
    %3602 = vrot.lane.b32.xlu0 %v1957, 72
    %v3603 = vpop.permute.xlu0 %3602
    %3604 = vrot.lane.b32.xlu0 %v1962, 72
    %v3605 = vpop.permute.xlu0 %3604
    %3606 = vrot.lane.b32.xlu0 %v1967, 72
    %v3607 = vpop.permute.xlu0 %3606
    %3608 = vrot.lane.b32.xlu0 %v1972, 72
    %v3609 = vpop.permute.xlu0 %3608
    %3610 = vrot.lane.b32.xlu0 %v1977, 72
    %v3611 = vpop.permute.xlu0 %3610
    %3612 = vrot.lane.b32.xlu0 %v1982, 72
    %v3613 = vpop.permute.xlu0 %3612
    %v3623 = vsel %vm2082, %v3597, 0
    %3625 = vmatprep.subr.mxu0 0.0
    %3626 = vmatpush1.msra.mxu0 0.0
    %3627 = vmatprep.subr.mxu0 0.0
    %3628 = vmatpush1.msra.mxu0 0.0
    %3629 = vmatprep.subr.mxu0 0.0
    %3630 = vmatpush1.msra.mxu0 0.0
    %3631 = vmatprep.subr.mxu0 0.0
    %3632 = vmatpush1.msra.mxu0 0.0
    %3633 = vmatprep.subr.mxu0 0.0
    %3634 = vmatpush1.msra.mxu0 0.0
    %3635 = vmatprep.subr.mxu0 0.0
    %3636 = vmatpush1.msra.mxu0 0.0
    %3637 = vmatprep.subr.mxu0 0.0
    %3638 = vmatpush1.msra.mxu0 0.0
    %3639 = vmatprep.subr.mxu0 0.0
    %3640 = vmatpush1.msra.mxu0 0.0
    %3641 = vmatprep.subr.mxu0 0.0
    %3642 = vmatpush1.msra.mxu0 %v3613
    %3643 = vmatprep.subr.mxu0 0.0
    %3644 = vmatpush1.msra.mxu0 %v3611
    %3645 = vmatprep.subr.mxu0 0.0
    %3646 = vmatpush1.msra.mxu0 %v3609
    %3647 = vmatprep.subr.mxu0 0.0
    %3648 = vmatpush1.msra.mxu0 %v3607
    %3649 = vmatprep.subr.mxu0 0.0
    %3650 = vmatpush1.msra.mxu0 %v3605
    %3651 = vmatprep.subr.mxu0 0.0
    %3652 = vmatpush1.msra.mxu0 %v3603
    %3653 = vmatprep.subr.mxu0 0.0
    %3654 = vmatpush1.msra.mxu0 %v3601
    %3655 = vmatprep.subr.mxu0 0.0
    %3656 = vmatpush1.msra.mxu0 %v3599
    %3657 = vmatprep.subr.mxu0 0.0
    %3658 = vmatpush2.msra.mxu0 0.0
    %3659 = vmatprep.subr.mxu0 0.0
    %3660 = vmatpush2.msra.mxu0 0.0
    %3661 = vmatprep.subr.mxu0 0.0
    %3662 = vmatpush2.msra.mxu0 0.0
    %3663 = vmatprep.subr.mxu0 0.0
    %3664 = vmatpush2.msra.mxu0 0.0
    %3665 = vmatprep.subr.mxu0 0.0
    %3666 = vmatpush2.msra.mxu0 0.0
    %3667 = vmatprep.subr.mxu0 0.0
    %3668 = vmatpush2.msra.mxu0 0.0
    %3669 = vmatprep.subr.mxu0 0.0
    %3670 = vmatpush2.msra.mxu0 0.0
    %3671 = vmatprep.subr.mxu0 0.0
    %3672 = vmatpush2.msra.mxu0 0.0
    %3673 = vmatprep.subr.mxu0 0.0
    %3674 = vmatpush2.msra.mxu0 0.0
    %3675 = vmatprep.subr.mxu0 0.0
    %3676 = vmatpush2.msra.mxu0 0.0
    %3677 = vmatprep.subr.mxu0 0.0
    %3678 = vmatpush2.msra.mxu0 0.0
    %3679 = vmatprep.subr.mxu0 0.0
    %3680 = vmatpush2.msra.mxu0 0.0
    %3681 = vmatprep.subr.mxu0 0.0
    %3682 = vmatpush2.msra.mxu0 0.0
    %3683 = vmatprep.subr.mxu0 0.0
    %3684 = vmatpush2.msra.mxu0 0.0
    %3685 = vmatprep.subr.mxu0 0.0
    %3686 = vmatpush2.msra.mxu0 0.0
    %3687 = vmatprep.subr.mxu0 0.0
    %3688 = vmatpush2.msra.mxu0 0.0
    %3689 = vmatprep.mubr.f32.mxu0 0.0
    %3690 = vmatmul.mubr.f32.gmra.mxu0 %v3623
    %v3691 = vpop.f32.mrf.mxu0
    %v3692 = vadd.f32 0.0, %v3691
    %v3693 = vpop.f32.mrf.mxu0
    %3694 = vdwg.mxu0
    %3696 = vrot.lane.b32.xlu0 %v3264, 8
    %v3697 = vpop.permute.xlu0 %3696
    %3700 = vrot.lane.b32.xlu0 %v3478, 16
    %v3701 = vpop.permute.xlu0 %3700
    %3704 = vrot.lane.b32.xlu0 %v3692, 24
    %v3705 = vpop.permute.xlu0 %3704
    %v3707 = vsel %vm194, %v3050, %v3697
    %v3708 = vsel %vm865, %v3707, %v3701
    %v3709 = vsel %vm867, %v3708, %v3705
    %v3710 = vld [vmem:[%s10] sm:$0xff]
    %v3711 = vld [vmem:[%s10 + $0x8] sm:$0xff]
    %v3712 = vld [vmem:[%s10 + $0x10] sm:$0xff]
    %v3713 = vld [vmem:[%s10 + $0x18] sm:$0xff]
    %v3714 = vld [vmem:[%s11] sm:$0x1]
    %v3716 = vlaneseq
    %v3717 = vshrl.u32 %v3716, 7
    %v3718 = vsub.s32 0, %v3717
    %v3719 = vrot.slane %v3714, %v3718
    %v3722 = vsel %vm97, %v2847, 0
    %v3725 = vsel %vm97, %v3709, 0
    %3727 = vmatprep.subr.mxu0 0.0
    %3728 = vmatpush1.msra.mxu0 0.0
    %3729 = vmatprep.subr.mxu0 0.0
    %3730 = vmatpush1.msra.mxu0 0.0
    %3731 = vmatprep.subr.mxu0 0.0
    %3732 = vmatpush1.msra.mxu0 0.0
    %3733 = vmatprep.subr.mxu0 0.0
    %3734 = vmatpush1.msra.mxu0 0.0
    %3735 = vmatprep.subr.mxu0 0.0
    %3736 = vmatpush1.msra.mxu0 0.0
    %3737 = vmatprep.subr.mxu0 0.0
    %3738 = vmatpush1.msra.mxu0 0.0
    %3739 = vmatprep.subr.mxu0 0.0
    %3740 = vmatpush1.msra.mxu0 0.0
    %3741 = vmatprep.subr.mxu0 0.0
    %3742 = vmatpush1.msra.mxu0 0.0
    %3743 = vmatprep.subr.mxu0 0.0
    %3744 = vmatpush1.msra.mxu0 0.0
    %3745 = vmatprep.subr.mxu0 0.0
    %3746 = vmatpush1.msra.mxu0 0.0
    %3747 = vmatprep.subr.mxu0 0.0
    %3748 = vmatpush1.msra.mxu0 0.0
    %3749 = vmatprep.subr.mxu0 0.0
    %3750 = vmatpush1.msra.mxu0 0.0
    %3751 = vmatprep.subr.mxu0 0.0
    %3752 = vmatpush1.msra.mxu0 %v3713
    %3753 = vmatprep.subr.mxu0 0.0
    %3754 = vmatpush1.msra.mxu0 %v3712
    %3755 = vmatprep.subr.mxu0 0.0
    %3756 = vmatpush1.msra.mxu0 %v3711
    %3757 = vmatprep.subr.mxu0 0.0
    %3758 = vmatpush1.msra.mxu0 %v3710
    %3759 = vmatprep.subr.mxu0 0.0
    %3760 = vmatpush2.msra.mxu0 0.0
    %3761 = vmatprep.subr.mxu0 0.0
    %3762 = vmatpush2.msra.mxu0 0.0
    %3763 = vmatprep.subr.mxu0 0.0
    %3764 = vmatpush2.msra.mxu0 0.0
    %3765 = vmatprep.subr.mxu0 0.0
    %3766 = vmatpush2.msra.mxu0 0.0
    %3767 = vmatprep.subr.mxu0 0.0
    %3768 = vmatpush2.msra.mxu0 0.0
    %3769 = vmatprep.subr.mxu0 0.0
    %3770 = vmatpush2.msra.mxu0 0.0
    %3771 = vmatprep.subr.mxu0 0.0
    %3772 = vmatpush2.msra.mxu0 0.0
    %3773 = vmatprep.subr.mxu0 0.0
    %3774 = vmatpush2.msra.mxu0 0.0
    %3775 = vmatprep.subr.mxu0 0.0
    %3776 = vmatpush2.msra.mxu0 0.0
    %3777 = vmatprep.subr.mxu0 0.0
    %3778 = vmatpush2.msra.mxu0 0.0
    %3779 = vmatprep.subr.mxu0 0.0
    %3780 = vmatpush2.msra.mxu0 0.0
    %3781 = vmatprep.subr.mxu0 0.0
    %3782 = vmatpush2.msra.mxu0 0.0
    %3783 = vmatprep.subr.mxu0 0.0
    %3784 = vmatpush2.msra.mxu0 0.0
    %3785 = vmatprep.subr.mxu0 0.0
    %3786 = vmatpush2.msra.mxu0 0.0
    %3787 = vmatprep.subr.mxu0 0.0
    %3788 = vmatpush2.msra.mxu0 0.0
    %3789 = vmatprep.subr.mxu0 0.0
    %3790 = vmatpush2.msra.mxu0 0.0
    %3791 = vmatprep.mubr.f32.mxu0 0.0
    %3792 = vmatmul.mubr.f32.gmra.mxu0 %v3722
    %v3793 = vpop.f32.mrf.mxu0
    %v3794 = vadd.f32 %v3719, %v3793
    %v3795 = vpop.f32.mrf.mxu0
    %3796 = vmatprep.mubr.f32.mxu0 0.0
    %3797 = vmatmul.mubr.f32.gmra.mxu0 %v3725
    %v3798 = vpop.f32.mrf.mxu0
    %v3799 = vadd.f32 %v3719, %v3798
    %v3800 = vpop.f32.mrf.mxu0
    %3801 = vdwg.mxu0
    %v3802 = vadd.f32 %v1677, %v3794
    %v3803 = vadd.f32 %v1678, %v3799
    %v3804 = vld [vmem:[%s12 + $0x1] sm:$0x1]
    %v3805 = vld [vmem:[%s13 + $0x1] sm:$0x1]
    %v3806 = vsel %vm97, %v3802, 0.0
    %3807 = vadd.xlane.f32.xlu0 %v3806
    %v3808 = vpop.xlane.xlu0 %3807
    %v3809 = vsel %vm97, %v3803, 0.0
    %3810 = vadd.xlane.f32.xlu0 %v3809
    %v3811 = vpop.xlane.xlu0 %3810
    %v3812 = vmul.f32 %v3808, %v1646
    %v3813 = vmul.f32 %v3811, %v1646
    %v3814 = vsub.f32 %v3802, %v3812
    %v3815 = vsub.f32 %v3803, %v3813
    %v3816 = vmul.f32 %v3814, %v3814
    %v3817 = vmul.f32 %v3815, %v3815
    %v3818 = vsel %vm97, %v3816, 0.0
    %3819 = vadd.xlane.f32.xlu0 %v3818
    %v3820 = vpop.xlane.xlu0 %3819
    %v3821 = vsel %vm97, %v3817, 0.0
    %3822 = vadd.xlane.f32.xlu0 %v3821
    %v3823 = vpop.xlane.xlu0 %3822
    %v3824 = vmul.f32 %v3820, %v1646
    %v3825 = vmul.f32 %v3823, %v1646
    %v3826 = vadd.f32 %v3824, 1e-05
    %v3827 = vadd.f32 %v3825, 1e-05
    %v3828 = vrsqrt.pop %v3826
    %v3829 = vrsqrt.pop %v3827
    %v3830 = vmul.f32 %v3814, %v3828
    %v3831 = vmul.f32 %v3815, %v3829
    %v3832 = vlaneseq
    %v3833 = vshrl.u32 %v3832, 7
    %v3834 = vsub.s32 0, %v3833
    %v3835 = vrot.slane %v3804, %v3834
    %v3836 = vmul.f32 %v3830, %v3835
    %v3837 = vmul.f32 %v3831, %v3835
    %v3838 = vlaneseq
    %v3839 = vshrl.u32 %v3838, 7
    %v3840 = vsub.s32 0, %v3839
    %v3841 = vrot.slane %v3805, %v3840
    %v3842 = vadd.f32 %v3836, %v3841
    %v3843 = vadd.f32 %v3837, %v3841
    %v3844 = vld [vmem:[%s14] sm:$0xff]
    %v3845 = vld [vmem:[%s14 + $0x8] sm:$0xff]
    %v3846 = vld [vmem:[%s14 + $0x10] sm:$0xff]
    %v3847 = vld [vmem:[%s14 + $0x18] sm:$0xff]
    %v3848 = vld [vmem:[%s15] sm:$0x1]
    %v3850 = vlaneseq
    %v3851 = vshrl.u32 %v3850, 7
    %v3852 = vsub.s32 0, %v3851
    %v3853 = vrot.slane %v3848, %v3852
    %v3856 = vsel %vm97, %v3842, 0
    %v3859 = vsel %vm97, %v3843, 0
    %3861 = vmatprep.subr.mxu0 0.0
    %3862 = vmatpush1.msra.mxu0 0.0
    %3863 = vmatprep.subr.mxu0 0.0
    %3864 = vmatpush1.msra.mxu0 0.0
    %3865 = vmatprep.subr.mxu0 0.0
    %3866 = vmatpush1.msra.mxu0 0.0
    %3867 = vmatprep.subr.mxu0 0.0
    %3868 = vmatpush1.msra.mxu0 0.0
    %3869 = vmatprep.subr.mxu0 0.0
    %3870 = vmatpush1.msra.mxu0 0.0
    %3871 = vmatprep.subr.mxu0 0.0
    %3872 = vmatpush1.msra.mxu0 0.0
    %3873 = vmatprep.subr.mxu0 0.0
    %3874 = vmatpush1.msra.mxu0 0.0
    %3875 = vmatprep.subr.mxu0 0.0
    %3876 = vmatpush1.msra.mxu0 0.0
    %3877 = vmatprep.subr.mxu0 0.0
    %3878 = vmatpush1.msra.mxu0 0.0
    %3879 = vmatprep.subr.mxu0 0.0
    %3880 = vmatpush1.msra.mxu0 0.0
    %3881 = vmatprep.subr.mxu0 0.0
    %3882 = vmatpush1.msra.mxu0 0.0
    %3883 = vmatprep.subr.mxu0 0.0
    %3884 = vmatpush1.msra.mxu0 0.0
    %3885 = vmatprep.subr.mxu0 0.0
    %3886 = vmatpush1.msra.mxu0 %v3847
    %3887 = vmatprep.subr.mxu0 0.0
    %3888 = vmatpush1.msra.mxu0 %v3846
    %3889 = vmatprep.subr.mxu0 0.0
    %3890 = vmatpush1.msra.mxu0 %v3845
    %3891 = vmatprep.subr.mxu0 0.0
    %3892 = vmatpush1.msra.mxu0 %v3844
    %3893 = vmatprep.subr.mxu0 0.0
    %3894 = vmatpush2.msra.mxu0 0.0
    %3895 = vmatprep.subr.mxu0 0.0
    %3896 = vmatpush2.msra.mxu0 0.0
    %3897 = vmatprep.subr.mxu0 0.0
    %3898 = vmatpush2.msra.mxu0 0.0
    %3899 = vmatprep.subr.mxu0 0.0
    %3900 = vmatpush2.msra.mxu0 0.0
    %3901 = vmatprep.subr.mxu0 0.0
    %3902 = vmatpush2.msra.mxu0 0.0
    %3903 = vmatprep.subr.mxu0 0.0
    %3904 = vmatpush2.msra.mxu0 0.0
    %3905 = vmatprep.subr.mxu0 0.0
    %3906 = vmatpush2.msra.mxu0 0.0
    %3907 = vmatprep.subr.mxu0 0.0
    %3908 = vmatpush2.msra.mxu0 0.0
    %3909 = vmatprep.subr.mxu0 0.0
    %3910 = vmatpush2.msra.mxu0 0.0
    %3911 = vmatprep.subr.mxu0 0.0
    %3912 = vmatpush2.msra.mxu0 0.0
    %3913 = vmatprep.subr.mxu0 0.0
    %3914 = vmatpush2.msra.mxu0 0.0
    %3915 = vmatprep.subr.mxu0 0.0
    %3916 = vmatpush2.msra.mxu0 0.0
    %3917 = vmatprep.subr.mxu0 0.0
    %3918 = vmatpush2.msra.mxu0 0.0
    %3919 = vmatprep.subr.mxu0 0.0
    %3920 = vmatpush2.msra.mxu0 0.0
    %3921 = vmatprep.subr.mxu0 0.0
    %3922 = vmatpush2.msra.mxu0 0.0
    %3923 = vmatprep.subr.mxu0 0.0
    %3924 = vmatpush2.msra.mxu0 0.0
    %3925 = vmatprep.mubr.f32.mxu0 0.0
    %3926 = vmatmul.mubr.f32.gmra.mxu0 %v3856
    %v3927 = vpop.f32.mrf.mxu0
    %v3928 = vadd.f32 %v3853, %v3927
    %v3929 = vpop.f32.mrf.mxu0
    %3930 = vmatprep.mubr.f32.mxu0 0.0
    %3931 = vmatmul.mubr.f32.gmra.mxu0 %v3859
    %v3932 = vpop.f32.mrf.mxu0
    %v3933 = vadd.f32 %v3853, %v3932
    %v3934 = vpop.f32.mrf.mxu0
    %3935 = vdwg.mxu0
    %v3936 = vmax.f32 %v3928, 0.0
    %v3937 = vmax.f32 %v3933, 0.0
    %v3938 = vld [vmem:[%s16] sm:$0xff]
    %v3939 = vld [vmem:[%s16 + $0x8] sm:$0xff]
    %v3940 = vld [vmem:[%s16 + $0x10] sm:$0xff]
    %v3941 = vld [vmem:[%s16 + $0x18] sm:$0xff]
    %v3942 = vld [vmem:[%s16 + $0x20] sm:$0xff]
    %v3943 = vld [vmem:[%s16 + $0x28] sm:$0xff]
    %v3944 = vld [vmem:[%s16 + $0x30] sm:$0xff]
    %v3945 = vld [vmem:[%s16 + $0x38] sm:$0xff]
    %v3946 = vld [vmem:[%s17] sm:$0x1]
    %v3948 = vlaneseq
    %v3949 = vshrl.u32 %v3948, 7
    %v3950 = vsub.s32 0, %v3949
    %v3951 = vrot.slane %v3946, %v3950
    %v3954 = vsel %vm2082, %v3936, 0
    %v3957 = vsel %vm2082, %v3937, 0
    %3959 = vmatprep.subr.mxu0 0.0
    %3960 = vmatpush1.msra.mxu0 0.0
    %3961 = vmatprep.subr.mxu0 0.0
    %3962 = vmatpush1.msra.mxu0 0.0
    %3963 = vmatprep.subr.mxu0 0.0
    %3964 = vmatpush1.msra.mxu0 0.0
    %3965 = vmatprep.subr.mxu0 0.0
    %3966 = vmatpush1.msra.mxu0 0.0
    %3967 = vmatprep.subr.mxu0 0.0
    %3968 = vmatpush1.msra.mxu0 0.0
    %3969 = vmatprep.subr.mxu0 0.0
    %3970 = vmatpush1.msra.mxu0 0.0
    %3971 = vmatprep.subr.mxu0 0.0
    %3972 = vmatpush1.msra.mxu0 0.0
    %3973 = vmatprep.subr.mxu0 0.0
    %3974 = vmatpush1.msra.mxu0 0.0
    %3975 = vmatprep.subr.mxu0 0.0
    %3976 = vmatpush1.msra.mxu0 %v3945
    %3977 = vmatprep.subr.mxu0 0.0
    %3978 = vmatpush1.msra.mxu0 %v3944
    %3979 = vmatprep.subr.mxu0 0.0
    %3980 = vmatpush1.msra.mxu0 %v3943
    %3981 = vmatprep.subr.mxu0 0.0
    %3982 = vmatpush1.msra.mxu0 %v3942
    %3983 = vmatprep.subr.mxu0 0.0
    %3984 = vmatpush1.msra.mxu0 %v3941
    %3985 = vmatprep.subr.mxu0 0.0
    %3986 = vmatpush1.msra.mxu0 %v3940
    %3987 = vmatprep.subr.mxu0 0.0
    %3988 = vmatpush1.msra.mxu0 %v3939
    %3989 = vmatprep.subr.mxu0 0.0
    %3990 = vmatpush1.msra.mxu0 %v3938
    %3991 = vmatprep.subr.mxu0 0.0
    %3992 = vmatpush2.msra.mxu0 0.0
    %3993 = vmatprep.subr.mxu0 0.0
    %3994 = vmatpush2.msra.mxu0 0.0
    %3995 = vmatprep.subr.mxu0 0.0
    %3996 = vmatpush2.msra.mxu0 0.0
    %3997 = vmatprep.subr.mxu0 0.0
    %3998 = vmatpush2.msra.mxu0 0.0
    %3999 = vmatprep.subr.mxu0 0.0
    %4000 = vmatpush2.msra.mxu0 0.0
    %4001 = vmatprep.subr.mxu0 0.0
    %4002 = vmatpush2.msra.mxu0 0.0
    %4003 = vmatprep.subr.mxu0 0.0
    %4004 = vmatpush2.msra.mxu0 0.0
    %4005 = vmatprep.subr.mxu0 0.0
    %4006 = vmatpush2.msra.mxu0 0.0
    %4007 = vmatprep.subr.mxu0 0.0
    %4008 = vmatpush2.msra.mxu0 0.0
    %4009 = vmatprep.subr.mxu0 0.0
    %4010 = vmatpush2.msra.mxu0 0.0
    %4011 = vmatprep.subr.mxu0 0.0
    %4012 = vmatpush2.msra.mxu0 0.0
    %4013 = vmatprep.subr.mxu0 0.0
    %4014 = vmatpush2.msra.mxu0 0.0
    %4015 = vmatprep.subr.mxu0 0.0
    %4016 = vmatpush2.msra.mxu0 0.0
    %4017 = vmatprep.subr.mxu0 0.0
    %4018 = vmatpush2.msra.mxu0 0.0
    %4019 = vmatprep.subr.mxu0 0.0
    %4020 = vmatpush2.msra.mxu0 0.0
    %4021 = vmatprep.subr.mxu0 0.0
    %4022 = vmatpush2.msra.mxu0 0.0
    %4023 = vmatprep.mubr.f32.mxu0 0.0
    %4024 = vmatmul.mubr.f32.gmra.mxu0 %v3954
    %v4025 = vpop.f32.mrf.mxu0
    %v4026 = vadd.f32 %v3951, %v4025
    %v4027 = vpop.f32.mrf.mxu0
    %4028 = vmatprep.mubr.f32.mxu0 0.0
    %4029 = vmatmul.mubr.f32.gmra.mxu0 %v3957
    %v4030 = vpop.f32.mrf.mxu0
    %v4031 = vadd.f32 %v3951, %v4030
    %v4032 = vpop.f32.mrf.mxu0
    %4033 = vdwg.mxu0
    %v4034 = vadd.f32 %v3842, %v4026
    %v4035 = vadd.f32 %v3843, %v4031
    %v4036 = vld [vmem:[%s12 + $0x2] sm:$0x1]
    %v4037 = vld [vmem:[%s13 + $0x2] sm:$0x1]
    %v4038 = vsel %vm97, %v4034, 0.0
    %4039 = vadd.xlane.f32.xlu0 %v4038
    %v4040 = vpop.xlane.xlu0 %4039
    %v4041 = vsel %vm97, %v4035, 0.0
    %4042 = vadd.xlane.f32.xlu0 %v4041
    %v4043 = vpop.xlane.xlu0 %4042
    %v4044 = vmul.f32 %v4040, %v1646
    %v4045 = vmul.f32 %v4043, %v1646
    %v4046 = vsub.f32 %v4034, %v4044
    %v4047 = vsub.f32 %v4035, %v4045
    %v4048 = vmul.f32 %v4046, %v4046
    %v4049 = vmul.f32 %v4047, %v4047
    %v4050 = vsel %vm97, %v4048, 0.0
    %4051 = vadd.xlane.f32.xlu0 %v4050
    %v4052 = vpop.xlane.xlu0 %4051
    %v4053 = vsel %vm97, %v4049, 0.0
    %4054 = vadd.xlane.f32.xlu0 %v4053
    %v4055 = vpop.xlane.xlu0 %4054
    %v4056 = vmul.f32 %v4052, %v1646
    %v4057 = vmul.f32 %v4055, %v1646
    %v4058 = vadd.f32 %v4056, 1e-05
    %v4059 = vadd.f32 %v4057, 1e-05
    %v4060 = vrsqrt.pop %v4058
    %v4061 = vrsqrt.pop %v4059
    %v4062 = vmul.f32 %v4046, %v4060
    %v4063 = vmul.f32 %v4047, %v4061
    %v4064 = vlaneseq
    %v4065 = vshrl.u32 %v4064, 7
    %v4066 = vsub.s32 0, %v4065
    %v4067 = vrot.slane %v4036, %v4066
    %v4068 = vmul.f32 %v4062, %v4067
    %v4069 = vmul.f32 %v4063, %v4067
    %v4070 = vlaneseq
    %v4071 = vshrl.u32 %v4070, 7
    %v4072 = vsub.s32 0, %v4071
    %v4073 = vrot.slane %v4037, %v4072
    %v4074 = vadd.f32 %v4068, %v4073
    %v4075 = vadd.f32 %v4069, %v4073
    %v4076 = vld [vmem:[%s18] sm:$0xff]
    %v4077 = vld [vmem:[%s18 + $0x8] sm:$0xff]
    %v4078 = vld [vmem:[%s18 + $0x10] sm:$0xff]
    %v4079 = vld [vmem:[%s18 + $0x18] sm:$0xff]
    %v4080 = vld [vmem:[%s19] sm:$0x1]
    %v4082 = vlaneseq
    %v4083 = vshrl.u32 %v4082, 7
    %v4084 = vsub.s32 0, %v4083
    %v4085 = vrot.slane %v4080, %v4084
    %v4088 = vsel %vm97, %v4074, 0
    %v4091 = vsel %vm97, %v4075, 0
    %4093 = vmatprep.subr.mxu0 0.0
    %4094 = vmatpush1.msra.mxu0 0.0
    %4095 = vmatprep.subr.mxu0 0.0
    %4096 = vmatpush1.msra.mxu0 0.0
    %4097 = vmatprep.subr.mxu0 0.0
    %4098 = vmatpush1.msra.mxu0 0.0
    %4099 = vmatprep.subr.mxu0 0.0
    %4100 = vmatpush1.msra.mxu0 0.0
    %4101 = vmatprep.subr.mxu0 0.0
    %4102 = vmatpush1.msra.mxu0 0.0
    %4103 = vmatprep.subr.mxu0 0.0
    %4104 = vmatpush1.msra.mxu0 0.0
    %4105 = vmatprep.subr.mxu0 0.0
    %4106 = vmatpush1.msra.mxu0 0.0
    %4107 = vmatprep.subr.mxu0 0.0
    %4108 = vmatpush1.msra.mxu0 0.0
    %4109 = vmatprep.subr.mxu0 0.0
    %4110 = vmatpush1.msra.mxu0 0.0
    %4111 = vmatprep.subr.mxu0 0.0
    %4112 = vmatpush1.msra.mxu0 0.0
    %4113 = vmatprep.subr.mxu0 0.0
    %4114 = vmatpush1.msra.mxu0 0.0
    %4115 = vmatprep.subr.mxu0 0.0
    %4116 = vmatpush1.msra.mxu0 0.0
    %4117 = vmatprep.subr.mxu0 0.0
    %4118 = vmatpush1.msra.mxu0 %v4079
    %4119 = vmatprep.subr.mxu0 0.0
    %4120 = vmatpush1.msra.mxu0 %v4078
    %4121 = vmatprep.subr.mxu0 0.0
    %4122 = vmatpush1.msra.mxu0 %v4077
    %4123 = vmatprep.subr.mxu0 0.0
    %4124 = vmatpush1.msra.mxu0 %v4076
    %4125 = vmatprep.subr.mxu0 0.0
    %4126 = vmatpush2.msra.mxu0 0.0
    %4127 = vmatprep.subr.mxu0 0.0
    %4128 = vmatpush2.msra.mxu0 0.0
    %4129 = vmatprep.subr.mxu0 0.0
    %4130 = vmatpush2.msra.mxu0 0.0
    %4131 = vmatprep.subr.mxu0 0.0
    %4132 = vmatpush2.msra.mxu0 0.0
    %4133 = vmatprep.subr.mxu0 0.0
    %4134 = vmatpush2.msra.mxu0 0.0
    %4135 = vmatprep.subr.mxu0 0.0
    %4136 = vmatpush2.msra.mxu0 0.0
    %4137 = vmatprep.subr.mxu0 0.0
    %4138 = vmatpush2.msra.mxu0 0.0
    %4139 = vmatprep.subr.mxu0 0.0
    %4140 = vmatpush2.msra.mxu0 0.0
    %4141 = vmatprep.subr.mxu0 0.0
    %4142 = vmatpush2.msra.mxu0 0.0
    %4143 = vmatprep.subr.mxu0 0.0
    %4144 = vmatpush2.msra.mxu0 0.0
    %4145 = vmatprep.subr.mxu0 0.0
    %4146 = vmatpush2.msra.mxu0 0.0
    %4147 = vmatprep.subr.mxu0 0.0
    %4148 = vmatpush2.msra.mxu0 0.0
    %4149 = vmatprep.subr.mxu0 0.0
    %4150 = vmatpush2.msra.mxu0 0.0
    %4151 = vmatprep.subr.mxu0 0.0
    %4152 = vmatpush2.msra.mxu0 0.0
    %4153 = vmatprep.subr.mxu0 0.0
    %4154 = vmatpush2.msra.mxu0 0.0
    %4155 = vmatprep.subr.mxu0 0.0
    %4156 = vmatpush2.msra.mxu0 0.0
    %4157 = vmatprep.mubr.f32.mxu0 0.0
    %4158 = vmatmul.mubr.f32.gmra.mxu0 %v4088
    %v4159 = vpop.f32.mrf.mxu0
    %v4160 = vadd.f32 %v4085, %v4159
    %v4161 = vpop.f32.mrf.mxu0
    %4162 = vmatprep.mubr.f32.mxu0 0.0
    %4163 = vmatmul.mubr.f32.gmra.mxu0 %v4091
    %v4164 = vpop.f32.mrf.mxu0
    %v4165 = vadd.f32 %v4085, %v4164
    %v4166 = vpop.f32.mrf.mxu0
    %4167 = vdwg.mxu0
    %4168 = vst [vmem:[#allocation2] sm:$0xff] %v4160
    %4169 = vst [vmem:[#allocation2 + $0x8] sm:$0xff] %v4165
    // Predicated region
    $region82: #{image_caption_forward.3} parent=1 // pred_check
      _
    $region83: #{image_caption_forward.3} parent=1 // pred_check_branch
      %4171 = sbr.rel (0) target = $region85
    $region84: #{image_caption_forward.3} parent=1 // pred_region
      %s4173 = ssub.s32 256, 256
      %4174 = vsyncadd [#allocation3], %s4173
      %s4175 = sshll.u32 [#allocation2], 4
      %s4176 = int_to_ptr.vmem [resolvable:$true] %s4175
      %4181 = dma.vmem_to_hbm [thread:$0]  %s4176, 256, %s20, [#allocation3], 128, 128, 8
    $region85: #{image_caption_forward.3} parent=1 // pred_fallthru
      _
    // Predicated region
    $region86: #{image_caption_forward.3} parent=1 // pred_check
      _
    $region87: #{image_caption_forward.3} parent=1 // pred_check_branch
      %4183 = sbr.rel (0) target = $region89
    $region88: #{image_caption_forward.3} parent=1 // pred_region
      %4184 = dma.done [#allocation3], 256
    $region89: #{image_caption_forward.3} parent=1 // pred_fallthru
      _
    %4185 = vsyncpa [#allocation3], 1

</llo_original>
